<compile_context>
chip_gen: v7x
topology: tpu7x:2x2x1
jax: 0.10.0
libtpu: 0.0.40
codegen_flags: <defaults>
</compile_context>

<pallas_src>
import numpy as np
import jax
import jax.numpy as jnp
from jax import lax
from jax.experimental import pallas as pl
from jax.experimental.pallas import tpu as pltpu


# ---------------------------------------------------------------------------
# Host-side (init-time) constants: conv patch-gather / upsample matrices.
# ---------------------------------------------------------------------------

def _conv_select_mats(hi, wi, k, s):
    """0/1 matrices S[t] of shape (hi*wi, ho*wo).  Column m of S[t] selects the input
    pixel feeding tap t of output pixel m (YOLO autopad p=k//2; out-of-bounds rows are
    all-zero == zero padding).  In-kernel, `X(C, hi*wi) @ S[t]` is the shifted/strided
    im2col view for tap t."""
    p = k // 2
    ho = (hi + 2 * p - k) // s + 1
    wo = (wi + 2 * p - k) // s + 1
    S = np.zeros((k * k, hi * wi, ho * wo), np.float32)
    for kh in range(k):
        for kw in range(k):
            t = kh * k + kw
            for oy in range(ho):
                iy = oy * s + kh - p
                if iy < 0 or iy >= hi:
                    continue
                for ox in range(wo):
                    ix = ox * s + kw - p
                    if ix < 0 or ix >= wi:
                        continue
                    S[t, iy * wi + ix, oy * wo + ox] = 1.0
    return S, ho, wo


def _upsample2x_mat(hi, wi):
    """0/1 matrix U (hi*wi, 4*hi*wi): nearest-neighbour 2x upsample as column
    replication.  Composed into the following conv's gather matrices on the host."""
    U = np.zeros((hi * wi, (2 * hi) * (2 * wi)), np.float32)
    for y in range(hi):
        for x in range(wi):
            for dy in range(2):
                for dx in range(2):
                    U[y * wi + x, (2 * y + dy) * (2 * wi) + (2 * x + dx)] = 1.0
    return U


def _block_diag(mat, B):
    """(r, c) -> (B*r, B*c) per-image block-diagonal replication (batch-in-lanes)."""
    r, c = mat.shape
    out = np.zeros((B * r, B * c), mat.dtype)
    for b in range(B):
        out[b * r:(b + 1) * r, b * c:(b + 1) * c] = mat
    return out


def _const_spec(shape):
    """Full-array block with a constant index map (grid=(1,))."""
    n = len(shape)
    return pl.BlockSpec(shape, lambda i, _n=n: (0,) * _n)


# ---------------------------------------------------------------------------
# The fused Pallas kernel.
# ---------------------------------------------------------------------------

def _make_fused_kernel(n_conv, has_tail_up, decode):
    """Ref order:
         x  (W_taps, bias, S_all) * n_conv  [tail_upsample]  head_w  head_b
         [decode_scale  decode_offset]  out
       Activation layout is (channels, B*H*W): channels on sublanes, batch*spatial on
       lanes (lane-dense)."""

    def kernel(*refs):
        i = 0
        x_ref = refs[i]; i += 1
        conv_refs = []
        for _ in range(n_conv):
            conv_refs.append((refs[i], refs[i + 1], refs[i + 2]))
            i += 3
        tail_ref = None
        if has_tail_up:
            tail_ref = refs[i]; i += 1
        hw_ref = refs[i]; hb_ref = refs[i + 1]; i += 2
        scale_ref = off_ref = None
        if decode:
            scale_ref = refs[i]; off_ref = refs[i + 1]; i += 2
        o_ref = refs[i]

        a = x_ref[...]                                          # (C0, B*H0*W0) f32, VMEM

        # ---- Conv(c,k,s) + folded BN + SiLU stack (all VMEM resident) ----
        for w_ref, b_ref, s_ref in conv_refs:
            taps, cout, _cin = w_ref.shape
            bmo = s_ref.shape[1] // taps                        # B * ho * wo
            # single hstacked gather matmul: (cin, B*hw_in) @ (B*hw_in, taps*bmo)
            shifted = jnp.dot(a.astype(jnp.bfloat16), s_ref[...],
                              preferred_element_type=jnp.float32)
            acc = jnp.zeros((cout, bmo), jnp.float32)
            for t in range(taps):                               # unrolled (9 tiny matmuls)
                acc = acc + jnp.dot(w_ref[t],
                                    shifted[:, t * bmo:(t + 1) * bmo],
                                    preferred_element_type=jnp.float32)
            acc = acc + b_ref[...]                              # folded BN bias
            a = acc * jax.nn.sigmoid(acc)                       # SiLU

        if tail_ref is not None:                                # trailing nn.Upsample(2)
            a = jnp.dot(a.astype(jnp.bfloat16), tail_ref[...],
                        preferred_element_type=jnp.float32)

        # ---- refine_head: 1x1 conv + bias (channels padded to a full sublane tile) ----
        y = jnp.dot(hw_ref[...], a, preferred_element_type=jnp.float32) + hb_ref[...]

        if decode:
            # Full decode pre-folded on the host into a per-element affine:
            #   out = sigmoid(y) * SCALE + OFFSET
            y = jax.nn.sigmoid(y) * scale_ref[...] + off_ref[...]

        o_ref[...] = y.astype(o_ref.dtype)                      # full (8, B*mo) tile store

    return kernel


# ---------------------------------------------------------------------------
# Module wrapper (parameter setup + single pallas_call per forward).
# ---------------------------------------------------------------------------

class RefineNet:
    def __init__(self, cfg, ch=4, key=jax.random.PRNGKey(0)):
        self.yaml = cfg
        self.nc = cfg['nc']
        self.no = 5 + self.nc
        self.no_pad = ((self.no + 7) // 8) * 8                  # full sublane tile for head
        keys = jax.random.split(key, len(cfg['refine_net']) + 1)
        self.layers = []
        c = ch
        for i, (f, n, m, args) in enumerate(cfg['refine_net']):
            if m == 'Conv':
                c2, k, s = args[0], args[1], args[2]
                kw_, kg, kb = jax.random.split(keys[i], 3)
                w = 0.1 * jax.random.normal(kw_, (c2, c, k, k), jnp.float32)  # torch OIHW
                gamma = 1.0 + 0.1 * jax.random.normal(kg, (c2,), jnp.float32)
                beta = 0.1 * jax.random.normal(kb, (c2,), jnp.float32)
                rmean = jnp.zeros((c2,), jnp.float32)
                rvar = jnp.ones((c2,), jnp.float32)
                eps = 1e-3
                bn_scale = gamma / jnp.sqrt(rvar + eps)
                bn_bias = beta - rmean * bn_scale
                # per-tap weights with BN scale folded in: (k*k, cout, cin)
                w_tap = jnp.transpose(w, (2, 3, 0, 1)).reshape(k * k, c2, c)
                self.layers.append(dict(
                    kind='conv', k=k, s=s,
                    w_torch=w, bn_scale=bn_scale, bn_bias=bn_bias,
                    w_fold=w_tap * bn_scale[None, :, None],
                    b_fold=bn_bias.reshape(c2, 1)))
                c = c2
            elif m == 'nn.Upsample':
                self.layers.append(dict(kind='up'))
        khw, khb = jax.random.split(keys[-1])
        wh = 0.1 * jax.random.normal(khw, (self.no, c, 1, 1), jnp.float32)
        self.head_w = wh[:, :, 0, 0]                                        # (no, c)
        self.head_b = 0.1 * jax.random.normal(khb, (self.no,), jnp.float32).reshape(self.no, 1)
        pad = self.no_pad - self.no
        self.head_w_pad = jnp.concatenate(
            [self.head_w, jnp.zeros((pad, c), jnp.float32)], axis=0)        # (no_pad, c)
        self.head_b_pad = jnp.concatenate(
            [self.head_b, jnp.zeros((pad, 1), jnp.float32)], axis=0)        # (no_pad, 1)
        self.out_ch = c
        self._plan_cache = {}

    # -- per-(batch, resolution) constants: block-diag, tap-hstacked gather matrices --
    def _plan(self, B, H, W):
        key = (B, H, W)
        if key in self._plan_cache:
            return self._plan_cache[key]
        S_list = []
        T = None                     # pending per-image upsample (prev_cols, cur h*w)
        h, w = H, W
        for lyr in self.layers:
            if lyr['kind'] == 'conv':
                S, ho, wo = _conv_select_mats(h, w, lyr['k'], lyr['s'])
                if T is not None:    # fold preceding upsample(s) into this conv's gather
                    S = np.einsum('ij,tjm->tim', T, S).astype(np.float32)
                    T = None
                taps = S.shape[0]
                # per-image block-diag (batch folded into lanes), then hstack the taps
                S_all = np.concatenate([_block_diag(S[t], B) for t in range(taps)], axis=1)
                S_list.append(jnp.asarray(S_all, jnp.bfloat16))   # 0/1 values: exact in bf16
                h, w = ho, wo
            else:                    # nearest-2x upsample
                U = _upsample2x_mat(h, w)
                T = U if T is None else (T @ U).astype(np.float32)
                h, w = 2 * h, 2 * w
        tail_up = jnp.asarray(_block_diag(T, B), jnp.bfloat16) if T is not None else None
        plan = (S_list, tail_up, h, w)
        self._plan_cache[key] = plan
        return plan

    # -- decode folded to out = sigmoid(y) * scale + offset, per (channel, b*mo) lane --
    def _decode_affine(self, boxes_arr, ny, nx, B):
        mo = ny * nx
        no_pad = self.no_pad
        x0 = boxes_arr[:, 0]
        y0 = boxes_arr[:, 1]
        bw = boxes_arr[:, 2] - x0
        bh = boxes_arr[:, 3] - y0
        m = jnp.arange(mo)
        gx = (m % nx).astype(jnp.float32)[None, :]              # grid x (column)
        gy = (m // nx).astype(jnp.float32)[None, :]             # grid y (row)
        ones = jnp.ones((B, mo), jnp.float32)
        zeros = jnp.zeros((B, mo), jnp.float32)
        # NOTE: reference divides channel 0 by ny and channel 1 by nx (faithful to spec).
        sc0 = (2.0 * bw / float(ny))[:, None] * ones
        of0 = (gx - 0.5) * (bw / float(ny))[:, None] + x0[:, None]
        sc1 = (2.0 * bh / float(nx))[:, None] * ones
        of1 = (gy - 0.5) * (bh / float(nx))[:, None] + y0[:, None]
        sc2 = bw[:, None] * ones
        sc3 = bh[:, None] * ones
        rest = no_pad - 4
        scale = jnp.stack([sc0, sc1, sc2, sc3] + [ones] * rest, axis=0)
        offset = jnp.stack([of0, of1, zeros, zeros] + [zeros] * rest, axis=0)
        return scale.reshape(no_pad, B * mo), offset.reshape(no_pad, B * mo)

    def __call__(self, x_nchw, boxes=(), train=True, eval=False):
        x = jnp.asarray(x_nchw, jnp.float32)
        B, C, H, W = x.shape
        S_list, tail_up, ny, nx = self._plan(B, H, W)
        mo = ny * nx
        bmo = B * mo
        no, no_pad = self.no, self.no_pad
        decode = (not train) or eval

        # Batch folded into lanes: (B,C,H,W) -> (C, B*H*W).  8 KB transpose in XLA,
        # pure layout plumbing; everything downstream is lane-dense.
        x2 = jnp.transpose(x.reshape(B, C, H * W), (1, 0, 2)).reshape(C, B * H * W)

        operands = [x2]
        in_specs = [_const_spec(x2.shape)]
        conv_layers = [l for l in self.layers if l['kind'] == 'conv']
        for lyr, S in zip(conv_layers, S_list):
            for arr in (lyr['w_fold'], lyr['b_fold'], S):
                operands.append(arr)
                in_specs.append(_const_spec(arr.shape))
        if tail_up is not None:
            operands.append(tail_up)
            in_specs.append(_const_spec(tail_up.shape))
        operands += [self.head_w_pad, self.head_b_pad]
        in_specs += [_const_spec(self.head_w_pad.shape), _const_spec(self.head_b_pad.shape)]

        if decode:
            if not train:
                boxes_arr = jnp.asarray(boxes[0], jnp.float32)
            else:                                  # train=True, eval=True path
                boxes_arr = jnp.concatenate(
                    [jnp.asarray(bx, jnp.float32) for bx in boxes], axis=0)
            dec_scale, dec_off = self._decode_affine(boxes_arr, ny, nx, B)
            operands += [dec_scale, dec_off]
            in_specs += [_const_spec(dec_scale.shape), _const_spec(dec_off.shape)]

        # ---- cost estimate (advisory, for XLA scheduling around the custom call) ----
        flops = 0
        transc = 0
        for lyr, S in zip(conv_layers, S_list):
            taps, cout, cin_l = lyr['w_fold'].shape
            rows, tot = S.shape
            bmo_l = tot // taps
            flops += 2 * cin_l * rows * tot + 2 * taps * cout * cin_l * bmo_l
            transc += cout * bmo_l
        if tail_up is not None:
            r, c2 = tail_up.shape
            flops += 2 * self.out_ch * r * c2
        flops += 2 * no_pad * self.out_ch * bmo
        if decode:
            transc += no_pad * bmo
        bytes_acc = sum(int(np.prod(op.shape)) * op.dtype.itemsize for op in operands)
        bytes_acc += no_pad * bmo * 4

        kernel = _make_fused_kernel(len(conv_layers), tail_up is not None, decode)
        out = pl.pallas_call(
            kernel,
            out_shape=jax.ShapeDtypeStruct((no_pad, bmo), jnp.float32),
            grid=(1,),
            in_specs=in_specs,
            out_specs=pl.BlockSpec((no_pad, bmo), lambda i: (0, 0)),
            compiler_params=pltpu.CompilerParams(
                dimension_semantics=("arbitrary",),
                # Explicit scoped-VMEM budget (above v5e's 16 MiB default, within physical
                # VMEM on all gens).  Raise / switch to roll-based taps for larger inputs.
                vmem_limit_bytes=32 * 1024 * 1024,
            ),
            cost_estimate=pl.CostEstimate(flops=int(flops),
                                          transcendentals=int(transc),
                                          bytes_accessed=int(bytes_acc)),
        )(*operands)

        # (no_pad, B*mo) -> (B, mo, no): tiny layout plumbing outside the kernel.
        y = jnp.transpose(out.reshape(no_pad, B, mo)[:no], (1, 2, 0))
        if decode:
            return y                               # matches reference .view(bs, -1, no)
        return [y.reshape(B, ny, nx, no)]          # train path: raw (bs, ny, nx, no)


# ---------------------------------------------------------------------------
# Plain-JAX transcription of the PyTorch reference (for the self-check only).
# ---------------------------------------------------------------------------

def _reference_forward(net, x_nchw, boxes_arr=None):
    a = jnp.asarray(x_nchw, jnp.float32)
    for lyr in net.layers:
        if lyr['kind'] == 'conv':
            p = lyr['k'] // 2
            a = lax.conv_general_dilated(
                a, lyr['w_torch'], (lyr['s'], lyr['s']), [(p, p), (p, p)],
                dimension_numbers=('NCHW', 'OIHW', 'NCHW'),
                precision=lax.Precision.HIGHEST)
            a = a * lyr['bn_scale'][None, :, None, None] + lyr['bn_bias'][None, :, None, None]
            a = a * jax.nn.sigmoid(a)
        else:
            a = jnp.repeat(jnp.repeat(a, 2, axis=2), 2, axis=3)
    y = lax.conv_general_dilated(
        a, net.head_w[:, :, None, None], (1, 1), [(0, 0), (0, 0)],
        dimension_numbers=('NCHW', 'OIHW', 'NCHW'),
        precision=lax.Precision.HIGHEST)
    y = y + net.head_b.reshape(1, -1, 1, 1)
    y = jnp.transpose(y, (0, 2, 3, 1))                          # (B, ny, nx, no)
    if boxes_arr is None:
        return y
    B, ny, nx, no = y.shape
    sig = jax.nn.sigmoid(y)
    yv, xv = jnp.meshgrid(jnp.arange(ny), jnp.arange(nx), indexing='ij')
    grid = jnp.stack([xv, yv], axis=-1).astype(jnp.float32)
    xy = sig[..., 0:2] * 2.0 - 0.5 + grid[None]
    bw = (boxes_arr[:, 2] - boxes_arr[:, 0]).reshape(-1, 1, 1)
    bh = (boxes_arr[:, 3] - boxes_arr[:, 1]).reshape(-1, 1, 1)
    c0 = xy[..., 0] * bw / ny + boxes_arr[:, 0].reshape(-1, 1, 1)
    c1 = xy[..., 1] * bh / nx + boxes_arr[:, 1].reshape(-1, 1, 1)
    c2 = sig[..., 2] * bw
    c3 = sig[..., 3] * bh
    out = jnp.concatenate([c0[..., None], c1[..., None], c2[..., None],
                           c3[..., None], sig[..., 4:]], axis=-1)
    return out.reshape(B, -1, no)


# ---------------------------------------------------------------------------
# Demo
# ---------------------------------------------------------------------------

if __name__ == "__main__":
    key = jax.random.PRNGKey(0)
    kx, kb, kp = jax.random.split(key, 3)

    cfg = {
        'nc': 1,
        'refine_net': [
            [-1, 1, 'Conv', [8, 3, 2]],                      # 4 -> 8,  16x16 -> 8x8
            [-1, 1, 'Conv', [16, 3, 2]],                     # 8 -> 16,  8x8  -> 4x4
            [-1, 1, 'nn.Upsample', [None, 2, 'nearest']],    # 4x4 -> 8x8
            [-1, 1, 'Conv', [16, 3, 1]],                     # 16 -> 16, 8x8
        ],
    }

    net = RefineNet(cfg, ch=4, key=kp)
    x = jax.random.normal(kx, (2, 4, 16, 16), jnp.float32)   # NCHW, like PyTorch

    # training path: list of raw head outputs, (2, 8, 8, 6)
    out_train = net(x, boxes=[], train=True, eval=False)
    jax.block_until_ready(out_train[0])
    assert out_train[0].shape == (2, 8, 8, 6)

    # inference path: decode with per-image boxes [x0, y0, x1, y1]
    raw = jnp.abs(jax.random.normal(kb, (2, 4), jnp.float32)) * 10.0
    boxes = jnp.stack([raw[:, 0], raw[:, 1],
                       raw[:, 0] + raw[:, 2] + 1.0,
                       raw[:, 1] + raw[:, 3] + 1.0], axis=1)
    out_inf = net(x, boxes=[boxes], train=False, eval=False)
    jax.block_until_ready(out_inf)
    assert out_inf.shape == (2, 64, 6)

    # eval path (train=True, eval=True): same decode with concatenated boxes
    out_eval = net(x, boxes=[boxes], train=True, eval=True)
    jax.block_until_ready(out_eval)
    assert out_eval.shape == (2, 64, 6)

    # cross-check the fused kernel against a plain-JAX transcription of the spec
    # (tolerance accounts for the deliberate bf16 activation path through the gathers)
    ref_train = _reference_forward(net, x, None)
    np.testing.assert_allclose(np.asarray(out_train[0]), np.asarray(ref_train),
                               atol=2e-2, rtol=2e-2)
    ref_inf = _reference_forward(net, x, boxes)
    np.testing.assert_allclose(np.asarray(out_inf), np.asarray(ref_inf),
                               atol=2e-2, rtol=2e-2)
    np.testing.assert_allclose(np.asarray(out_eval), np.asarray(out_inf),
                               atol=1e-5, rtol=1e-5)

    print("KERNEL_OK")
</pallas_src>

<mosaic_0001>
module attributes {stable_mosaic.version = 11 : i64} {
  func.func @kernel(%arg0: i32, %arg1: memref<4x512xf32, #tpu.memory_space<vmem>>, %arg2: memref<9x8x4xf32, #tpu.memory_space<vmem>>, %arg3: memref<8x1xf32, #tpu.memory_space<vmem>>, %arg4: memref<512x1152xbf16, #tpu.memory_space<vmem>>, %arg5: memref<9x16x8xf32, #tpu.memory_space<vmem>>, %arg6: memref<16x1xf32, #tpu.memory_space<vmem>>, %arg7: memref<128x288xbf16, #tpu.memory_space<vmem>>, %arg8: memref<9x16x16xf32, #tpu.memory_space<vmem>>, %arg9: memref<16x1xf32, #tpu.memory_space<vmem>>, %arg10: memref<32x1152xbf16, #tpu.memory_space<vmem>>, %arg11: memref<8x16xf32, #tpu.memory_space<vmem>>, %arg12: memref<8x1xf32, #tpu.memory_space<vmem>>, %arg13: memref<8x128xf32, #tpu.memory_space<vmem>>) attributes {dimension_semantics = [#tpu.dimension_semantics<arbitrary>], iteration_bounds = array<i64: 1>, scalar_prefetch = 0 : i64, scratch_operands = 0 : i64, tpu.core_type = #tpu.core_type<tc>, window_params = [{pipeline_mode = #tpu.pipeline_mode<synchronous>, transform_indices = @transform_0, window_bounds = array<i64: 4, 512>}, {pipeline_mode = #tpu.pipeline_mode<synchronous>, transform_indices = @transform_1, window_bounds = array<i64: 9, 8, 4>}, {pipeline_mode = #tpu.pipeline_mode<synchronous>, transform_indices = @transform_2, window_bounds = array<i64: 8, 1>}, {pipeline_mode = #tpu.pipeline_mode<synchronous>, transform_indices = @transform_3, window_bounds = array<i64: 512, 1152>}, {pipeline_mode = #tpu.pipeline_mode<synchronous>, transform_indices = @transform_4, window_bounds = array<i64: 9, 16, 8>}, {pipeline_mode = #tpu.pipeline_mode<synchronous>, transform_indices = @transform_5, window_bounds = array<i64: 16, 1>}, {pipeline_mode = #tpu.pipeline_mode<synchronous>, transform_indices = @transform_6, window_bounds = array<i64: 128, 288>}, {pipeline_mode = #tpu.pipeline_mode<synchronous>, transform_indices = @transform_7, window_bounds = array<i64: 9, 16, 16>}, {pipeline_mode = #tpu.pipeline_mode<synchronous>, transform_indices = @transform_8, window_bounds = array<i64: 16, 1>}, {pipeline_mode = #tpu.pipeline_mode<synchronous>, transform_indices = @transform_9, window_bounds = array<i64: 32, 1152>}, {pipeline_mode = #tpu.pipeline_mode<synchronous>, transform_indices = @transform_10, window_bounds = array<i64: 8, 16>}, {pipeline_mode = #tpu.pipeline_mode<synchronous>, transform_indices = @transform_11, window_bounds = array<i64: 8, 1>}, {pipeline_mode = #tpu.pipeline_mode<synchronous>, transform_indices = @transform_12, window_bounds = array<i64: 8, 128>}]} {
    %c0 = arith.constant 0 : index
    %c0_0 = arith.constant 0 : index
    %0 = vector.load %arg1[%c0, %c0_0] : memref<4x512xf32, #tpu.memory_space<vmem>>, vector<4x512xf32>
    %1 = arith.truncf %0 : vector<4x512xf32> to vector<4x512xbf16>
    %c0_1 = arith.constant 0 : index
    %c0_2 = arith.constant 0 : index
    %2 = vector.load %arg4[%c0_1, %c0_2] : memref<512x1152xbf16, #tpu.memory_space<vmem>>, vector<512x1152xbf16>
    %cst = arith.constant dense<0.000000e+00> : vector<4x1152xf32>
    %3 = tpu.matmul %1, %2, %cst {dimension_numbers = #tpu.dot_dimension_numbers<[1], [0], [0], [1], [0, 0, 1, 1], [], []>} : vector<4x512xbf16>, vector<512x1152xbf16>, vector<4x1152xf32> -> vector<4x1152xf32>
    %cst_3 = arith.constant 0.000000e+00 : f32
    %4 = vector.broadcast %cst_3 : f32 to vector<8x128xf32>
    %c0_4 = arith.constant 0 : index
    %c0_5 = arith.constant 0 : index
    %c0_6 = arith.constant 0 : index
    %5 = vector.load %arg2[%c0_4, %c0_5, %c0_6] : memref<9x8x4xf32, #tpu.memory_space<vmem>>, vector<1x8x4xf32>
    %6 = vector.shape_cast %5 : vector<1x8x4xf32> to vector<8x4xf32>
    %7 = vector.extract_strided_slice %3 {offsets = [0, 0], sizes = [4, 128], strides = [1, 1]} : vector<4x1152xf32> to vector<4x128xf32>
    %cst_7 = arith.constant dense<0.000000e+00> : vector<8x128xf32>
    %8 = tpu.matmul %6, %7, %cst_7 {dimension_numbers = #tpu.dot_dimension_numbers<[1], [0], [0], [1], [0, 0, 1, 1], [], []>} : vector<8x4xf32>, vector<4x128xf32>, vector<8x128xf32> -> vector<8x128xf32>
    %9 = arith.addf %4, %8 : vector<8x128xf32>
    %c1 = arith.constant 1 : index
    %c0_8 = arith.constant 0 : index
    %c0_9 = arith.constant 0 : index
    %10 = vector.load %arg2[%c1, %c0_8, %c0_9] : memref<9x8x4xf32, #tpu.memory_space<vmem>>, vector<1x8x4xf32>
    %11 = vector.shape_cast %10 : vector<1x8x4xf32> to vector<8x4xf32>
    %12 = vector.extract_strided_slice %3 {offsets = [0, 128], sizes = [4, 128], strides = [1, 1]} : vector<4x1152xf32> to vector<4x128xf32>
    %cst_10 = arith.constant dense<0.000000e+00> : vector<8x128xf32>
    %13 = tpu.matmul %11, %12, %cst_10 {dimension_numbers = #tpu.dot_dimension_numbers<[1], [0], [0], [1], [0, 0, 1, 1], [], []>} : vector<8x4xf32>, vector<4x128xf32>, vector<8x128xf32> -> vector<8x128xf32>
    %14 = arith.addf %9, %13 : vector<8x128xf32>
    %c2 = arith.constant 2 : index
    %c0_11 = arith.constant 0 : index
    %c0_12 = arith.constant 0 : index
    %15 = vector.load %arg2[%c2, %c0_11, %c0_12] : memref<9x8x4xf32, #tpu.memory_space<vmem>>, vector<1x8x4xf32>
    %16 = vector.shape_cast %15 : vector<1x8x4xf32> to vector<8x4xf32>
    %17 = vector.extract_strided_slice %3 {offsets = [0, 256], sizes = [4, 128], strides = [1, 1]} : vector<4x1152xf32> to vector<4x128xf32>
    %cst_13 = arith.constant dense<0.000000e+00> : vector<8x128xf32>
    %18 = tpu.matmul %16, %17, %cst_13 {dimension_numbers = #tpu.dot_dimension_numbers<[1], [0], [0], [1], [0, 0, 1, 1], [], []>} : vector<8x4xf32>, vector<4x128xf32>, vector<8x128xf32> -> vector<8x128xf32>
    %19 = arith.addf %14, %18 : vector<8x128xf32>
    %c3 = arith.constant 3 : index
    %c0_14 = arith.constant 0 : index
    %c0_15 = arith.constant 0 : index
    %20 = vector.load %arg2[%c3, %c0_14, %c0_15] : memref<9x8x4xf32, #tpu.memory_space<vmem>>, vector<1x8x4xf32>
    %21 = vector.shape_cast %20 : vector<1x8x4xf32> to vector<8x4xf32>
    %22 = vector.extract_strided_slice %3 {offsets = [0, 384], sizes = [4, 128], strides = [1, 1]} : vector<4x1152xf32> to vector<4x128xf32>
    %cst_16 = arith.constant dense<0.000000e+00> : vector<8x128xf32>
    %23 = tpu.matmul %21, %22, %cst_16 {dimension_numbers = #tpu.dot_dimension_numbers<[1], [0], [0], [1], [0, 0, 1, 1], [], []>} : vector<8x4xf32>, vector<4x128xf32>, vector<8x128xf32> -> vector<8x128xf32>
    %24 = arith.addf %19, %23 : vector<8x128xf32>
    %c4 = arith.constant 4 : index
    %c0_17 = arith.constant 0 : index
    %c0_18 = arith.constant 0 : index
    %25 = vector.load %arg2[%c4, %c0_17, %c0_18] : memref<9x8x4xf32, #tpu.memory_space<vmem>>, vector<1x8x4xf32>
    %26 = vector.shape_cast %25 : vector<1x8x4xf32> to vector<8x4xf32>
    %27 = vector.extract_strided_slice %3 {offsets = [0, 512], sizes = [4, 128], strides = [1, 1]} : vector<4x1152xf32> to vector<4x128xf32>
    %cst_19 = arith.constant dense<0.000000e+00> : vector<8x128xf32>
    %28 = tpu.matmul %26, %27, %cst_19 {dimension_numbers = #tpu.dot_dimension_numbers<[1], [0], [0], [1], [0, 0, 1, 1], [], []>} : vector<8x4xf32>, vector<4x128xf32>, vector<8x128xf32> -> vector<8x128xf32>
    %29 = arith.addf %24, %28 : vector<8x128xf32>
    %c5 = arith.constant 5 : index
    %c0_20 = arith.constant 0 : index
    %c0_21 = arith.constant 0 : index
    %30 = vector.load %arg2[%c5, %c0_20, %c0_21] : memref<9x8x4xf32, #tpu.memory_space<vmem>>, vector<1x8x4xf32>
    %31 = vector.shape_cast %30 : vector<1x8x4xf32> to vector<8x4xf32>
    %32 = vector.extract_strided_slice %3 {offsets = [0, 640], sizes = [4, 128], strides = [1, 1]} : vector<4x1152xf32> to vector<4x128xf32>
    %cst_22 = arith.constant dense<0.000000e+00> : vector<8x128xf32>
    %33 = tpu.matmul %31, %32, %cst_22 {dimension_numbers = #tpu.dot_dimension_numbers<[1], [0], [0], [1], [0, 0, 1, 1], [], []>} : vector<8x4xf32>, vector<4x128xf32>, vector<8x128xf32> -> vector<8x128xf32>
    %34 = arith.addf %29, %33 : vector<8x128xf32>
    %c6 = arith.constant 6 : index
    %c0_23 = arith.constant 0 : index
    %c0_24 = arith.constant 0 : index
    %35 = vector.load %arg2[%c6, %c0_23, %c0_24] : memref<9x8x4xf32, #tpu.memory_space<vmem>>, vector<1x8x4xf32>
    %36 = vector.shape_cast %35 : vector<1x8x4xf32> to vector<8x4xf32>
    %37 = vector.extract_strided_slice %3 {offsets = [0, 768], sizes = [4, 128], strides = [1, 1]} : vector<4x1152xf32> to vector<4x128xf32>
    %cst_25 = arith.constant dense<0.000000e+00> : vector<8x128xf32>
    %38 = tpu.matmul %36, %37, %cst_25 {dimension_numbers = #tpu.dot_dimension_numbers<[1], [0], [0], [1], [0, 0, 1, 1], [], []>} : vector<8x4xf32>, vector<4x128xf32>, vector<8x128xf32> -> vector<8x128xf32>
    %39 = arith.addf %34, %38 : vector<8x128xf32>
    %c7 = arith.constant 7 : index
    %c0_26 = arith.constant 0 : index
    %c0_27 = arith.constant 0 : index
    %40 = vector.load %arg2[%c7, %c0_26, %c0_27] : memref<9x8x4xf32, #tpu.memory_space<vmem>>, vector<1x8x4xf32>
    %41 = vector.shape_cast %40 : vector<1x8x4xf32> to vector<8x4xf32>
    %42 = vector.extract_strided_slice %3 {offsets = [0, 896], sizes = [4, 128], strides = [1, 1]} : vector<4x1152xf32> to vector<4x128xf32>
    %cst_28 = arith.constant dense<0.000000e+00> : vector<8x128xf32>
    %43 = tpu.matmul %41, %42, %cst_28 {dimension_numbers = #tpu.dot_dimension_numbers<[1], [0], [0], [1], [0, 0, 1, 1], [], []>} : vector<8x4xf32>, vector<4x128xf32>, vector<8x128xf32> -> vector<8x128xf32>
    %44 = arith.addf %39, %43 : vector<8x128xf32>
    %c8 = arith.constant 8 : index
    %c0_29 = arith.constant 0 : index
    %c0_30 = arith.constant 0 : index
    %45 = vector.load %arg2[%c8, %c0_29, %c0_30] : memref<9x8x4xf32, #tpu.memory_space<vmem>>, vector<1x8x4xf32>
    %46 = vector.shape_cast %45 : vector<1x8x4xf32> to vector<8x4xf32>
    %47 = vector.extract_strided_slice %3 {offsets = [0, 1024], sizes = [4, 128], strides = [1, 1]} : vector<4x1152xf32> to vector<4x128xf32>
    %cst_31 = arith.constant dense<0.000000e+00> : vector<8x128xf32>
    %48 = tpu.matmul %46, %47, %cst_31 {dimension_numbers = #tpu.dot_dimension_numbers<[1], [0], [0], [1], [0, 0, 1, 1], [], []>} : vector<8x4xf32>, vector<4x128xf32>, vector<8x128xf32> -> vector<8x128xf32>
    %49 = arith.addf %44, %48 : vector<8x128xf32>
    %c0_32 = arith.constant 0 : index
    %c0_33 = arith.constant 0 : index
    %50 = vector.load %arg3[%c0_32, %c0_33] : memref<8x1xf32, #tpu.memory_space<vmem>>, vector<8x1xf32>
    %51 = vector.broadcast %50 : vector<8x1xf32> to vector<8x128xf32>
    %52 = arith.addf %49, %51 : vector<8x128xf32>
    %53 = arith.negf %52 : vector<8x128xf32>
    %54 = math.exp %53 : vector<8x128xf32>
    %cst_34 = arith.constant 1.000000e+00 : f32
    %55 = vector.broadcast %cst_34 : f32 to vector<8x128xf32>
    %56 = arith.addf %55, %54 : vector<8x128xf32>
    %57 = arith.divf %55, %56 : vector<8x128xf32>
    %58 = arith.mulf %52, %57 : vector<8x128xf32>
    %59 = arith.truncf %58 : vector<8x128xf32> to vector<8x128xbf16>
    %c0_35 = arith.constant 0 : index
    %c0_36 = arith.constant 0 : index
    %60 = vector.load %arg7[%c0_35, %c0_36] : memref<128x288xbf16, #tpu.memory_space<vmem>>, vector<128x288xbf16>
    %cst_37 = arith.constant dense<0.000000e+00> : vector<8x288xf32>
    %61 = tpu.matmul %59, %60, %cst_37 {dimension_numbers = #tpu.dot_dimension_numbers<[1], [0], [0], [1], [0, 0, 1, 1], [], []>} : vector<8x128xbf16>, vector<128x288xbf16>, vector<8x288xf32> -> vector<8x288xf32>
    %cst_38 = arith.constant 0.000000e+00 : f32
    %62 = vector.broadcast %cst_38 : f32 to vector<16x32xf32>
    %c0_39 = arith.constant 0 : index
    %c0_40 = arith.constant 0 : index
    %c0_41 = arith.constant 0 : index
    %63 = vector.load %arg5[%c0_39, %c0_40, %c0_41] : memref<9x16x8xf32, #tpu.memory_space<vmem>>, vector<1x16x8xf32>
    %64 = vector.shape_cast %63 : vector<1x16x8xf32> to vector<16x8xf32>
    %65 = vector.extract_strided_slice %61 {offsets = [0, 0], sizes = [8, 32], strides = [1, 1]} : vector<8x288xf32> to vector<8x32xf32>
    %cst_42 = arith.constant dense<0.000000e+00> : vector<16x32xf32>
    %66 = tpu.matmul %64, %65, %cst_42 {dimension_numbers = #tpu.dot_dimension_numbers<[1], [0], [0], [1], [0, 0, 1, 1], [], []>} : vector<16x8xf32>, vector<8x32xf32>, vector<16x32xf32> -> vector<16x32xf32>
    %67 = arith.addf %62, %66 : vector<16x32xf32>
    %c1_43 = arith.constant 1 : index
    %c0_44 = arith.constant 0 : index
    %c0_45 = arith.constant 0 : index
    %68 = vector.load %arg5[%c1_43, %c0_44, %c0_45] : memref<9x16x8xf32, #tpu.memory_space<vmem>>, vector<1x16x8xf32>
    %69 = vector.shape_cast %68 : vector<1x16x8xf32> to vector<16x8xf32>
    %70 = vector.extract_strided_slice %61 {offsets = [0, 32], sizes = [8, 32], strides = [1, 1]} : vector<8x288xf32> to vector<8x32xf32>
    %cst_46 = arith.constant dense<0.000000e+00> : vector<16x32xf32>
    %71 = tpu.matmul %69, %70, %cst_46 {dimension_numbers = #tpu.dot_dimension_numbers<[1], [0], [0], [1], [0, 0, 1, 1], [], []>} : vector<16x8xf32>, vector<8x32xf32>, vector<16x32xf32> -> vector<16x32xf32>
    %72 = arith.addf %67, %71 : vector<16x32xf32>
    %c2_47 = arith.constant 2 : index
    %c0_48 = arith.constant 0 : index
    %c0_49 = arith.constant 0 : index
    %73 = vector.load %arg5[%c2_47, %c0_48, %c0_49] : memref<9x16x8xf32, #tpu.memory_space<vmem>>, vector<1x16x8xf32>
    %74 = vector.shape_cast %73 : vector<1x16x8xf32> to vector<16x8xf32>
    %75 = vector.extract_strided_slice %61 {offsets = [0, 64], sizes = [8, 32], strides = [1, 1]} : vector<8x288xf32> to vector<8x32xf32>
    %cst_50 = arith.constant dense<0.000000e+00> : vector<16x32xf32>
    %76 = tpu.matmul %74, %75, %cst_50 {dimension_numbers = #tpu.dot_dimension_numbers<[1], [0], [0], [1], [0, 0, 1, 1], [], []>} : vector<16x8xf32>, vector<8x32xf32>, vector<16x32xf32> -> vector<16x32xf32>
    %77 = arith.addf %72, %76 : vector<16x32xf32>
    %c3_51 = arith.constant 3 : index
    %c0_52 = arith.constant 0 : index
    %c0_53 = arith.constant 0 : index
    %78 = vector.load %arg5[%c3_51, %c0_52, %c0_53] : memref<9x16x8xf32, #tpu.memory_space<vmem>>, vector<1x16x8xf32>
    %79 = vector.shape_cast %78 : vector<1x16x8xf32> to vector<16x8xf32>
    %80 = vector.extract_strided_slice %61 {offsets = [0, 96], sizes = [8, 32], strides = [1, 1]} : vector<8x288xf32> to vector<8x32xf32>
    %cst_54 = arith.constant dense<0.000000e+00> : vector<16x32xf32>
    %81 = tpu.matmul %79, %80, %cst_54 {dimension_numbers = #tpu.dot_dimension_numbers<[1], [0], [0], [1], [0, 0, 1, 1], [], []>} : vector<16x8xf32>, vector<8x32xf32>, vector<16x32xf32> -> vector<16x32xf32>
    %82 = arith.addf %77, %81 : vector<16x32xf32>
    %c4_55 = arith.constant 4 : index
    %c0_56 = arith.constant 0 : index
    %c0_57 = arith.constant 0 : index
    %83 = vector.load %arg5[%c4_55, %c0_56, %c0_57] : memref<9x16x8xf32, #tpu.memory_space<vmem>>, vector<1x16x8xf32>
    %84 = vector.shape_cast %83 : vector<1x16x8xf32> to vector<16x8xf32>
    %85 = vector.extract_strided_slice %61 {offsets = [0, 128], sizes = [8, 32], strides = [1, 1]} : vector<8x288xf32> to vector<8x32xf32>
    %cst_58 = arith.constant dense<0.000000e+00> : vector<16x32xf32>
    %86 = tpu.matmul %84, %85, %cst_58 {dimension_numbers = #tpu.dot_dimension_numbers<[1], [0], [0], [1], [0, 0, 1, 1], [], []>} : vector<16x8xf32>, vector<8x32xf32>, vector<16x32xf32> -> vector<16x32xf32>
    %87 = arith.addf %82, %86 : vector<16x32xf32>
    %c5_59 = arith.constant 5 : index
    %c0_60 = arith.constant 0 : index
    %c0_61 = arith.constant 0 : index
    %88 = vector.load %arg5[%c5_59, %c0_60, %c0_61] : memref<9x16x8xf32, #tpu.memory_space<vmem>>, vector<1x16x8xf32>
    %89 = vector.shape_cast %88 : vector<1x16x8xf32> to vector<16x8xf32>
    %90 = vector.extract_strided_slice %61 {offsets = [0, 160], sizes = [8, 32], strides = [1, 1]} : vector<8x288xf32> to vector<8x32xf32>
    %cst_62 = arith.constant dense<0.000000e+00> : vector<16x32xf32>
    %91 = tpu.matmul %89, %90, %cst_62 {dimension_numbers = #tpu.dot_dimension_numbers<[1], [0], [0], [1], [0, 0, 1, 1], [], []>} : vector<16x8xf32>, vector<8x32xf32>, vector<16x32xf32> -> vector<16x32xf32>
    %92 = arith.addf %87, %91 : vector<16x32xf32>
    %c6_63 = arith.constant 6 : index
    %c0_64 = arith.constant 0 : index
    %c0_65 = arith.constant 0 : index
    %93 = vector.load %arg5[%c6_63, %c0_64, %c0_65] : memref<9x16x8xf32, #tpu.memory_space<vmem>>, vector<1x16x8xf32>
    %94 = vector.shape_cast %93 : vector<1x16x8xf32> to vector<16x8xf32>
    %95 = vector.extract_strided_slice %61 {offsets = [0, 192], sizes = [8, 32], strides = [1, 1]} : vector<8x288xf32> to vector<8x32xf32>
    %cst_66 = arith.constant dense<0.000000e+00> : vector<16x32xf32>
    %96 = tpu.matmul %94, %95, %cst_66 {dimension_numbers = #tpu.dot_dimension_numbers<[1], [0], [0], [1], [0, 0, 1, 1], [], []>} : vector<16x8xf32>, vector<8x32xf32>, vector<16x32xf32> -> vector<16x32xf32>
    %97 = arith.addf %92, %96 : vector<16x32xf32>
    %c7_67 = arith.constant 7 : index
    %c0_68 = arith.constant 0 : index
    %c0_69 = arith.constant 0 : index
    %98 = vector.load %arg5[%c7_67, %c0_68, %c0_69] : memref<9x16x8xf32, #tpu.memory_space<vmem>>, vector<1x16x8xf32>
    %99 = vector.shape_cast %98 : vector<1x16x8xf32> to vector<16x8xf32>
    %100 = vector.extract_strided_slice %61 {offsets = [0, 224], sizes = [8, 32], strides = [1, 1]} : vector<8x288xf32> to vector<8x32xf32>
    %cst_70 = arith.constant dense<0.000000e+00> : vector<16x32xf32>
    %101 = tpu.matmul %99, %100, %cst_70 {dimension_numbers = #tpu.dot_dimension_numbers<[1], [0], [0], [1], [0, 0, 1, 1], [], []>} : vector<16x8xf32>, vector<8x32xf32>, vector<16x32xf32> -> vector<16x32xf32>
    %102 = arith.addf %97, %101 : vector<16x32xf32>
    %c8_71 = arith.constant 8 : index
    %c0_72 = arith.constant 0 : index
    %c0_73 = arith.constant 0 : index
    %103 = vector.load %arg5[%c8_71, %c0_72, %c0_73] : memref<9x16x8xf32, #tpu.memory_space<vmem>>, vector<1x16x8xf32>
    %104 = vector.shape_cast %103 : vector<1x16x8xf32> to vector<16x8xf32>
    %105 = vector.extract_strided_slice %61 {offsets = [0, 256], sizes = [8, 32], strides = [1, 1]} : vector<8x288xf32> to vector<8x32xf32>
    %cst_74 = arith.constant dense<0.000000e+00> : vector<16x32xf32>
    %106 = tpu.matmul %104, %105, %cst_74 {dimension_numbers = #tpu.dot_dimension_numbers<[1], [0], [0], [1], [0, 0, 1, 1], [], []>} : vector<16x8xf32>, vector<8x32xf32>, vector<16x32xf32> -> vector<16x32xf32>
    %107 = arith.addf %102, %106 : vector<16x32xf32>
    %c0_75 = arith.constant 0 : index
    %c0_76 = arith.constant 0 : index
    %108 = vector.load %arg6[%c0_75, %c0_76] : memref<16x1xf32, #tpu.memory_space<vmem>>, vector<16x1xf32>
    %109 = vector.broadcast %108 : vector<16x1xf32> to vector<16x32xf32>
    %110 = arith.addf %107, %109 : vector<16x32xf32>
    %111 = arith.negf %110 : vector<16x32xf32>
    %112 = math.exp %111 : vector<16x32xf32>
    %cst_77 = arith.constant 1.000000e+00 : f32
    %113 = vector.broadcast %cst_77 : f32 to vector<16x32xf32>
    %114 = arith.addf %113, %112 : vector<16x32xf32>
    %115 = arith.divf %113, %114 : vector<16x32xf32>
    %116 = arith.mulf %110, %115 : vector<16x32xf32>
    %117 = arith.truncf %116 : vector<16x32xf32> to vector<16x32xbf16>
    %c0_78 = arith.constant 0 : index
    %c0_79 = arith.constant 0 : index
    %118 = vector.load %arg10[%c0_78, %c0_79] : memref<32x1152xbf16, #tpu.memory_space<vmem>>, vector<32x1152xbf16>
    %cst_80 = arith.constant dense<0.000000e+00> : vector<16x1152xf32>
    %119 = tpu.matmul %117, %118, %cst_80 {dimension_numbers = #tpu.dot_dimension_numbers<[1], [0], [0], [1], [0, 0, 1, 1], [], []>} : vector<16x32xbf16>, vector<32x1152xbf16>, vector<16x1152xf32> -> vector<16x1152xf32>
    %cst_81 = arith.constant 0.000000e+00 : f32
    %120 = vector.broadcast %cst_81 : f32 to vector<16x128xf32>
    %c0_82 = arith.constant 0 : index
    %c0_83 = arith.constant 0 : index
    %c0_84 = arith.constant 0 : index
    %121 = vector.load %arg8[%c0_82, %c0_83, %c0_84] : memref<9x16x16xf32, #tpu.memory_space<vmem>>, vector<1x16x16xf32>
    %122 = vector.shape_cast %121 : vector<1x16x16xf32> to vector<16x16xf32>
    %123 = vector.extract_strided_slice %119 {offsets = [0, 0], sizes = [16, 128], strides = [1, 1]} : vector<16x1152xf32> to vector<16x128xf32>
    %cst_85 = arith.constant dense<0.000000e+00> : vector<16x128xf32>
    %124 = tpu.matmul %122, %123, %cst_85 {dimension_numbers = #tpu.dot_dimension_numbers<[1], [0], [0], [1], [0, 0, 1, 1], [], []>} : vector<16x16xf32>, vector<16x128xf32>, vector<16x128xf32> -> vector<16x128xf32>
    %125 = arith.addf %120, %124 : vector<16x128xf32>
    %c1_86 = arith.constant 1 : index
    %c0_87 = arith.constant 0 : index
    %c0_88 = arith.constant 0 : index
    %126 = vector.load %arg8[%c1_86, %c0_87, %c0_88] : memref<9x16x16xf32, #tpu.memory_space<vmem>>, vector<1x16x16xf32>
    %127 = vector.shape_cast %126 : vector<1x16x16xf32> to vector<16x16xf32>
    %128 = vector.extract_strided_slice %119 {offsets = [0, 128], sizes = [16, 128], strides = [1, 1]} : vector<16x1152xf32> to vector<16x128xf32>
    %cst_89 = arith.constant dense<0.000000e+00> : vector<16x128xf32>
    %129 = tpu.matmul %127, %128, %cst_89 {dimension_numbers = #tpu.dot_dimension_numbers<[1], [0], [0], [1], [0, 0, 1, 1], [], []>} : vector<16x16xf32>, vector<16x128xf32>, vector<16x128xf32> -> vector<16x128xf32>
    %130 = arith.addf %125, %129 : vector<16x128xf32>
    %c2_90 = arith.constant 2 : index
    %c0_91 = arith.constant 0 : index
    %c0_92 = arith.constant 0 : index
    %131 = vector.load %arg8[%c2_90, %c0_91, %c0_92] : memref<9x16x16xf32, #tpu.memory_space<vmem>>, vector<1x16x16xf32>
    %132 = vector.shape_cast %131 : vector<1x16x16xf32> to vector<16x16xf32>
    %133 = vector.extract_strided_slice %119 {offsets = [0, 256], sizes = [16, 128], strides = [1, 1]} : vector<16x1152xf32> to vector<16x128xf32>
    %cst_93 = arith.constant dense<0.000000e+00> : vector<16x128xf32>
    %134 = tpu.matmul %132, %133, %cst_93 {dimension_numbers = #tpu.dot_dimension_numbers<[1], [0], [0], [1], [0, 0, 1, 1], [], []>} : vector<16x16xf32>, vector<16x128xf32>, vector<16x128xf32> -> vector<16x128xf32>
    %135 = arith.addf %130, %134 : vector<16x128xf32>
    %c3_94 = arith.constant 3 : index
    %c0_95 = arith.constant 0 : index
    %c0_96 = arith.constant 0 : index
    %136 = vector.load %arg8[%c3_94, %c0_95, %c0_96] : memref<9x16x16xf32, #tpu.memory_space<vmem>>, vector<1x16x16xf32>
    %137 = vector.shape_cast %136 : vector<1x16x16xf32> to vector<16x16xf32>
    %138 = vector.extract_strided_slice %119 {offsets = [0, 384], sizes = [16, 128], strides = [1, 1]} : vector<16x1152xf32> to vector<16x128xf32>
    %cst_97 = arith.constant dense<0.000000e+00> : vector<16x128xf32>
    %139 = tpu.matmul %137, %138, %cst_97 {dimension_numbers = #tpu.dot_dimension_numbers<[1], [0], [0], [1], [0, 0, 1, 1], [], []>} : vector<16x16xf32>, vector<16x128xf32>, vector<16x128xf32> -> vector<16x128xf32>
    %140 = arith.addf %135, %139 : vector<16x128xf32>
    %c4_98 = arith.constant 4 : index
    %c0_99 = arith.constant 0 : index
    %c0_100 = arith.constant 0 : index
    %141 = vector.load %arg8[%c4_98, %c0_99, %c0_100] : memref<9x16x16xf32, #tpu.memory_space<vmem>>, vector<1x16x16xf32>
    %142 = vector.shape_cast %141 : vector<1x16x16xf32> to vector<16x16xf32>
    %143 = vector.extract_strided_slice %119 {offsets = [0, 512], sizes = [16, 128], strides = [1, 1]} : vector<16x1152xf32> to vector<16x128xf32>
    %cst_101 = arith.constant dense<0.000000e+00> : vector<16x128xf32>
    %144 = tpu.matmul %142, %143, %cst_101 {dimension_numbers = #tpu.dot_dimension_numbers<[1], [0], [0], [1], [0, 0, 1, 1], [], []>} : vector<16x16xf32>, vector<16x128xf32>, vector<16x128xf32> -> vector<16x128xf32>
    %145 = arith.addf %140, %144 : vector<16x128xf32>
    %c5_102 = arith.constant 5 : index
    %c0_103 = arith.constant 0 : index
    %c0_104 = arith.constant 0 : index
    %146 = vector.load %arg8[%c5_102, %c0_103, %c0_104] : memref<9x16x16xf32, #tpu.memory_space<vmem>>, vector<1x16x16xf32>
    %147 = vector.shape_cast %146 : vector<1x16x16xf32> to vector<16x16xf32>
    %148 = vector.extract_strided_slice %119 {offsets = [0, 640], sizes = [16, 128], strides = [1, 1]} : vector<16x1152xf32> to vector<16x128xf32>
    %cst_105 = arith.constant dense<0.000000e+00> : vector<16x128xf32>
    %149 = tpu.matmul %147, %148, %cst_105 {dimension_numbers = #tpu.dot_dimension_numbers<[1], [0], [0], [1], [0, 0, 1, 1], [], []>} : vector<16x16xf32>, vector<16x128xf32>, vector<16x128xf32> -> vector<16x128xf32>
    %150 = arith.addf %145, %149 : vector<16x128xf32>
    %c6_106 = arith.constant 6 : index
    %c0_107 = arith.constant 0 : index
    %c0_108 = arith.constant 0 : index
    %151 = vector.load %arg8[%c6_106, %c0_107, %c0_108] : memref<9x16x16xf32, #tpu.memory_space<vmem>>, vector<1x16x16xf32>
    %152 = vector.shape_cast %151 : vector<1x16x16xf32> to vector<16x16xf32>
    %153 = vector.extract_strided_slice %119 {offsets = [0, 768], sizes = [16, 128], strides = [1, 1]} : vector<16x1152xf32> to vector<16x128xf32>
    %cst_109 = arith.constant dense<0.000000e+00> : vector<16x128xf32>
    %154 = tpu.matmul %152, %153, %cst_109 {dimension_numbers = #tpu.dot_dimension_numbers<[1], [0], [0], [1], [0, 0, 1, 1], [], []>} : vector<16x16xf32>, vector<16x128xf32>, vector<16x128xf32> -> vector<16x128xf32>
    %155 = arith.addf %150, %154 : vector<16x128xf32>
    %c7_110 = arith.constant 7 : index
    %c0_111 = arith.constant 0 : index
    %c0_112 = arith.constant 0 : index
    %156 = vector.load %arg8[%c7_110, %c0_111, %c0_112] : memref<9x16x16xf32, #tpu.memory_space<vmem>>, vector<1x16x16xf32>
    %157 = vector.shape_cast %156 : vector<1x16x16xf32> to vector<16x16xf32>
    %158 = vector.extract_strided_slice %119 {offsets = [0, 896], sizes = [16, 128], strides = [1, 1]} : vector<16x1152xf32> to vector<16x128xf32>
    %cst_113 = arith.constant dense<0.000000e+00> : vector<16x128xf32>
    %159 = tpu.matmul %157, %158, %cst_113 {dimension_numbers = #tpu.dot_dimension_numbers<[1], [0], [0], [1], [0, 0, 1, 1], [], []>} : vector<16x16xf32>, vector<16x128xf32>, vector<16x128xf32> -> vector<16x128xf32>
    %160 = arith.addf %155, %159 : vector<16x128xf32>
    %c8_114 = arith.constant 8 : index
    %c0_115 = arith.constant 0 : index
    %c0_116 = arith.constant 0 : index
    %161 = vector.load %arg8[%c8_114, %c0_115, %c0_116] : memref<9x16x16xf32, #tpu.memory_space<vmem>>, vector<1x16x16xf32>
    %162 = vector.shape_cast %161 : vector<1x16x16xf32> to vector<16x16xf32>
    %163 = vector.extract_strided_slice %119 {offsets = [0, 1024], sizes = [16, 128], strides = [1, 1]} : vector<16x1152xf32> to vector<16x128xf32>
    %cst_117 = arith.constant dense<0.000000e+00> : vector<16x128xf32>
    %164 = tpu.matmul %162, %163, %cst_117 {dimension_numbers = #tpu.dot_dimension_numbers<[1], [0], [0], [1], [0, 0, 1, 1], [], []>} : vector<16x16xf32>, vector<16x128xf32>, vector<16x128xf32> -> vector<16x128xf32>
    %165 = arith.addf %160, %164 : vector<16x128xf32>
    %c0_118 = arith.constant 0 : index
    %c0_119 = arith.constant 0 : index
    %166 = vector.load %arg9[%c0_118, %c0_119] : memref<16x1xf32, #tpu.memory_space<vmem>>, vector<16x1xf32>
    %167 = vector.broadcast %166 : vector<16x1xf32> to vector<16x128xf32>
    %168 = arith.addf %165, %167 : vector<16x128xf32>
    %169 = arith.negf %168 : vector<16x128xf32>
    %170 = math.exp %169 : vector<16x128xf32>
    %cst_120 = arith.constant 1.000000e+00 : f32
    %171 = vector.broadcast %cst_120 : f32 to vector<16x128xf32>
    %172 = arith.addf %171, %170 : vector<16x128xf32>
    %173 = arith.divf %171, %172 : vector<16x128xf32>
    %174 = arith.mulf %168, %173 : vector<16x128xf32>
    %c0_121 = arith.constant 0 : index
    %c0_122 = arith.constant 0 : index
    %175 = vector.load %arg11[%c0_121, %c0_122] : memref<8x16xf32, #tpu.memory_space<vmem>>, vector<8x16xf32>
    %cst_123 = arith.constant dense<0.000000e+00> : vector<8x128xf32>
    %176 = tpu.matmul %175, %174, %cst_123 {dimension_numbers = #tpu.dot_dimension_numbers<[1], [0], [0], [1], [0, 0, 1, 1], [], []>} : vector<8x16xf32>, vector<16x128xf32>, vector<8x128xf32> -> vector<8x128xf32>
    %c0_124 = arith.constant 0 : index
    %c0_125 = arith.constant 0 : index
    %177 = vector.load %arg12[%c0_124, %c0_125] : memref<8x1xf32, #tpu.memory_space<vmem>>, vector<8x1xf32>
    %178 = vector.broadcast %177 : vector<8x1xf32> to vector<8x128xf32>
    %179 = arith.addf %176, %178 : vector<8x128xf32>
    %c0_126 = arith.constant 0 : index
    %c0_127 = arith.constant 0 : index
    %180 = vector.load %arg13[%c0_126, %c0_127] : memref<8x128xf32, #tpu.memory_space<vmem>>, vector<8x128xf32>
    tpu.vector_store %arg13[%c0_126, %c0_127], %179 {strides = array<i32>} : memref<8x128xf32, #tpu.memory_space<vmem>>, vector<8x128xf32>,
    return
  }
  func.func @transform_0(%arg0: i32) -> (i32, i32) {
    %c0_i32 = arith.constant 0 : i32
    %c0_i32_0 = arith.constant 0 : i32
    %c0_i32_1 = arith.constant 0 : i32
    return %c0_i32, %c0_i32_0 : i32, i32
  }
  func.func @transform_1(%arg0: i32) -> (i32, i32, i32) {
    %c0_i32 = arith.constant 0 : i32
    %c0_i32_0 = arith.constant 0 : i32
    %c0_i32_1 = arith.constant 0 : i32
    %c0_i32_2 = arith.constant 0 : i32
    return %c0_i32, %c0_i32_0, %c0_i32_1 : i32, i32, i32
  }
  func.func @transform_2(%arg0: i32) -> (i32, i32) {
    %c0_i32 = arith.constant 0 : i32
    %c0_i32_0 = arith.constant 0 : i32
    %c0_i32_1 = arith.constant 0 : i32
    return %c0_i32, %c0_i32_0 : i32, i32
  }
  func.func @transform_3(%arg0: i32) -> (i32, i32) {
    %c0_i32 = arith.constant 0 : i32
    %c0_i32_0 = arith.constant 0 : i32
    %c0_i32_1 = arith.constant 0 : i32
    return %c0_i32, %c0_i32_0 : i32, i32
  }
  func.func @transform_4(%arg0: i32) -> (i32, i32, i32) {
    %c0_i32 = arith.constant 0 : i32
    %c0_i32_0 = arith.constant 0 : i32
    %c0_i32_1 = arith.constant 0 : i32
    %c0_i32_2 = arith.constant 0 : i32
    return %c0_i32, %c0_i32_0, %c0_i32_1 : i32, i32, i32
  }
  func.func @transform_5(%arg0: i32) -> (i32, i32) {
    %c0_i32 = arith.constant 0 : i32
    %c0_i32_0 = arith.constant 0 : i32
    %c0_i32_1 = arith.constant 0 : i32
    return %c0_i32, %c0_i32_0 : i32, i32
  }
  func.func @transform_6(%arg0: i32) -> (i32, i32) {
    %c0_i32 = arith.constant 0 : i32
    %c0_i32_0 = arith.constant 0 : i32
    %c0_i32_1 = arith.constant 0 : i32
    return %c0_i32, %c0_i32_0 : i32, i32
  }
  func.func @transform_7(%arg0: i32) -> (i32, i32, i32) {
    %c0_i32 = arith.constant 0 : i32
    %c0_i32_0 = arith.constant 0 : i32
    %c0_i32_1 = arith.constant 0 : i32
    %c0_i32_2 = arith.constant 0 : i32
    return %c0_i32, %c0_i32_0, %c0_i32_1 : i32, i32, i32
  }
  func.func @transform_8(%arg0: i32) -> (i32, i32) {
    %c0_i32 = arith.constant 0 : i32
    %c0_i32_0 = arith.constant 0 : i32
    %c0_i32_1 = arith.constant 0 : i32
    return %c0_i32, %c0_i32_0 : i32, i32
  }
  func.func @transform_9(%arg0: i32) -> (i32, i32) {
    %c0_i32 = arith.constant 0 : i32
    %c0_i32_0 = arith.constant 0 : i32
    %c0_i32_1 = arith.constant 0 : i32
    return %c0_i32, %c0_i32_0 : i32, i32
  }
  func.func @transform_10(%arg0: i32) -> (i32, i32) {
    %c0_i32 = arith.constant 0 : i32
    %c0_i32_0 = arith.constant 0 : i32
    %c0_i32_1 = arith.constant 0 : i32
    return %c0_i32, %c0_i32_0 : i32, i32
  }
  func.func @transform_11(%arg0: i32) -> (i32, i32) {
    %c0_i32 = arith.constant 0 : i32
    %c0_i32_0 = arith.constant 0 : i32
    %c0_i32_1 = arith.constant 0 : i32
    return %c0_i32, %c0_i32_0 : i32, i32
  }
  func.func @transform_12(%arg0: i32) -> (i32, i32) {
    %c0_i32 = arith.constant 0 : i32
    %c0_i32_0 = arith.constant 0 : i32
    %c0_i32_1 = arith.constant 0 : i32
    return %c0_i32, %c0_i32_0 : i32, i32
  }
}

</mosaic_0001>

<llo_original>
// kernel: tpu_custom_call.1
$region0: #{tpu_custom_call.1}
  #allocation0 [shape = 'u32[]', space=smem, size = 0x4, offset = 0x4, fixed_abs, tag = 'smem constant byte address 0x4 - core index']
  #allocation1 [shape = 'u32[144,128]{1,0:T(1,128)}', space=vmem, size = 0x12000, scoped, tag = 'internal scratch']
  %s0 = inlined_call_operand.hbm [shape: f32[4,512], index: 0, kind: input, shape index: {}]
  %s1 = inlined_call_operand.vmem [shape: f32[9,8,4], index: 1, kind: input, shape index: {}]
  %s2 = inlined_call_operand.vmem [shape: f32[8,1], index: 2, kind: input, shape index: {}]
  %s3 = inlined_call_operand.hbm [shape: bf16[512,1152], index: 3, kind: input, shape index: {}]
  %s4 = inlined_call_operand.vmem [shape: f32[9,16,8], index: 4, kind: input, shape index: {}]
  %s5 = inlined_call_operand.vmem [shape: f32[16,1], index: 5, kind: input, shape index: {}]
  %s6 = inlined_call_operand.vmem [shape: bf16[128,288], index: 6, kind: input, shape index: {}]
  %s7 = inlined_call_operand.hbm [shape: f32[9,16,16], index: 7, kind: input, shape index: {}]
  %s8 = inlined_call_operand.vmem [shape: f32[16,1], index: 8, kind: input, shape index: {}]
  %s9 = inlined_call_operand.hbm [shape: bf16[32,1152], index: 9, kind: input, shape index: {}]
  %s10 = inlined_call_operand.hbm [shape: f32[8,16], index: 10, kind: input, shape index: {}]
  %s11 = inlined_call_operand.vmem [shape: f32[8,1], index: 11, kind: input, shape index: {}]
  %s12 = inlined_call_operand.hbm [shape: f32[8,128], index: 12, kind: output, shape index: {}]
  %s13 = sld [smem:[#allocation0]]
  $region78: #{tpu_custom_call.1} parent=0
    _
  %s15 = ssub.s32 1, %s13
  %s16 = scalar_select 0, %s15, %s13
  $region1: #{tpu_custom_call.1} parent=0
    #allocation2 [shape = 'u8[8192]{0}', space=vmem, size = 0x2000, scoped, tag = 'input window, operand 0, single buffered']
    #allocation3 [shape = 's32[1]{0}', space=sflag, size = 0x4, scoped, tag = 'scoped memory for tpu_custom_call.1']
    #allocation4 [shape = 's32[1]{0}', space=sflag, size = 0x4, scoped, tag = 'scoped memory for tpu_custom_call.1']
    #allocation5 [shape = 'u8[1179648]{0}', space=vmem, size = 0x120000, scoped, tag = 'input window, operand 3, single buffered']
    #allocation6 [shape = 's32[1]{0}', space=sflag, size = 0x4, scoped, tag = 'scoped memory for tpu_custom_call.1']
    #allocation7 [shape = 'u8[73728]{0}', space=vmem, size = 0x12000, scoped, tag = 'input window, operand 7, single buffered']
    #allocation8 [shape = 'u8[73728]{0}', space=vmem, size = 0x12000, scoped, tag = 'input window, operand 9, single buffered']
    #allocation9 [shape = 's32[1]{0}', space=sflag, size = 0x4, scoped, tag = 'scoped memory for tpu_custom_call.1']
    #allocation10 [shape = 'u8[4096]{0}', space=vmem, size = 0x1000, scoped, tag = 'input window, operand 10, single buffered']
    #allocation11 [shape = 'u8[4096]{0}', space=vmem, size = 0x1000, scoped, tag = 'output window, operand 0, single buffered']
    %17 = vsyncpa [#allocation3], 0
    %18 = vsyncpa [#allocation6], 0
    %19 = vsyncpa [#allocation9], 0
    %20 = vsyncpa [#allocation4], 0
    // Predicated region
    $region2: #{tpu_custom_call.1} parent=1 // pred_check
      _
    $region3: #{tpu_custom_call.1} parent=1 // pred_check_branch
      %22 = sbr.rel (0) target = $region5
    $region4: #{tpu_custom_call.1} parent=1 // pred_region
      %s24 = ssub.s32 256, 256
      %25 = vsyncadd [#allocation3], %s24
      %s27 = sshll.u32 [#allocation2], 4
      %s28 = int_to_ptr.vmem [resolvable:$true] %s27
      %30 = dma.hbm_to_vmem [thread:$0]  %s0, 256, %s28, [#allocation3]
    $region5: #{tpu_custom_call.1} parent=1 // pred_fallthru
      _
    // Predicated region
    $region6: #{tpu_custom_call.1} parent=1 // pred_check
      _
    $region7: #{tpu_custom_call.1} parent=1 // pred_check_branch
      %32 = sbr.rel (0) target = $region9
    $region8: #{tpu_custom_call.1} parent=1 // pred_region
      _
    $region9: #{tpu_custom_call.1} parent=1 // pred_fallthru
      _
    // Predicated region
    $region10: #{tpu_custom_call.1} parent=1 // pred_check
      _
    $region11: #{tpu_custom_call.1} parent=1 // pred_check_branch
      %34 = sbr.rel (0) target = $region13
    $region12: #{tpu_custom_call.1} parent=1 // pred_region
      _
    $region13: #{tpu_custom_call.1} parent=1 // pred_fallthru
      _
    // Predicated region
    $region14: #{tpu_custom_call.1} parent=1 // pred_check
      _
    $region15: #{tpu_custom_call.1} parent=1 // pred_check_branch
      %36 = sbr.rel (0) target = $region17
    $region16: #{tpu_custom_call.1} parent=1 // pred_region
      %s38 = ssub.s32 36864, 36864
      %39 = vsyncadd [#allocation6], %s38
      %s40 = sshll.u32 [#allocation5], 4
      %s41 = int_to_ptr.vmem [resolvable:$true] %s40
      %46 = dma.hbm_to_vmem [thread:$0]  %s3, 36864, %s41, [#allocation6], 576, 576, 36
    $region17: #{tpu_custom_call.1} parent=1 // pred_fallthru
      _
    // Predicated region
    $region18: #{tpu_custom_call.1} parent=1 // pred_check
      _
    $region19: #{tpu_custom_call.1} parent=1 // pred_check_branch
      %48 = sbr.rel (0) target = $region21
    $region20: #{tpu_custom_call.1} parent=1 // pred_region
      _
    $region21: #{tpu_custom_call.1} parent=1 // pred_fallthru
      _
    // Predicated region
    $region22: #{tpu_custom_call.1} parent=1 // pred_check
      _
    $region23: #{tpu_custom_call.1} parent=1 // pred_check_branch
      %50 = sbr.rel (0) target = $region25
    $region24: #{tpu_custom_call.1} parent=1 // pred_region
      _
    $region25: #{tpu_custom_call.1} parent=1 // pred_fallthru
      _
    // Predicated region
    $region26: #{tpu_custom_call.1} parent=1 // pred_check
      _
    $region27: #{tpu_custom_call.1} parent=1 // pred_check_branch
      %52 = sbr.rel (0) target = $region29
    $region28: #{tpu_custom_call.1} parent=1 // pred_region
      _
    $region29: #{tpu_custom_call.1} parent=1 // pred_fallthru
      _
    // Predicated region
    $region30: #{tpu_custom_call.1} parent=1 // pred_check
      _
    $region31: #{tpu_custom_call.1} parent=1 // pred_check_branch
      %54 = sbr.rel (0) target = $region33
    $region32: #{tpu_custom_call.1} parent=1 // pred_region
      %s56 = ssub.s32 2304, 2304
      %57 = vsyncadd [#allocation6], %s56
      %s58 = sshll.u32 [#allocation7], 4
      %s59 = int_to_ptr.vmem [resolvable:$true] %s58
      %64 = dma.hbm_to_vmem [thread:$0]  %s7, 2304, %s59, [#allocation6], 128, 128, 8
    $region33: #{tpu_custom_call.1} parent=1 // pred_fallthru
      _
    // Predicated region
    $region34: #{tpu_custom_call.1} parent=1 // pred_check
      _
    $region35: #{tpu_custom_call.1} parent=1 // pred_check_branch
      %66 = sbr.rel (0) target = $region37
    $region36: #{tpu_custom_call.1} parent=1 // pred_region
      _
    $region37: #{tpu_custom_call.1} parent=1 // pred_fallthru
      _
    // Predicated region
    $region38: #{tpu_custom_call.1} parent=1 // pred_check
      _
    $region39: #{tpu_custom_call.1} parent=1 // pred_check_branch
      %68 = sbr.rel (0) target = $region41
    $region40: #{tpu_custom_call.1} parent=1 // pred_region
      %s70 = ssub.s32 2304, 2304
      %71 = vsyncadd [#allocation9], %s70
      %s72 = sshll.u32 [#allocation8], 4
      %s73 = int_to_ptr.vmem [resolvable:$true] %s72
      %78 = dma.hbm_to_vmem [thread:$0]  %s9, 2304, %s73, [#allocation9], 576, 576, 36
    $region41: #{tpu_custom_call.1} parent=1 // pred_fallthru
      _
    // Predicated region
    $region42: #{tpu_custom_call.1} parent=1 // pred_check
      _
    $region43: #{tpu_custom_call.1} parent=1 // pred_check_branch
      %80 = sbr.rel (0) target = $region45
    $region44: #{tpu_custom_call.1} parent=1 // pred_region
      %s82 = ssub.s32 128, 128
      %83 = vsyncadd [#allocation9], %s82
      %s85 = sshll.u32 [#allocation10], 4
      %s86 = int_to_ptr.vmem [resolvable:$true] %s85
      %88 = dma.hbm_to_vmem [thread:$0]  %s10, 128, %s86, [#allocation9]
    $region45: #{tpu_custom_call.1} parent=1 // pred_fallthru
      _
    // Predicated region
    $region46: #{tpu_custom_call.1} parent=1 // pred_check
      _
    $region47: #{tpu_custom_call.1} parent=1 // pred_check_branch
      %90 = sbr.rel (0) target = $region49
    $region48: #{tpu_custom_call.1} parent=1 // pred_region
      _
    $region49: #{tpu_custom_call.1} parent=1 // pred_fallthru
      _
    // Predicated region
    $region50: #{tpu_custom_call.1} parent=1 // pred_check
      _
    $region51: #{tpu_custom_call.1} parent=1 // pred_check_branch
      %92 = sbr.rel (0) target = $region53
    $region52: #{tpu_custom_call.1} parent=1 // pred_region
      %93 = dma.done [#allocation3], 256
    $region53: #{tpu_custom_call.1} parent=1 // pred_fallthru
      _
    // Predicated region
    $region54: #{tpu_custom_call.1} parent=1 // pred_check
      _
    $region55: #{tpu_custom_call.1} parent=1 // pred_check_branch
      %95 = sbr.rel (0) target = $region57
    $region56: #{tpu_custom_call.1} parent=1 // pred_region
      %96 = dma.done [#allocation6], 36864
    $region57: #{tpu_custom_call.1} parent=1 // pred_fallthru
      _
    // Predicated region
    $region58: #{tpu_custom_call.1} parent=1 // pred_check
      _
    $region59: #{tpu_custom_call.1} parent=1 // pred_check_branch
      %98 = sbr.rel (0) target = $region61
    $region60: #{tpu_custom_call.1} parent=1 // pred_region
      %99 = dma.done [#allocation6], 2304
    $region61: #{tpu_custom_call.1} parent=1 // pred_fallthru
      _
    // Predicated region
    $region62: #{tpu_custom_call.1} parent=1 // pred_check
      _
    $region63: #{tpu_custom_call.1} parent=1 // pred_check_branch
      %101 = sbr.rel (0) target = $region65
    $region64: #{tpu_custom_call.1} parent=1 // pred_region
      %102 = dma.done [#allocation9], 2304
    $region65: #{tpu_custom_call.1} parent=1 // pred_fallthru
      _
    // Predicated region
    $region66: #{tpu_custom_call.1} parent=1 // pred_check
      _
    $region67: #{tpu_custom_call.1} parent=1 // pred_check_branch
      %104 = sbr.rel (0) target = $region69
    $region68: #{tpu_custom_call.1} parent=1 // pred_region
      %105 = dma.done [#allocation9], 128
    $region69: #{tpu_custom_call.1} parent=1 // pred_fallthru
      _
    %v107 = vld [vmem:[#allocation2] sm:$0xff]
    %v108 = vld [vmem:[#allocation2 + $0x8] sm:$0xff]
    %v111 = vcombine.high %v107, %v107
    %v112 = vcombine.high %v108, %v108
    %v115 = vpack.c.bf16 %v107, %v107
    %v116 = vpack.c.bf16 %v111, %v111
    %v117 = vpack.c.bf16 %v108, %v108
    %v118 = vpack.c.bf16 %v112, %v112
    %v119 = vld [vmem:[#allocation5] sm:$0xff]
    %v120 = vld [vmem:[#allocation5 + $0x8] sm:$0xff]
    %v121 = vld [vmem:[#allocation5 + $0x10] sm:$0xff]
    %v122 = vld [vmem:[#allocation5 + $0x18] sm:$0xff]
    %v123 = vld [vmem:[#allocation5 + $0x20] sm:$0xf]
    %v124 = vld [vmem:[#allocation5 + $0x24] sm:$0xff]
    %v125 = vld [vmem:[#allocation5 + $0x2c] sm:$0xff]
    %v126 = vld [vmem:[#allocation5 + $0x34] sm:$0xff]
    %v127 = vld [vmem:[#allocation5 + $0x3c] sm:$0xff]
    %v128 = vld [vmem:[#allocation5 + $0x44] sm:$0xf]
    %v129 = vld [vmem:[#allocation5 + $0x48] sm:$0xff]
    %v130 = vld [vmem:[#allocation5 + $0x50] sm:$0xff]
    %v131 = vld [vmem:[#allocation5 + $0x58] sm:$0xff]
    %v132 = vld [vmem:[#allocation5 + $0x60] sm:$0xff]
    %v133 = vld [vmem:[#allocation5 + $0x68] sm:$0xf]
    %v134 = vld [vmem:[#allocation5 + $0x6c] sm:$0xff]
    %v135 = vld [vmem:[#allocation5 + $0x74] sm:$0xff]
    %v136 = vld [vmem:[#allocation5 + $0x7c] sm:$0xff]
    %v137 = vld [vmem:[#allocation5 + $0x84] sm:$0xff]
    %v138 = vld [vmem:[#allocation5 + $0x8c] sm:$0xf]
    %v139 = vld [vmem:[#allocation5 + $0x90] sm:$0xff]
    %v140 = vld [vmem:[#allocation5 + $0x98] sm:$0xff]
    %v141 = vld [vmem:[#allocation5 + $0xa0] sm:$0xff]
    %v142 = vld [vmem:[#allocation5 + $0xa8] sm:$0xff]
    %v143 = vld [vmem:[#allocation5 + $0xb0] sm:$0xf]
    %v144 = vld [vmem:[#allocation5 + $0xb4] sm:$0xff]
    %v145 = vld [vmem:[#allocation5 + $0xbc] sm:$0xff]
    %v146 = vld [vmem:[#allocation5 + $0xc4] sm:$0xff]
    %v147 = vld [vmem:[#allocation5 + $0xcc] sm:$0xff]
    %v148 = vld [vmem:[#allocation5 + $0xd4] sm:$0xf]
    %v149 = vld [vmem:[#allocation5 + $0xd8] sm:$0xff]
    %v150 = vld [vmem:[#allocation5 + $0xe0] sm:$0xff]
    %v151 = vld [vmem:[#allocation5 + $0xe8] sm:$0xff]
    %v152 = vld [vmem:[#allocation5 + $0xf0] sm:$0xff]
    %v153 = vld [vmem:[#allocation5 + $0xf8] sm:$0xf]
    %v154 = vld [vmem:[#allocation5 + $0xfc] sm:$0xff]
    %v155 = vld [vmem:[#allocation5 + $0x104] sm:$0xff]
    %v156 = vld [vmem:[#allocation5 + $0x10c] sm:$0xff]
    %v157 = vld [vmem:[#allocation5 + $0x114] sm:$0xff]
    %v158 = vld [vmem:[#allocation5 + $0x11c] sm:$0xf]
    %v159 = vld [vmem:[#allocation5 + $0x120] sm:$0xff]
    %v160 = vld [vmem:[#allocation5 + $0x128] sm:$0xff]
    %v161 = vld [vmem:[#allocation5 + $0x130] sm:$0xff]
    %v162 = vld [vmem:[#allocation5 + $0x138] sm:$0xff]
    %v163 = vld [vmem:[#allocation5 + $0x140] sm:$0xf]
    %v164 = vld [vmem:[#allocation5 + $0x144] sm:$0xff]
    %v165 = vld [vmem:[#allocation5 + $0x14c] sm:$0xff]
    %v166 = vld [vmem:[#allocation5 + $0x154] sm:$0xff]
    %v167 = vld [vmem:[#allocation5 + $0x15c] sm:$0xff]
    %v168 = vld [vmem:[#allocation5 + $0x164] sm:$0xf]
    %v169 = vld [vmem:[#allocation5 + $0x168] sm:$0xff]
    %v170 = vld [vmem:[#allocation5 + $0x170] sm:$0xff]
    %v171 = vld [vmem:[#allocation5 + $0x178] sm:$0xff]
    %v172 = vld [vmem:[#allocation5 + $0x180] sm:$0xff]
    %v173 = vld [vmem:[#allocation5 + $0x188] sm:$0xf]
    %v174 = vld [vmem:[#allocation5 + $0x18c] sm:$0xff]
    %v175 = vld [vmem:[#allocation5 + $0x194] sm:$0xff]
    %v176 = vld [vmem:[#allocation5 + $0x19c] sm:$0xff]
    %v177 = vld [vmem:[#allocation5 + $0x1a4] sm:$0xff]
    %v178 = vld [vmem:[#allocation5 + $0x1ac] sm:$0xf]
    %v179 = vld [vmem:[#allocation5 + $0x1b0] sm:$0xff]
    %v180 = vld [vmem:[#allocation5 + $0x1b8] sm:$0xff]
    %v181 = vld [vmem:[#allocation5 + $0x1c0] sm:$0xff]
    %v182 = vld [vmem:[#allocation5 + $0x1c8] sm:$0xff]
    %v183 = vld [vmem:[#allocation5 + $0x1d0] sm:$0xf]
    %v184 = vld [vmem:[#allocation5 + $0x1d4] sm:$0xff]
    %v185 = vld [vmem:[#allocation5 + $0x1dc] sm:$0xff]
    %v186 = vld [vmem:[#allocation5 + $0x1e4] sm:$0xff]
    %v187 = vld [vmem:[#allocation5 + $0x1ec] sm:$0xff]
    %v188 = vld [vmem:[#allocation5 + $0x1f4] sm:$0xf]
    %v189 = vld [vmem:[#allocation5 + $0x1f8] sm:$0xff]
    %v190 = vld [vmem:[#allocation5 + $0x200] sm:$0xff]
    %v191 = vld [vmem:[#allocation5 + $0x208] sm:$0xff]
    %v192 = vld [vmem:[#allocation5 + $0x210] sm:$0xff]
    %v193 = vld [vmem:[#allocation5 + $0x218] sm:$0xf]
    %v194 = vld [vmem:[#allocation5 + $0x21c] sm:$0xff]
    %v195 = vld [vmem:[#allocation5 + $0x224] sm:$0xff]
    %v196 = vld [vmem:[#allocation5 + $0x22c] sm:$0xff]
    %v197 = vld [vmem:[#allocation5 + $0x234] sm:$0xff]
    %v198 = vld [vmem:[#allocation5 + $0x23c] sm:$0xf]
    %v199 = vld [vmem:[#allocation5 + $0x240] sm:$0xff]
    %v200 = vld [vmem:[#allocation5 + $0x248] sm:$0xff]
    %v201 = vld [vmem:[#allocation5 + $0x250] sm:$0xff]
    %v202 = vld [vmem:[#allocation5 + $0x258] sm:$0xff]
    %v203 = vld [vmem:[#allocation5 + $0x260] sm:$0xf]
    %v204 = vld [vmem:[#allocation5 + $0x264] sm:$0xff]
    %v205 = vld [vmem:[#allocation5 + $0x26c] sm:$0xff]
    %v206 = vld [vmem:[#allocation5 + $0x274] sm:$0xff]
    %v207 = vld [vmem:[#allocation5 + $0x27c] sm:$0xff]
    %v208 = vld [vmem:[#allocation5 + $0x284] sm:$0xf]
    %v209 = vld [vmem:[#allocation5 + $0x288] sm:$0xff]
    %v210 = vld [vmem:[#allocation5 + $0x290] sm:$0xff]
    %v211 = vld [vmem:[#allocation5 + $0x298] sm:$0xff]
    %v212 = vld [vmem:[#allocation5 + $0x2a0] sm:$0xff]
    %v213 = vld [vmem:[#allocation5 + $0x2a8] sm:$0xf]
    %v214 = vld [vmem:[#allocation5 + $0x2ac] sm:$0xff]
    %v215 = vld [vmem:[#allocation5 + $0x2b4] sm:$0xff]
    %v216 = vld [vmem:[#allocation5 + $0x2bc] sm:$0xff]
    %v217 = vld [vmem:[#allocation5 + $0x2c4] sm:$0xff]
    %v218 = vld [vmem:[#allocation5 + $0x2cc] sm:$0xf]
    %v219 = vld [vmem:[#allocation5 + $0x2d0] sm:$0xff]
    %v220 = vld [vmem:[#allocation5 + $0x2d8] sm:$0xff]
    %v221 = vld [vmem:[#allocation5 + $0x2e0] sm:$0xff]
    %v222 = vld [vmem:[#allocation5 + $0x2e8] sm:$0xff]
    %v223 = vld [vmem:[#allocation5 + $0x2f0] sm:$0xf]
    %v224 = vld [vmem:[#allocation5 + $0x2f4] sm:$0xff]
    %v225 = vld [vmem:[#allocation5 + $0x2fc] sm:$0xff]
    %v226 = vld [vmem:[#allocation5 + $0x304] sm:$0xff]
    %v227 = vld [vmem:[#allocation5 + $0x30c] sm:$0xff]
    %v228 = vld [vmem:[#allocation5 + $0x314] sm:$0xf]
    %v229 = vld [vmem:[#allocation5 + $0x318] sm:$0xff]
    %v230 = vld [vmem:[#allocation5 + $0x320] sm:$0xff]
    %v231 = vld [vmem:[#allocation5 + $0x328] sm:$0xff]
    %v232 = vld [vmem:[#allocation5 + $0x330] sm:$0xff]
    %v233 = vld [vmem:[#allocation5 + $0x338] sm:$0xf]
    %v234 = vld [vmem:[#allocation5 + $0x33c] sm:$0xff]
    %v235 = vld [vmem:[#allocation5 + $0x344] sm:$0xff]
    %v236 = vld [vmem:[#allocation5 + $0x34c] sm:$0xff]
    %v237 = vld [vmem:[#allocation5 + $0x354] sm:$0xff]
    %v238 = vld [vmem:[#allocation5 + $0x35c] sm:$0xf]
    %v239 = vld [vmem:[#allocation5 + $0x360] sm:$0xff]
    %v240 = vld [vmem:[#allocation5 + $0x368] sm:$0xff]
    %v241 = vld [vmem:[#allocation5 + $0x370] sm:$0xff]
    %v242 = vld [vmem:[#allocation5 + $0x378] sm:$0xff]
    %v243 = vld [vmem:[#allocation5 + $0x380] sm:$0xf]
    %v244 = vld [vmem:[#allocation5 + $0x384] sm:$0xff]
    %v245 = vld [vmem:[#allocation5 + $0x38c] sm:$0xff]
    %v246 = vld [vmem:[#allocation5 + $0x394] sm:$0xff]
    %v247 = vld [vmem:[#allocation5 + $0x39c] sm:$0xff]
    %v248 = vld [vmem:[#allocation5 + $0x3a4] sm:$0xf]
    %v249 = vld [vmem:[#allocation5 + $0x3a8] sm:$0xff]
    %v250 = vld [vmem:[#allocation5 + $0x3b0] sm:$0xff]
    %v251 = vld [vmem:[#allocation5 + $0x3b8] sm:$0xff]
    %v252 = vld [vmem:[#allocation5 + $0x3c0] sm:$0xff]
    %v253 = vld [vmem:[#allocation5 + $0x3c8] sm:$0xf]
    %v254 = vld [vmem:[#allocation5 + $0x3cc] sm:$0xff]
    %v255 = vld [vmem:[#allocation5 + $0x3d4] sm:$0xff]
    %v256 = vld [vmem:[#allocation5 + $0x3dc] sm:$0xff]
    %v257 = vld [vmem:[#allocation5 + $0x3e4] sm:$0xff]
    %v258 = vld [vmem:[#allocation5 + $0x3ec] sm:$0xf]
    %v259 = vld [vmem:[#allocation5 + $0x3f0] sm:$0xff]
    %v260 = vld [vmem:[#allocation5 + $0x3f8] sm:$0xff]
    %v261 = vld [vmem:[#allocation5 + $0x400] sm:$0xff]
    %v262 = vld [vmem:[#allocation5 + $0x408] sm:$0xff]
    %v263 = vld [vmem:[#allocation5 + $0x410] sm:$0xf]
    %v264 = vld [vmem:[#allocation5 + $0x414] sm:$0xff]
    %v265 = vld [vmem:[#allocation5 + $0x41c] sm:$0xff]
    %v266 = vld [vmem:[#allocation5 + $0x424] sm:$0xff]
    %v267 = vld [vmem:[#allocation5 + $0x42c] sm:$0xff]
    %v268 = vld [vmem:[#allocation5 + $0x434] sm:$0xf]
    %v269 = vld [vmem:[#allocation5 + $0x438] sm:$0xff]
    %v270 = vld [vmem:[#allocation5 + $0x440] sm:$0xff]
    %v271 = vld [vmem:[#allocation5 + $0x448] sm:$0xff]
    %v272 = vld [vmem:[#allocation5 + $0x450] sm:$0xff]
    %v273 = vld [vmem:[#allocation5 + $0x458] sm:$0xf]
    %v274 = vld [vmem:[#allocation5 + $0x45c] sm:$0xff]
    %v275 = vld [vmem:[#allocation5 + $0x464] sm:$0xff]
    %v276 = vld [vmem:[#allocation5 + $0x46c] sm:$0xff]
    %v277 = vld [vmem:[#allocation5 + $0x474] sm:$0xff]
    %v278 = vld [vmem:[#allocation5 + $0x47c] sm:$0xf]
    %v279 = vld [vmem:[#allocation5 + $0x480] sm:$0xff]
    %v280 = vld [vmem:[#allocation5 + $0x488] sm:$0xff]
    %v281 = vld [vmem:[#allocation5 + $0x490] sm:$0xff]
    %v282 = vld [vmem:[#allocation5 + $0x498] sm:$0xff]
    %v283 = vld [vmem:[#allocation5 + $0x4a0] sm:$0xf]
    %v284 = vld [vmem:[#allocation5 + $0x4a4] sm:$0xff]
    %v285 = vld [vmem:[#allocation5 + $0x4ac] sm:$0xff]
    %v286 = vld [vmem:[#allocation5 + $0x4b4] sm:$0xff]
    %v287 = vld [vmem:[#allocation5 + $0x4bc] sm:$0xff]
    %v288 = vld [vmem:[#allocation5 + $0x4c4] sm:$0xf]
    %v289 = vld [vmem:[#allocation5 + $0x4c8] sm:$0xff]
    %v290 = vld [vmem:[#allocation5 + $0x4d0] sm:$0xff]
    %v291 = vld [vmem:[#allocation5 + $0x4d8] sm:$0xff]
    %v292 = vld [vmem:[#allocation5 + $0x4e0] sm:$0xff]
    %v293 = vld [vmem:[#allocation5 + $0x4e8] sm:$0xf]
    %v294 = vld [vmem:[#allocation5 + $0x4ec] sm:$0xff]
    %v295 = vld [vmem:[#allocation5 + $0x4f4] sm:$0xff]
    %v296 = vld [vmem:[#allocation5 + $0x4fc] sm:$0xff]
    %v297 = vld [vmem:[#allocation5 + $0x504] sm:$0xff]
    %v298 = vld [vmem:[#allocation5 + $0x50c] sm:$0xf]
    %v299 = vld [vmem:[#allocation5 + $0x510] sm:$0xff]
    %v300 = vld [vmem:[#allocation5 + $0x518] sm:$0xff]
    %v301 = vld [vmem:[#allocation5 + $0x520] sm:$0xff]
    %v302 = vld [vmem:[#allocation5 + $0x528] sm:$0xff]
    %v303 = vld [vmem:[#allocation5 + $0x530] sm:$0xf]
    %v304 = vld [vmem:[#allocation5 + $0x534] sm:$0xff]
    %v305 = vld [vmem:[#allocation5 + $0x53c] sm:$0xff]
    %v306 = vld [vmem:[#allocation5 + $0x544] sm:$0xff]
    %v307 = vld [vmem:[#allocation5 + $0x54c] sm:$0xff]
    %v308 = vld [vmem:[#allocation5 + $0x554] sm:$0xf]
    %v309 = vld [vmem:[#allocation5 + $0x558] sm:$0xff]
    %v310 = vld [vmem:[#allocation5 + $0x560] sm:$0xff]
    %v311 = vld [vmem:[#allocation5 + $0x568] sm:$0xff]
    %v312 = vld [vmem:[#allocation5 + $0x570] sm:$0xff]
    %v313 = vld [vmem:[#allocation5 + $0x578] sm:$0xf]
    %v314 = vld [vmem:[#allocation5 + $0x57c] sm:$0xff]
    %v315 = vld [vmem:[#allocation5 + $0x584] sm:$0xff]
    %v316 = vld [vmem:[#allocation5 + $0x58c] sm:$0xff]
    %v317 = vld [vmem:[#allocation5 + $0x594] sm:$0xff]
    %v318 = vld [vmem:[#allocation5 + $0x59c] sm:$0xf]
    %v319 = vld [vmem:[#allocation5 + $0x5a0] sm:$0xff]
    %v320 = vld [vmem:[#allocation5 + $0x5a8] sm:$0xff]
    %v321 = vld [vmem:[#allocation5 + $0x5b0] sm:$0xff]
    %v322 = vld [vmem:[#allocation5 + $0x5b8] sm:$0xff]
    %v323 = vld [vmem:[#allocation5 + $0x5c0] sm:$0xf]
    %v324 = vld [vmem:[#allocation5 + $0x5c4] sm:$0xff]
    %v325 = vld [vmem:[#allocation5 + $0x5cc] sm:$0xff]
    %v326 = vld [vmem:[#allocation5 + $0x5d4] sm:$0xff]
    %v327 = vld [vmem:[#allocation5 + $0x5dc] sm:$0xff]
    %v328 = vld [vmem:[#allocation5 + $0x5e4] sm:$0xf]
    %v329 = vld [vmem:[#allocation5 + $0x5e8] sm:$0xff]
    %v330 = vld [vmem:[#allocation5 + $0x5f0] sm:$0xff]
    %v331 = vld [vmem:[#allocation5 + $0x5f8] sm:$0xff]
    %v332 = vld [vmem:[#allocation5 + $0x600] sm:$0xff]
    %v333 = vld [vmem:[#allocation5 + $0x608] sm:$0xf]
    %v334 = vld [vmem:[#allocation5 + $0x60c] sm:$0xff]
    %v335 = vld [vmem:[#allocation5 + $0x614] sm:$0xff]
    %v336 = vld [vmem:[#allocation5 + $0x61c] sm:$0xff]
    %v337 = vld [vmem:[#allocation5 + $0x624] sm:$0xff]
    %v338 = vld [vmem:[#allocation5 + $0x62c] sm:$0xf]
    %v339 = vld [vmem:[#allocation5 + $0x630] sm:$0xff]
    %v340 = vld [vmem:[#allocation5 + $0x638] sm:$0xff]
    %v341 = vld [vmem:[#allocation5 + $0x640] sm:$0xff]
    %v342 = vld [vmem:[#allocation5 + $0x648] sm:$0xff]
    %v343 = vld [vmem:[#allocation5 + $0x650] sm:$0xf]
    %v344 = vld [vmem:[#allocation5 + $0x654] sm:$0xff]
    %v345 = vld [vmem:[#allocation5 + $0x65c] sm:$0xff]
    %v346 = vld [vmem:[#allocation5 + $0x664] sm:$0xff]
    %v347 = vld [vmem:[#allocation5 + $0x66c] sm:$0xff]
    %v348 = vld [vmem:[#allocation5 + $0x674] sm:$0xf]
    %v349 = vld [vmem:[#allocation5 + $0x678] sm:$0xff]
    %v350 = vld [vmem:[#allocation5 + $0x680] sm:$0xff]
    %v351 = vld [vmem:[#allocation5 + $0x688] sm:$0xff]
    %v352 = vld [vmem:[#allocation5 + $0x690] sm:$0xff]
    %v353 = vld [vmem:[#allocation5 + $0x698] sm:$0xf]
    %v354 = vld [vmem:[#allocation5 + $0x69c] sm:$0xff]
    %v355 = vld [vmem:[#allocation5 + $0x6a4] sm:$0xff]
    %v356 = vld [vmem:[#allocation5 + $0x6ac] sm:$0xff]
    %v357 = vld [vmem:[#allocation5 + $0x6b4] sm:$0xff]
    %v358 = vld [vmem:[#allocation5 + $0x6bc] sm:$0xf]
    %v359 = vld [vmem:[#allocation5 + $0x6c0] sm:$0xff]
    %v360 = vld [vmem:[#allocation5 + $0x6c8] sm:$0xff]
    %v361 = vld [vmem:[#allocation5 + $0x6d0] sm:$0xff]
    %v362 = vld [vmem:[#allocation5 + $0x6d8] sm:$0xff]
    %v363 = vld [vmem:[#allocation5 + $0x6e0] sm:$0xf]
    %v364 = vld [vmem:[#allocation5 + $0x6e4] sm:$0xff]
    %v365 = vld [vmem:[#allocation5 + $0x6ec] sm:$0xff]
    %v366 = vld [vmem:[#allocation5 + $0x6f4] sm:$0xff]
    %v367 = vld [vmem:[#allocation5 + $0x6fc] sm:$0xff]
    %v368 = vld [vmem:[#allocation5 + $0x704] sm:$0xf]
    %v369 = vld [vmem:[#allocation5 + $0x708] sm:$0xff]
    %v370 = vld [vmem:[#allocation5 + $0x710] sm:$0xff]
    %v371 = vld [vmem:[#allocation5 + $0x718] sm:$0xff]
    %v372 = vld [vmem:[#allocation5 + $0x720] sm:$0xff]
    %v373 = vld [vmem:[#allocation5 + $0x728] sm:$0xf]
    %v374 = vld [vmem:[#allocation5 + $0x72c] sm:$0xff]
    %v375 = vld [vmem:[#allocation5 + $0x734] sm:$0xff]
    %v376 = vld [vmem:[#allocation5 + $0x73c] sm:$0xff]
    %v377 = vld [vmem:[#allocation5 + $0x744] sm:$0xff]
    %v378 = vld [vmem:[#allocation5 + $0x74c] sm:$0xf]
    %v379 = vld [vmem:[#allocation5 + $0x750] sm:$0xff]
    %v380 = vld [vmem:[#allocation5 + $0x758] sm:$0xff]
    %v381 = vld [vmem:[#allocation5 + $0x760] sm:$0xff]
    %v382 = vld [vmem:[#allocation5 + $0x768] sm:$0xff]
    %v383 = vld [vmem:[#allocation5 + $0x770] sm:$0xf]
    %v384 = vld [vmem:[#allocation5 + $0x774] sm:$0xff]
    %v385 = vld [vmem:[#allocation5 + $0x77c] sm:$0xff]
    %v386 = vld [vmem:[#allocation5 + $0x784] sm:$0xff]
    %v387 = vld [vmem:[#allocation5 + $0x78c] sm:$0xff]
    %v388 = vld [vmem:[#allocation5 + $0x794] sm:$0xf]
    %v389 = vld [vmem:[#allocation5 + $0x798] sm:$0xff]
    %v390 = vld [vmem:[#allocation5 + $0x7a0] sm:$0xff]
    %v391 = vld [vmem:[#allocation5 + $0x7a8] sm:$0xff]
    %v392 = vld [vmem:[#allocation5 + $0x7b0] sm:$0xff]
    %v393 = vld [vmem:[#allocation5 + $0x7b8] sm:$0xf]
    %v394 = vld [vmem:[#allocation5 + $0x7bc] sm:$0xff]
    %v395 = vld [vmem:[#allocation5 + $0x7c4] sm:$0xff]
    %v396 = vld [vmem:[#allocation5 + $0x7cc] sm:$0xff]
    %v397 = vld [vmem:[#allocation5 + $0x7d4] sm:$0xff]
    %v398 = vld [vmem:[#allocation5 + $0x7dc] sm:$0xf]
    %v399 = vld [vmem:[#allocation5 + $0x7e0] sm:$0xff]
    %v400 = vld [vmem:[#allocation5 + $0x7e8] sm:$0xff]
    %v401 = vld [vmem:[#allocation5 + $0x7f0] sm:$0xff]
    %v402 = vld [vmem:[#allocation5 + $0x7f8] sm:$0xff]
    %v403 = vld [vmem:[#allocation5 + $0x800] sm:$0xf]
    %v404 = vld [vmem:[#allocation5 + $0x804] sm:$0xff]
    %v405 = vld [vmem:[#allocation5 + $0x80c] sm:$0xff]
    %v406 = vld [vmem:[#allocation5 + $0x814] sm:$0xff]
    %v407 = vld [vmem:[#allocation5 + $0x81c] sm:$0xff]
    %v408 = vld [vmem:[#allocation5 + $0x824] sm:$0xf]
    %v409 = vld [vmem:[#allocation5 + $0x828] sm:$0xff]
    %v410 = vld [vmem:[#allocation5 + $0x830] sm:$0xff]
    %v411 = vld [vmem:[#allocation5 + $0x838] sm:$0xff]
    %v412 = vld [vmem:[#allocation5 + $0x840] sm:$0xff]
    %v413 = vld [vmem:[#allocation5 + $0x848] sm:$0xf]
    %v414 = vld [vmem:[#allocation5 + $0x84c] sm:$0xff]
    %v415 = vld [vmem:[#allocation5 + $0x854] sm:$0xff]
    %v416 = vld [vmem:[#allocation5 + $0x85c] sm:$0xff]
    %v417 = vld [vmem:[#allocation5 + $0x864] sm:$0xff]
    %v418 = vld [vmem:[#allocation5 + $0x86c] sm:$0xf]
    %v419 = vld [vmem:[#allocation5 + $0x870] sm:$0xff]
    %v420 = vld [vmem:[#allocation5 + $0x878] sm:$0xff]
    %v421 = vld [vmem:[#allocation5 + $0x880] sm:$0xff]
    %v422 = vld [vmem:[#allocation5 + $0x888] sm:$0xff]
    %v423 = vld [vmem:[#allocation5 + $0x890] sm:$0xf]
    %v424 = vld [vmem:[#allocation5 + $0x894] sm:$0xff]
    %v425 = vld [vmem:[#allocation5 + $0x89c] sm:$0xff]
    %v426 = vld [vmem:[#allocation5 + $0x8a4] sm:$0xff]
    %v427 = vld [vmem:[#allocation5 + $0x8ac] sm:$0xff]
    %v428 = vld [vmem:[#allocation5 + $0x8b4] sm:$0xf]
    %v429 = vld [vmem:[#allocation5 + $0x8b8] sm:$0xff]
    %v430 = vld [vmem:[#allocation5 + $0x8c0] sm:$0xff]
    %v431 = vld [vmem:[#allocation5 + $0x8c8] sm:$0xff]
    %v432 = vld [vmem:[#allocation5 + $0x8d0] sm:$0xff]
    %v433 = vld [vmem:[#allocation5 + $0x8d8] sm:$0xf]
    %v434 = vld [vmem:[#allocation5 + $0x8dc] sm:$0xff]
    %v435 = vld [vmem:[#allocation5 + $0x8e4] sm:$0xff]
    %v436 = vld [vmem:[#allocation5 + $0x8ec] sm:$0xff]
    %v437 = vld [vmem:[#allocation5 + $0x8f4] sm:$0xff]
    %v438 = vld [vmem:[#allocation5 + $0x8fc] sm:$0xf]
    %v759 = vunpack.c.l.b16 %v119
    %v760 = vunpack.c.h.b16 %v119
    %v761 = vunpack.c.l.b16 %v120
    %v762 = vunpack.c.h.b16 %v120
    %v763 = vunpack.c.l.b16 %v121
    %v764 = vunpack.c.h.b16 %v121
    %v765 = vunpack.c.l.b16 %v122
    %v766 = vunpack.c.h.b16 %v122
    %v767 = vunpack.c.l.b16 %v123
    %v768 = vunpack.c.l.b16 %v124
    %v769 = vunpack.c.h.b16 %v124
    %v770 = vunpack.c.l.b16 %v125
    %v771 = vunpack.c.h.b16 %v125
    %v772 = vunpack.c.l.b16 %v126
    %v773 = vunpack.c.h.b16 %v126
    %v774 = vunpack.c.l.b16 %v127
    %v775 = vunpack.c.h.b16 %v127
    %v776 = vunpack.c.l.b16 %v128
    %v777 = vunpack.c.l.b16 %v129
    %v778 = vunpack.c.h.b16 %v129
    %v779 = vunpack.c.l.b16 %v130
    %v780 = vunpack.c.h.b16 %v130
    %v781 = vunpack.c.l.b16 %v131
    %v782 = vunpack.c.h.b16 %v131
    %v783 = vunpack.c.l.b16 %v132
    %v784 = vunpack.c.h.b16 %v132
    %v785 = vunpack.c.l.b16 %v133
    %v786 = vunpack.c.l.b16 %v134
    %v787 = vunpack.c.h.b16 %v134
    %v788 = vunpack.c.l.b16 %v135
    %v789 = vunpack.c.h.b16 %v135
    %v790 = vunpack.c.l.b16 %v136
    %v791 = vunpack.c.h.b16 %v136
    %v792 = vunpack.c.l.b16 %v137
    %v793 = vunpack.c.h.b16 %v137
    %v794 = vunpack.c.l.b16 %v138
    %v795 = vunpack.c.l.b16 %v139
    %v796 = vunpack.c.h.b16 %v139
    %v797 = vunpack.c.l.b16 %v140
    %v798 = vunpack.c.h.b16 %v140
    %v799 = vunpack.c.l.b16 %v141
    %v800 = vunpack.c.h.b16 %v141
    %v801 = vunpack.c.l.b16 %v142
    %v802 = vunpack.c.h.b16 %v142
    %v803 = vunpack.c.l.b16 %v143
    %v804 = vunpack.c.l.b16 %v144
    %v805 = vunpack.c.h.b16 %v144
    %v806 = vunpack.c.l.b16 %v145
    %v807 = vunpack.c.h.b16 %v145
    %v808 = vunpack.c.l.b16 %v146
    %v809 = vunpack.c.h.b16 %v146
    %v810 = vunpack.c.l.b16 %v147
    %v811 = vunpack.c.h.b16 %v147
    %v812 = vunpack.c.l.b16 %v148
    %v813 = vunpack.c.l.b16 %v149
    %v814 = vunpack.c.h.b16 %v149
    %v815 = vunpack.c.l.b16 %v150
    %v816 = vunpack.c.h.b16 %v150
    %v817 = vunpack.c.l.b16 %v151
    %v818 = vunpack.c.h.b16 %v151
    %v819 = vunpack.c.l.b16 %v152
    %v820 = vunpack.c.h.b16 %v152
    %v821 = vunpack.c.l.b16 %v153
    %v822 = vunpack.c.l.b16 %v154
    %v823 = vunpack.c.h.b16 %v154
    %v824 = vunpack.c.l.b16 %v155
    %v825 = vunpack.c.h.b16 %v155
    %v826 = vunpack.c.l.b16 %v156
    %v827 = vunpack.c.h.b16 %v156
    %v828 = vunpack.c.l.b16 %v157
    %v829 = vunpack.c.h.b16 %v157
    %v830 = vunpack.c.l.b16 %v158
    %v831 = vunpack.c.l.b16 %v159
    %v832 = vunpack.c.h.b16 %v159
    %v833 = vunpack.c.l.b16 %v160
    %v834 = vunpack.c.h.b16 %v160
    %v835 = vunpack.c.l.b16 %v161
    %v836 = vunpack.c.h.b16 %v161
    %v837 = vunpack.c.l.b16 %v162
    %v838 = vunpack.c.h.b16 %v162
    %v839 = vunpack.c.l.b16 %v163
    %v840 = vunpack.c.l.b16 %v164
    %v841 = vunpack.c.h.b16 %v164
    %v842 = vunpack.c.l.b16 %v165
    %v843 = vunpack.c.h.b16 %v165
    %v844 = vunpack.c.l.b16 %v166
    %v845 = vunpack.c.h.b16 %v166
    %v846 = vunpack.c.l.b16 %v167
    %v847 = vunpack.c.h.b16 %v167
    %v848 = vunpack.c.l.b16 %v168
    %v849 = vunpack.c.l.b16 %v169
    %v850 = vunpack.c.h.b16 %v169
    %v851 = vunpack.c.l.b16 %v170
    %v852 = vunpack.c.h.b16 %v170
    %v853 = vunpack.c.l.b16 %v171
    %v854 = vunpack.c.h.b16 %v171
    %v855 = vunpack.c.l.b16 %v172
    %v856 = vunpack.c.h.b16 %v172
    %v857 = vunpack.c.l.b16 %v173
    %v858 = vunpack.c.l.b16 %v174
    %v859 = vunpack.c.h.b16 %v174
    %v860 = vunpack.c.l.b16 %v175
    %v861 = vunpack.c.h.b16 %v175
    %v862 = vunpack.c.l.b16 %v176
    %v863 = vunpack.c.h.b16 %v176
    %v864 = vunpack.c.l.b16 %v177
    %v865 = vunpack.c.h.b16 %v177
    %v866 = vunpack.c.l.b16 %v178
    %v867 = vunpack.c.l.b16 %v179
    %v868 = vunpack.c.h.b16 %v179
    %v869 = vunpack.c.l.b16 %v180
    %v870 = vunpack.c.h.b16 %v180
    %v871 = vunpack.c.l.b16 %v181
    %v872 = vunpack.c.h.b16 %v181
    %v873 = vunpack.c.l.b16 %v182
    %v874 = vunpack.c.h.b16 %v182
    %v875 = vunpack.c.l.b16 %v183
    %v876 = vunpack.c.l.b16 %v184
    %v877 = vunpack.c.h.b16 %v184
    %v878 = vunpack.c.l.b16 %v185
    %v879 = vunpack.c.h.b16 %v185
    %v880 = vunpack.c.l.b16 %v186
    %v881 = vunpack.c.h.b16 %v186
    %v882 = vunpack.c.l.b16 %v187
    %v883 = vunpack.c.h.b16 %v187
    %v884 = vunpack.c.l.b16 %v188
    %v885 = vunpack.c.l.b16 %v189
    %v886 = vunpack.c.h.b16 %v189
    %v887 = vunpack.c.l.b16 %v190
    %v888 = vunpack.c.h.b16 %v190
    %v889 = vunpack.c.l.b16 %v191
    %v890 = vunpack.c.h.b16 %v191
    %v891 = vunpack.c.l.b16 %v192
    %v892 = vunpack.c.h.b16 %v192
    %v893 = vunpack.c.l.b16 %v193
    %v894 = vunpack.c.l.b16 %v194
    %v895 = vunpack.c.h.b16 %v194
    %v896 = vunpack.c.l.b16 %v195
    %v897 = vunpack.c.h.b16 %v195
    %v898 = vunpack.c.l.b16 %v196
    %v899 = vunpack.c.h.b16 %v196
    %v900 = vunpack.c.l.b16 %v197
    %v901 = vunpack.c.h.b16 %v197
    %v902 = vunpack.c.l.b16 %v198
    %v903 = vunpack.c.l.b16 %v199
    %v904 = vunpack.c.h.b16 %v199
    %v905 = vunpack.c.l.b16 %v200
    %v906 = vunpack.c.h.b16 %v200
    %v907 = vunpack.c.l.b16 %v201
    %v908 = vunpack.c.h.b16 %v201
    %v909 = vunpack.c.l.b16 %v202
    %v910 = vunpack.c.h.b16 %v202
    %v911 = vunpack.c.l.b16 %v203
    %v912 = vunpack.c.l.b16 %v204
    %v913 = vunpack.c.h.b16 %v204
    %v914 = vunpack.c.l.b16 %v205
    %v915 = vunpack.c.h.b16 %v205
    %v916 = vunpack.c.l.b16 %v206
    %v917 = vunpack.c.h.b16 %v206
    %v918 = vunpack.c.l.b16 %v207
    %v919 = vunpack.c.h.b16 %v207
    %v920 = vunpack.c.l.b16 %v208
    %v921 = vunpack.c.l.b16 %v209
    %v922 = vunpack.c.h.b16 %v209
    %v923 = vunpack.c.l.b16 %v210
    %v924 = vunpack.c.h.b16 %v210
    %v925 = vunpack.c.l.b16 %v211
    %v926 = vunpack.c.h.b16 %v211
    %v927 = vunpack.c.l.b16 %v212
    %v928 = vunpack.c.h.b16 %v212
    %v929 = vunpack.c.l.b16 %v213
    %v930 = vunpack.c.l.b16 %v214
    %v931 = vunpack.c.h.b16 %v214
    %v932 = vunpack.c.l.b16 %v215
    %v933 = vunpack.c.h.b16 %v215
    %v934 = vunpack.c.l.b16 %v216
    %v935 = vunpack.c.h.b16 %v216
    %v936 = vunpack.c.l.b16 %v217
    %v937 = vunpack.c.h.b16 %v217
    %v938 = vunpack.c.l.b16 %v218
    %v939 = vunpack.c.l.b16 %v219
    %v940 = vunpack.c.h.b16 %v219
    %v941 = vunpack.c.l.b16 %v220
    %v942 = vunpack.c.h.b16 %v220
    %v943 = vunpack.c.l.b16 %v221
    %v944 = vunpack.c.h.b16 %v221
    %v945 = vunpack.c.l.b16 %v222
    %v946 = vunpack.c.h.b16 %v222
    %v947 = vunpack.c.l.b16 %v223
    %v948 = vunpack.c.l.b16 %v224
    %v949 = vunpack.c.h.b16 %v224
    %v950 = vunpack.c.l.b16 %v225
    %v951 = vunpack.c.h.b16 %v225
    %v952 = vunpack.c.l.b16 %v226
    %v953 = vunpack.c.h.b16 %v226
    %v954 = vunpack.c.l.b16 %v227
    %v955 = vunpack.c.h.b16 %v227
    %v956 = vunpack.c.l.b16 %v228
    %v957 = vunpack.c.l.b16 %v229
    %v958 = vunpack.c.h.b16 %v229
    %v959 = vunpack.c.l.b16 %v230
    %v960 = vunpack.c.h.b16 %v230
    %v961 = vunpack.c.l.b16 %v231
    %v962 = vunpack.c.h.b16 %v231
    %v963 = vunpack.c.l.b16 %v232
    %v964 = vunpack.c.h.b16 %v232
    %v965 = vunpack.c.l.b16 %v233
    %v966 = vunpack.c.l.b16 %v234
    %v967 = vunpack.c.h.b16 %v234
    %v968 = vunpack.c.l.b16 %v235
    %v969 = vunpack.c.h.b16 %v235
    %v970 = vunpack.c.l.b16 %v236
    %v971 = vunpack.c.h.b16 %v236
    %v972 = vunpack.c.l.b16 %v237
    %v973 = vunpack.c.h.b16 %v237
    %v974 = vunpack.c.l.b16 %v238
    %v975 = vunpack.c.l.b16 %v239
    %v976 = vunpack.c.h.b16 %v239
    %v977 = vunpack.c.l.b16 %v240
    %v978 = vunpack.c.h.b16 %v240
    %v979 = vunpack.c.l.b16 %v241
    %v980 = vunpack.c.h.b16 %v241
    %v981 = vunpack.c.l.b16 %v242
    %v982 = vunpack.c.h.b16 %v242
    %v983 = vunpack.c.l.b16 %v243
    %v984 = vunpack.c.l.b16 %v244
    %v985 = vunpack.c.h.b16 %v244
    %v986 = vunpack.c.l.b16 %v245
    %v987 = vunpack.c.h.b16 %v245
    %v988 = vunpack.c.l.b16 %v246
    %v989 = vunpack.c.h.b16 %v246
    %v990 = vunpack.c.l.b16 %v247
    %v991 = vunpack.c.h.b16 %v247
    %v992 = vunpack.c.l.b16 %v248
    %v993 = vunpack.c.l.b16 %v249
    %v994 = vunpack.c.h.b16 %v249
    %v995 = vunpack.c.l.b16 %v250
    %v996 = vunpack.c.h.b16 %v250
    %v997 = vunpack.c.l.b16 %v251
    %v998 = vunpack.c.h.b16 %v251
    %v999 = vunpack.c.l.b16 %v252
    %v1000 = vunpack.c.h.b16 %v252
    %v1001 = vunpack.c.l.b16 %v253
    %v1002 = vunpack.c.l.b16 %v254
    %v1003 = vunpack.c.h.b16 %v254
    %v1004 = vunpack.c.l.b16 %v255
    %v1005 = vunpack.c.h.b16 %v255
    %v1006 = vunpack.c.l.b16 %v256
    %v1007 = vunpack.c.h.b16 %v256
    %v1008 = vunpack.c.l.b16 %v257
    %v1009 = vunpack.c.h.b16 %v257
    %v1010 = vunpack.c.l.b16 %v258
    %v1011 = vunpack.c.l.b16 %v259
    %v1012 = vunpack.c.h.b16 %v259
    %v1013 = vunpack.c.l.b16 %v260
    %v1014 = vunpack.c.h.b16 %v260
    %v1015 = vunpack.c.l.b16 %v261
    %v1016 = vunpack.c.h.b16 %v261
    %v1017 = vunpack.c.l.b16 %v262
    %v1018 = vunpack.c.h.b16 %v262
    %v1019 = vunpack.c.l.b16 %v263
    %v1020 = vunpack.c.l.b16 %v264
    %v1021 = vunpack.c.h.b16 %v264
    %v1022 = vunpack.c.l.b16 %v265
    %v1023 = vunpack.c.h.b16 %v265
    %v1024 = vunpack.c.l.b16 %v266
    %v1025 = vunpack.c.h.b16 %v266
    %v1026 = vunpack.c.l.b16 %v267
    %v1027 = vunpack.c.h.b16 %v267
    %v1028 = vunpack.c.l.b16 %v268
    %v1029 = vunpack.c.l.b16 %v269
    %v1030 = vunpack.c.h.b16 %v269
    %v1031 = vunpack.c.l.b16 %v270
    %v1032 = vunpack.c.h.b16 %v270
    %v1033 = vunpack.c.l.b16 %v271
    %v1034 = vunpack.c.h.b16 %v271
    %v1035 = vunpack.c.l.b16 %v272
    %v1036 = vunpack.c.h.b16 %v272
    %v1037 = vunpack.c.l.b16 %v273
    %v1038 = vunpack.c.l.b16 %v274
    %v1039 = vunpack.c.h.b16 %v274
    %v1040 = vunpack.c.l.b16 %v275
    %v1041 = vunpack.c.h.b16 %v275
    %v1042 = vunpack.c.l.b16 %v276
    %v1043 = vunpack.c.h.b16 %v276
    %v1044 = vunpack.c.l.b16 %v277
    %v1045 = vunpack.c.h.b16 %v277
    %v1046 = vunpack.c.l.b16 %v278
    %v1047 = vunpack.c.l.b16 %v279
    %v1048 = vunpack.c.h.b16 %v279
    %v1049 = vunpack.c.l.b16 %v280
    %v1050 = vunpack.c.h.b16 %v280
    %v1051 = vunpack.c.l.b16 %v281
    %v1052 = vunpack.c.h.b16 %v281
    %v1053 = vunpack.c.l.b16 %v282
    %v1054 = vunpack.c.h.b16 %v282
    %v1055 = vunpack.c.l.b16 %v283
    %v1056 = vunpack.c.l.b16 %v284
    %v1057 = vunpack.c.h.b16 %v284
    %v1058 = vunpack.c.l.b16 %v285
    %v1059 = vunpack.c.h.b16 %v285
    %v1060 = vunpack.c.l.b16 %v286
    %v1061 = vunpack.c.h.b16 %v286
    %v1062 = vunpack.c.l.b16 %v287
    %v1063 = vunpack.c.h.b16 %v287
    %v1064 = vunpack.c.l.b16 %v288
    %v1065 = vunpack.c.l.b16 %v289
    %v1066 = vunpack.c.h.b16 %v289
    %v1067 = vunpack.c.l.b16 %v290
    %v1068 = vunpack.c.h.b16 %v290
    %v1069 = vunpack.c.l.b16 %v291
    %v1070 = vunpack.c.h.b16 %v291
    %v1071 = vunpack.c.l.b16 %v292
    %v1072 = vunpack.c.h.b16 %v292
    %v1073 = vunpack.c.l.b16 %v293
    %v1074 = vunpack.c.l.b16 %v294
    %v1075 = vunpack.c.h.b16 %v294
    %v1076 = vunpack.c.l.b16 %v295
    %v1077 = vunpack.c.h.b16 %v295
    %v1078 = vunpack.c.l.b16 %v296
    %v1079 = vunpack.c.h.b16 %v296
    %v1080 = vunpack.c.l.b16 %v297
    %v1081 = vunpack.c.h.b16 %v297
    %v1082 = vunpack.c.l.b16 %v298
    %v1083 = vunpack.c.l.b16 %v299
    %v1084 = vunpack.c.h.b16 %v299
    %v1085 = vunpack.c.l.b16 %v300
    %v1086 = vunpack.c.h.b16 %v300
    %v1087 = vunpack.c.l.b16 %v301
    %v1088 = vunpack.c.h.b16 %v301
    %v1089 = vunpack.c.l.b16 %v302
    %v1090 = vunpack.c.h.b16 %v302
    %v1091 = vunpack.c.l.b16 %v303
    %v1092 = vunpack.c.l.b16 %v304
    %v1093 = vunpack.c.h.b16 %v304
    %v1094 = vunpack.c.l.b16 %v305
    %v1095 = vunpack.c.h.b16 %v305
    %v1096 = vunpack.c.l.b16 %v306
    %v1097 = vunpack.c.h.b16 %v306
    %v1098 = vunpack.c.l.b16 %v307
    %v1099 = vunpack.c.h.b16 %v307
    %v1100 = vunpack.c.l.b16 %v308
    %v1101 = vunpack.c.l.b16 %v309
    %v1102 = vunpack.c.h.b16 %v309
    %v1103 = vunpack.c.l.b16 %v310
    %v1104 = vunpack.c.h.b16 %v310
    %v1105 = vunpack.c.l.b16 %v311
    %v1106 = vunpack.c.h.b16 %v311
    %v1107 = vunpack.c.l.b16 %v312
    %v1108 = vunpack.c.h.b16 %v312
    %v1109 = vunpack.c.l.b16 %v313
    %v1110 = vunpack.c.l.b16 %v314
    %v1111 = vunpack.c.h.b16 %v314
    %v1112 = vunpack.c.l.b16 %v315
    %v1113 = vunpack.c.h.b16 %v315
    %v1114 = vunpack.c.l.b16 %v316
    %v1115 = vunpack.c.h.b16 %v316
    %v1116 = vunpack.c.l.b16 %v317
    %v1117 = vunpack.c.h.b16 %v317
    %v1118 = vunpack.c.l.b16 %v318
    %v1119 = vunpack.c.l.b16 %v319
    %v1120 = vunpack.c.h.b16 %v319
    %v1121 = vunpack.c.l.b16 %v320
    %v1122 = vunpack.c.h.b16 %v320
    %v1123 = vunpack.c.l.b16 %v321
    %v1124 = vunpack.c.h.b16 %v321
    %v1125 = vunpack.c.l.b16 %v322
    %v1126 = vunpack.c.h.b16 %v322
    %v1127 = vunpack.c.l.b16 %v323
    %v1128 = vunpack.c.l.b16 %v324
    %v1129 = vunpack.c.h.b16 %v324
    %v1130 = vunpack.c.l.b16 %v325
    %v1131 = vunpack.c.h.b16 %v325
    %v1132 = vunpack.c.l.b16 %v326
    %v1133 = vunpack.c.h.b16 %v326
    %v1134 = vunpack.c.l.b16 %v327
    %v1135 = vunpack.c.h.b16 %v327
    %v1136 = vunpack.c.l.b16 %v328
    %v1137 = vunpack.c.l.b16 %v329
    %v1138 = vunpack.c.h.b16 %v329
    %v1139 = vunpack.c.l.b16 %v330
    %v1140 = vunpack.c.h.b16 %v330
    %v1141 = vunpack.c.l.b16 %v331
    %v1142 = vunpack.c.h.b16 %v331
    %v1143 = vunpack.c.l.b16 %v332
    %v1144 = vunpack.c.h.b16 %v332
    %v1145 = vunpack.c.l.b16 %v333
    %v1146 = vunpack.c.l.b16 %v334
    %v1147 = vunpack.c.h.b16 %v334
    %v1148 = vunpack.c.l.b16 %v335
    %v1149 = vunpack.c.h.b16 %v335
    %v1150 = vunpack.c.l.b16 %v336
    %v1151 = vunpack.c.h.b16 %v336
    %v1152 = vunpack.c.l.b16 %v337
    %v1153 = vunpack.c.h.b16 %v337
    %v1154 = vunpack.c.l.b16 %v338
    %v1155 = vunpack.c.l.b16 %v339
    %v1156 = vunpack.c.h.b16 %v339
    %v1157 = vunpack.c.l.b16 %v340
    %v1158 = vunpack.c.h.b16 %v340
    %v1159 = vunpack.c.l.b16 %v341
    %v1160 = vunpack.c.h.b16 %v341
    %v1161 = vunpack.c.l.b16 %v342
    %v1162 = vunpack.c.h.b16 %v342
    %v1163 = vunpack.c.l.b16 %v343
    %v1164 = vunpack.c.l.b16 %v344
    %v1165 = vunpack.c.h.b16 %v344
    %v1166 = vunpack.c.l.b16 %v345
    %v1167 = vunpack.c.h.b16 %v345
    %v1168 = vunpack.c.l.b16 %v346
    %v1169 = vunpack.c.h.b16 %v346
    %v1170 = vunpack.c.l.b16 %v347
    %v1171 = vunpack.c.h.b16 %v347
    %v1172 = vunpack.c.l.b16 %v348
    %v1173 = vunpack.c.l.b16 %v349
    %v1174 = vunpack.c.h.b16 %v349
    %v1175 = vunpack.c.l.b16 %v350
    %v1176 = vunpack.c.h.b16 %v350
    %v1177 = vunpack.c.l.b16 %v351
    %v1178 = vunpack.c.h.b16 %v351
    %v1179 = vunpack.c.l.b16 %v352
    %v1180 = vunpack.c.h.b16 %v352
    %v1181 = vunpack.c.l.b16 %v353
    %v1182 = vunpack.c.l.b16 %v354
    %v1183 = vunpack.c.h.b16 %v354
    %v1184 = vunpack.c.l.b16 %v355
    %v1185 = vunpack.c.h.b16 %v355
    %v1186 = vunpack.c.l.b16 %v356
    %v1187 = vunpack.c.h.b16 %v356
    %v1188 = vunpack.c.l.b16 %v357
    %v1189 = vunpack.c.h.b16 %v357
    %v1190 = vunpack.c.l.b16 %v358
    %v1191 = vunpack.c.l.b16 %v359
    %v1192 = vunpack.c.h.b16 %v359
    %v1193 = vunpack.c.l.b16 %v360
    %v1194 = vunpack.c.h.b16 %v360
    %v1195 = vunpack.c.l.b16 %v361
    %v1196 = vunpack.c.h.b16 %v361
    %v1197 = vunpack.c.l.b16 %v362
    %v1198 = vunpack.c.h.b16 %v362
    %v1199 = vunpack.c.l.b16 %v363
    %v1200 = vunpack.c.l.b16 %v364
    %v1201 = vunpack.c.h.b16 %v364
    %v1202 = vunpack.c.l.b16 %v365
    %v1203 = vunpack.c.h.b16 %v365
    %v1204 = vunpack.c.l.b16 %v366
    %v1205 = vunpack.c.h.b16 %v366
    %v1206 = vunpack.c.l.b16 %v367
    %v1207 = vunpack.c.h.b16 %v367
    %v1208 = vunpack.c.l.b16 %v368
    %v1209 = vunpack.c.l.b16 %v369
    %v1210 = vunpack.c.h.b16 %v369
    %v1211 = vunpack.c.l.b16 %v370
    %v1212 = vunpack.c.h.b16 %v370
    %v1213 = vunpack.c.l.b16 %v371
    %v1214 = vunpack.c.h.b16 %v371
    %v1215 = vunpack.c.l.b16 %v372
    %v1216 = vunpack.c.h.b16 %v372
    %v1217 = vunpack.c.l.b16 %v373
    %v1218 = vunpack.c.l.b16 %v374
    %v1219 = vunpack.c.h.b16 %v374
    %v1220 = vunpack.c.l.b16 %v375
    %v1221 = vunpack.c.h.b16 %v375
    %v1222 = vunpack.c.l.b16 %v376
    %v1223 = vunpack.c.h.b16 %v376
    %v1224 = vunpack.c.l.b16 %v377
    %v1225 = vunpack.c.h.b16 %v377
    %v1226 = vunpack.c.l.b16 %v378
    %v1227 = vunpack.c.l.b16 %v379
    %v1228 = vunpack.c.h.b16 %v379
    %v1229 = vunpack.c.l.b16 %v380
    %v1230 = vunpack.c.h.b16 %v380
    %v1231 = vunpack.c.l.b16 %v381
    %v1232 = vunpack.c.h.b16 %v381
    %v1233 = vunpack.c.l.b16 %v382
    %v1234 = vunpack.c.h.b16 %v382
    %v1235 = vunpack.c.l.b16 %v383
    %v1236 = vunpack.c.l.b16 %v384
    %v1237 = vunpack.c.h.b16 %v384
    %v1238 = vunpack.c.l.b16 %v385
    %v1239 = vunpack.c.h.b16 %v385
    %v1240 = vunpack.c.l.b16 %v386
    %v1241 = vunpack.c.h.b16 %v386
    %v1242 = vunpack.c.l.b16 %v387
    %v1243 = vunpack.c.h.b16 %v387
    %v1244 = vunpack.c.l.b16 %v388
    %v1245 = vunpack.c.l.b16 %v389
    %v1246 = vunpack.c.h.b16 %v389
    %v1247 = vunpack.c.l.b16 %v390
    %v1248 = vunpack.c.h.b16 %v390
    %v1249 = vunpack.c.l.b16 %v391
    %v1250 = vunpack.c.h.b16 %v391
    %v1251 = vunpack.c.l.b16 %v392
    %v1252 = vunpack.c.h.b16 %v392
    %v1253 = vunpack.c.l.b16 %v393
    %v1254 = vunpack.c.l.b16 %v394
    %v1255 = vunpack.c.h.b16 %v394
    %v1256 = vunpack.c.l.b16 %v395
    %v1257 = vunpack.c.h.b16 %v395
    %v1258 = vunpack.c.l.b16 %v396
    %v1259 = vunpack.c.h.b16 %v396
    %v1260 = vunpack.c.l.b16 %v397
    %v1261 = vunpack.c.h.b16 %v397
    %v1262 = vunpack.c.l.b16 %v398
    %v1263 = vunpack.c.l.b16 %v399
    %v1264 = vunpack.c.h.b16 %v399
    %v1265 = vunpack.c.l.b16 %v400
    %v1266 = vunpack.c.h.b16 %v400
    %v1267 = vunpack.c.l.b16 %v401
    %v1268 = vunpack.c.h.b16 %v401
    %v1269 = vunpack.c.l.b16 %v402
    %v1270 = vunpack.c.h.b16 %v402
    %v1271 = vunpack.c.l.b16 %v403
    %v1272 = vunpack.c.l.b16 %v404
    %v1273 = vunpack.c.h.b16 %v404
    %v1274 = vunpack.c.l.b16 %v405
    %v1275 = vunpack.c.h.b16 %v405
    %v1276 = vunpack.c.l.b16 %v406
    %v1277 = vunpack.c.h.b16 %v406
    %v1278 = vunpack.c.l.b16 %v407
    %v1279 = vunpack.c.h.b16 %v407
    %v1280 = vunpack.c.l.b16 %v408
    %v1281 = vunpack.c.l.b16 %v409
    %v1282 = vunpack.c.h.b16 %v409
    %v1283 = vunpack.c.l.b16 %v410
    %v1284 = vunpack.c.h.b16 %v410
    %v1285 = vunpack.c.l.b16 %v411
    %v1286 = vunpack.c.h.b16 %v411
    %v1287 = vunpack.c.l.b16 %v412
    %v1288 = vunpack.c.h.b16 %v412
    %v1289 = vunpack.c.l.b16 %v413
    %v1290 = vunpack.c.l.b16 %v414
    %v1291 = vunpack.c.h.b16 %v414
    %v1292 = vunpack.c.l.b16 %v415
    %v1293 = vunpack.c.h.b16 %v415
    %v1294 = vunpack.c.l.b16 %v416
    %v1295 = vunpack.c.h.b16 %v416
    %v1296 = vunpack.c.l.b16 %v417
    %v1297 = vunpack.c.h.b16 %v417
    %v1298 = vunpack.c.l.b16 %v418
    %v1299 = vunpack.c.l.b16 %v419
    %v1300 = vunpack.c.h.b16 %v419
    %v1301 = vunpack.c.l.b16 %v420
    %v1302 = vunpack.c.h.b16 %v420
    %v1303 = vunpack.c.l.b16 %v421
    %v1304 = vunpack.c.h.b16 %v421
    %v1305 = vunpack.c.l.b16 %v422
    %v1306 = vunpack.c.h.b16 %v422
    %v1307 = vunpack.c.l.b16 %v423
    %v1308 = vunpack.c.l.b16 %v424
    %v1309 = vunpack.c.h.b16 %v424
    %v1310 = vunpack.c.l.b16 %v425
    %v1311 = vunpack.c.h.b16 %v425
    %v1312 = vunpack.c.l.b16 %v426
    %v1313 = vunpack.c.h.b16 %v426
    %v1314 = vunpack.c.l.b16 %v427
    %v1315 = vunpack.c.h.b16 %v427
    %v1316 = vunpack.c.l.b16 %v428
    %v1317 = vunpack.c.l.b16 %v429
    %v1318 = vunpack.c.h.b16 %v429
    %v1319 = vunpack.c.l.b16 %v430
    %v1320 = vunpack.c.h.b16 %v430
    %v1321 = vunpack.c.l.b16 %v431
    %v1322 = vunpack.c.h.b16 %v431
    %v1323 = vunpack.c.l.b16 %v432
    %v1324 = vunpack.c.h.b16 %v432
    %v1325 = vunpack.c.l.b16 %v433
    %v1326 = vunpack.c.l.b16 %v434
    %v1327 = vunpack.c.h.b16 %v434
    %v1328 = vunpack.c.l.b16 %v435
    %v1329 = vunpack.c.h.b16 %v435
    %v1330 = vunpack.c.l.b16 %v436
    %v1331 = vunpack.c.h.b16 %v436
    %v1332 = vunpack.c.l.b16 %v437
    %v1333 = vunpack.c.h.b16 %v437
    %v1334 = vunpack.c.l.b16 %v438
    %v1335 = vpack.c.b16 %v768, %v759
    %v1336 = vpack.c.b16 %v769, %v760
    %v1337 = vpack.c.b16 %v770, %v761
    %v1338 = vpack.c.b16 %v771, %v762
    %v1339 = vpack.c.b16 %v772, %v763
    %v1340 = vpack.c.b16 %v773, %v764
    %v1341 = vpack.c.b16 %v774, %v765
    %v1342 = vpack.c.b16 %v775, %v766
    %v1343 = vpack.c.b16 %v776, %v767
    %v1344 = vpack.c.b16 %v786, %v777
    %v1345 = vpack.c.b16 %v787, %v778
    %v1346 = vpack.c.b16 %v788, %v779
    %v1347 = vpack.c.b16 %v789, %v780
    %v1348 = vpack.c.b16 %v790, %v781
    %v1349 = vpack.c.b16 %v791, %v782
    %v1350 = vpack.c.b16 %v792, %v783
    %v1351 = vpack.c.b16 %v793, %v784
    %v1352 = vpack.c.b16 %v794, %v785
    %v1353 = vpack.c.b16 %v804, %v795
    %v1354 = vpack.c.b16 %v805, %v796
    %v1355 = vpack.c.b16 %v806, %v797
    %v1356 = vpack.c.b16 %v807, %v798
    %v1357 = vpack.c.b16 %v808, %v799
    %v1358 = vpack.c.b16 %v809, %v800
    %v1359 = vpack.c.b16 %v810, %v801
    %v1360 = vpack.c.b16 %v811, %v802
    %v1361 = vpack.c.b16 %v812, %v803
    %v1362 = vpack.c.b16 %v822, %v813
    %v1363 = vpack.c.b16 %v823, %v814
    %v1364 = vpack.c.b16 %v824, %v815
    %v1365 = vpack.c.b16 %v825, %v816
    %v1366 = vpack.c.b16 %v826, %v817
    %v1367 = vpack.c.b16 %v827, %v818
    %v1368 = vpack.c.b16 %v828, %v819
    %v1369 = vpack.c.b16 %v829, %v820
    %v1370 = vpack.c.b16 %v830, %v821
    %v1371 = vpack.c.b16 %v840, %v831
    %v1372 = vpack.c.b16 %v841, %v832
    %v1373 = vpack.c.b16 %v842, %v833
    %v1374 = vpack.c.b16 %v843, %v834
    %v1375 = vpack.c.b16 %v844, %v835
    %v1376 = vpack.c.b16 %v845, %v836
    %v1377 = vpack.c.b16 %v846, %v837
    %v1378 = vpack.c.b16 %v847, %v838
    %v1379 = vpack.c.b16 %v848, %v839
    %v1380 = vpack.c.b16 %v858, %v849
    %v1381 = vpack.c.b16 %v859, %v850
    %v1382 = vpack.c.b16 %v860, %v851
    %v1383 = vpack.c.b16 %v861, %v852
    %v1384 = vpack.c.b16 %v862, %v853
    %v1385 = vpack.c.b16 %v863, %v854
    %v1386 = vpack.c.b16 %v864, %v855
    %v1387 = vpack.c.b16 %v865, %v856
    %v1388 = vpack.c.b16 %v866, %v857
    %v1389 = vpack.c.b16 %v876, %v867
    %v1390 = vpack.c.b16 %v877, %v868
    %v1391 = vpack.c.b16 %v878, %v869
    %v1392 = vpack.c.b16 %v879, %v870
    %v1393 = vpack.c.b16 %v880, %v871
    %v1394 = vpack.c.b16 %v881, %v872
    %v1395 = vpack.c.b16 %v882, %v873
    %v1396 = vpack.c.b16 %v883, %v874
    %v1397 = vpack.c.b16 %v884, %v875
    %v1398 = vpack.c.b16 %v894, %v885
    %v1399 = vpack.c.b16 %v895, %v886
    %v1400 = vpack.c.b16 %v896, %v887
    %v1401 = vpack.c.b16 %v897, %v888
    %v1402 = vpack.c.b16 %v898, %v889
    %v1403 = vpack.c.b16 %v899, %v890
    %v1404 = vpack.c.b16 %v900, %v891
    %v1405 = vpack.c.b16 %v901, %v892
    %v1406 = vpack.c.b16 %v902, %v893
    %v1407 = vpack.c.b16 %v912, %v903
    %v1408 = vpack.c.b16 %v913, %v904
    %v1409 = vpack.c.b16 %v914, %v905
    %v1410 = vpack.c.b16 %v915, %v906
    %v1411 = vpack.c.b16 %v916, %v907
    %v1412 = vpack.c.b16 %v917, %v908
    %v1413 = vpack.c.b16 %v918, %v909
    %v1414 = vpack.c.b16 %v919, %v910
    %v1415 = vpack.c.b16 %v920, %v911
    %v1416 = vpack.c.b16 %v930, %v921
    %v1417 = vpack.c.b16 %v931, %v922
    %v1418 = vpack.c.b16 %v932, %v923
    %v1419 = vpack.c.b16 %v933, %v924
    %v1420 = vpack.c.b16 %v934, %v925
    %v1421 = vpack.c.b16 %v935, %v926
    %v1422 = vpack.c.b16 %v936, %v927
    %v1423 = vpack.c.b16 %v937, %v928
    %v1424 = vpack.c.b16 %v938, %v929
    %v1425 = vpack.c.b16 %v948, %v939
    %v1426 = vpack.c.b16 %v949, %v940
    %v1427 = vpack.c.b16 %v950, %v941
    %v1428 = vpack.c.b16 %v951, %v942
    %v1429 = vpack.c.b16 %v952, %v943
    %v1430 = vpack.c.b16 %v953, %v944
    %v1431 = vpack.c.b16 %v954, %v945
    %v1432 = vpack.c.b16 %v955, %v946
    %v1433 = vpack.c.b16 %v956, %v947
    %v1434 = vpack.c.b16 %v966, %v957
    %v1435 = vpack.c.b16 %v967, %v958
    %v1436 = vpack.c.b16 %v968, %v959
    %v1437 = vpack.c.b16 %v969, %v960
    %v1438 = vpack.c.b16 %v970, %v961
    %v1439 = vpack.c.b16 %v971, %v962
    %v1440 = vpack.c.b16 %v972, %v963
    %v1441 = vpack.c.b16 %v973, %v964
    %v1442 = vpack.c.b16 %v974, %v965
    %v1443 = vpack.c.b16 %v984, %v975
    %v1444 = vpack.c.b16 %v985, %v976
    %v1445 = vpack.c.b16 %v986, %v977
    %v1446 = vpack.c.b16 %v987, %v978
    %v1447 = vpack.c.b16 %v988, %v979
    %v1448 = vpack.c.b16 %v989, %v980
    %v1449 = vpack.c.b16 %v990, %v981
    %v1450 = vpack.c.b16 %v991, %v982
    %v1451 = vpack.c.b16 %v992, %v983
    %v1452 = vpack.c.b16 %v1002, %v993
    %v1453 = vpack.c.b16 %v1003, %v994
    %v1454 = vpack.c.b16 %v1004, %v995
    %v1455 = vpack.c.b16 %v1005, %v996
    %v1456 = vpack.c.b16 %v1006, %v997
    %v1457 = vpack.c.b16 %v1007, %v998
    %v1458 = vpack.c.b16 %v1008, %v999
    %v1459 = vpack.c.b16 %v1009, %v1000
    %v1460 = vpack.c.b16 %v1010, %v1001
    %v1461 = vpack.c.b16 %v1020, %v1011
    %v1462 = vpack.c.b16 %v1021, %v1012
    %v1463 = vpack.c.b16 %v1022, %v1013
    %v1464 = vpack.c.b16 %v1023, %v1014
    %v1465 = vpack.c.b16 %v1024, %v1015
    %v1466 = vpack.c.b16 %v1025, %v1016
    %v1467 = vpack.c.b16 %v1026, %v1017
    %v1468 = vpack.c.b16 %v1027, %v1018
    %v1469 = vpack.c.b16 %v1028, %v1019
    %v1470 = vpack.c.b16 %v1038, %v1029
    %v1471 = vpack.c.b16 %v1039, %v1030
    %v1472 = vpack.c.b16 %v1040, %v1031
    %v1473 = vpack.c.b16 %v1041, %v1032
    %v1474 = vpack.c.b16 %v1042, %v1033
    %v1475 = vpack.c.b16 %v1043, %v1034
    %v1476 = vpack.c.b16 %v1044, %v1035
    %v1477 = vpack.c.b16 %v1045, %v1036
    %v1478 = vpack.c.b16 %v1046, %v1037
    %v1479 = vpack.c.b16 %v1056, %v1047
    %v1480 = vpack.c.b16 %v1057, %v1048
    %v1481 = vpack.c.b16 %v1058, %v1049
    %v1482 = vpack.c.b16 %v1059, %v1050
    %v1483 = vpack.c.b16 %v1060, %v1051
    %v1484 = vpack.c.b16 %v1061, %v1052
    %v1485 = vpack.c.b16 %v1062, %v1053
    %v1486 = vpack.c.b16 %v1063, %v1054
    %v1487 = vpack.c.b16 %v1064, %v1055
    %v1488 = vpack.c.b16 %v1074, %v1065
    %v1489 = vpack.c.b16 %v1075, %v1066
    %v1490 = vpack.c.b16 %v1076, %v1067
    %v1491 = vpack.c.b16 %v1077, %v1068
    %v1492 = vpack.c.b16 %v1078, %v1069
    %v1493 = vpack.c.b16 %v1079, %v1070
    %v1494 = vpack.c.b16 %v1080, %v1071
    %v1495 = vpack.c.b16 %v1081, %v1072
    %v1496 = vpack.c.b16 %v1082, %v1073
    %v1497 = vpack.c.b16 %v1092, %v1083
    %v1498 = vpack.c.b16 %v1093, %v1084
    %v1499 = vpack.c.b16 %v1094, %v1085
    %v1500 = vpack.c.b16 %v1095, %v1086
    %v1501 = vpack.c.b16 %v1096, %v1087
    %v1502 = vpack.c.b16 %v1097, %v1088
    %v1503 = vpack.c.b16 %v1098, %v1089
    %v1504 = vpack.c.b16 %v1099, %v1090
    %v1505 = vpack.c.b16 %v1100, %v1091
    %v1506 = vpack.c.b16 %v1110, %v1101
    %v1507 = vpack.c.b16 %v1111, %v1102
    %v1508 = vpack.c.b16 %v1112, %v1103
    %v1509 = vpack.c.b16 %v1113, %v1104
    %v1510 = vpack.c.b16 %v1114, %v1105
    %v1511 = vpack.c.b16 %v1115, %v1106
    %v1512 = vpack.c.b16 %v1116, %v1107
    %v1513 = vpack.c.b16 %v1117, %v1108
    %v1514 = vpack.c.b16 %v1118, %v1109
    %v1515 = vpack.c.b16 %v1128, %v1119
    %v1516 = vpack.c.b16 %v1129, %v1120
    %v1517 = vpack.c.b16 %v1130, %v1121
    %v1518 = vpack.c.b16 %v1131, %v1122
    %v1519 = vpack.c.b16 %v1132, %v1123
    %v1520 = vpack.c.b16 %v1133, %v1124
    %v1521 = vpack.c.b16 %v1134, %v1125
    %v1522 = vpack.c.b16 %v1135, %v1126
    %v1523 = vpack.c.b16 %v1136, %v1127
    %v1524 = vpack.c.b16 %v1146, %v1137
    %v1525 = vpack.c.b16 %v1147, %v1138
    %v1526 = vpack.c.b16 %v1148, %v1139
    %v1527 = vpack.c.b16 %v1149, %v1140
    %v1528 = vpack.c.b16 %v1150, %v1141
    %v1529 = vpack.c.b16 %v1151, %v1142
    %v1530 = vpack.c.b16 %v1152, %v1143
    %v1531 = vpack.c.b16 %v1153, %v1144
    %v1532 = vpack.c.b16 %v1154, %v1145
    %v1533 = vpack.c.b16 %v1164, %v1155
    %v1534 = vpack.c.b16 %v1165, %v1156
    %v1535 = vpack.c.b16 %v1166, %v1157
    %v1536 = vpack.c.b16 %v1167, %v1158
    %v1537 = vpack.c.b16 %v1168, %v1159
    %v1538 = vpack.c.b16 %v1169, %v1160
    %v1539 = vpack.c.b16 %v1170, %v1161
    %v1540 = vpack.c.b16 %v1171, %v1162
    %v1541 = vpack.c.b16 %v1172, %v1163
    %v1542 = vpack.c.b16 %v1182, %v1173
    %v1543 = vpack.c.b16 %v1183, %v1174
    %v1544 = vpack.c.b16 %v1184, %v1175
    %v1545 = vpack.c.b16 %v1185, %v1176
    %v1546 = vpack.c.b16 %v1186, %v1177
    %v1547 = vpack.c.b16 %v1187, %v1178
    %v1548 = vpack.c.b16 %v1188, %v1179
    %v1549 = vpack.c.b16 %v1189, %v1180
    %v1550 = vpack.c.b16 %v1190, %v1181
    %v1551 = vpack.c.b16 %v1200, %v1191
    %v1552 = vpack.c.b16 %v1201, %v1192
    %v1553 = vpack.c.b16 %v1202, %v1193
    %v1554 = vpack.c.b16 %v1203, %v1194
    %v1555 = vpack.c.b16 %v1204, %v1195
    %v1556 = vpack.c.b16 %v1205, %v1196
    %v1557 = vpack.c.b16 %v1206, %v1197
    %v1558 = vpack.c.b16 %v1207, %v1198
    %v1559 = vpack.c.b16 %v1208, %v1199
    %v1560 = vpack.c.b16 %v1218, %v1209
    %v1561 = vpack.c.b16 %v1219, %v1210
    %v1562 = vpack.c.b16 %v1220, %v1211
    %v1563 = vpack.c.b16 %v1221, %v1212
    %v1564 = vpack.c.b16 %v1222, %v1213
    %v1565 = vpack.c.b16 %v1223, %v1214
    %v1566 = vpack.c.b16 %v1224, %v1215
    %v1567 = vpack.c.b16 %v1225, %v1216
    %v1568 = vpack.c.b16 %v1226, %v1217
    %v1569 = vpack.c.b16 %v1236, %v1227
    %v1570 = vpack.c.b16 %v1237, %v1228
    %v1571 = vpack.c.b16 %v1238, %v1229
    %v1572 = vpack.c.b16 %v1239, %v1230
    %v1573 = vpack.c.b16 %v1240, %v1231
    %v1574 = vpack.c.b16 %v1241, %v1232
    %v1575 = vpack.c.b16 %v1242, %v1233
    %v1576 = vpack.c.b16 %v1243, %v1234
    %v1577 = vpack.c.b16 %v1244, %v1235
    %v1578 = vpack.c.b16 %v1254, %v1245
    %v1579 = vpack.c.b16 %v1255, %v1246
    %v1580 = vpack.c.b16 %v1256, %v1247
    %v1581 = vpack.c.b16 %v1257, %v1248
    %v1582 = vpack.c.b16 %v1258, %v1249
    %v1583 = vpack.c.b16 %v1259, %v1250
    %v1584 = vpack.c.b16 %v1260, %v1251
    %v1585 = vpack.c.b16 %v1261, %v1252
    %v1586 = vpack.c.b16 %v1262, %v1253
    %v1587 = vpack.c.b16 %v1272, %v1263
    %v1588 = vpack.c.b16 %v1273, %v1264
    %v1589 = vpack.c.b16 %v1274, %v1265
    %v1590 = vpack.c.b16 %v1275, %v1266
    %v1591 = vpack.c.b16 %v1276, %v1267
    %v1592 = vpack.c.b16 %v1277, %v1268
    %v1593 = vpack.c.b16 %v1278, %v1269
    %v1594 = vpack.c.b16 %v1279, %v1270
    %v1595 = vpack.c.b16 %v1280, %v1271
    %v1596 = vpack.c.b16 %v1290, %v1281
    %v1597 = vpack.c.b16 %v1291, %v1282
    %v1598 = vpack.c.b16 %v1292, %v1283
    %v1599 = vpack.c.b16 %v1293, %v1284
    %v1600 = vpack.c.b16 %v1294, %v1285
    %v1601 = vpack.c.b16 %v1295, %v1286
    %v1602 = vpack.c.b16 %v1296, %v1287
    %v1603 = vpack.c.b16 %v1297, %v1288
    %v1604 = vpack.c.b16 %v1298, %v1289
    %v1605 = vpack.c.b16 %v1308, %v1299
    %v1606 = vpack.c.b16 %v1309, %v1300
    %v1607 = vpack.c.b16 %v1310, %v1301
    %v1608 = vpack.c.b16 %v1311, %v1302
    %v1609 = vpack.c.b16 %v1312, %v1303
    %v1610 = vpack.c.b16 %v1313, %v1304
    %v1611 = vpack.c.b16 %v1314, %v1305
    %v1612 = vpack.c.b16 %v1315, %v1306
    %v1613 = vpack.c.b16 %v1316, %v1307
    %v1614 = vpack.c.b16 %v1326, %v1317
    %v1615 = vpack.c.b16 %v1327, %v1318
    %v1616 = vpack.c.b16 %v1328, %v1319
    %v1617 = vpack.c.b16 %v1329, %v1320
    %v1618 = vpack.c.b16 %v1330, %v1321
    %v1619 = vpack.c.b16 %v1331, %v1322
    %v1620 = vpack.c.b16 %v1332, %v1323
    %v1621 = vpack.c.b16 %v1333, %v1324
    %v1622 = vpack.c.b16 %v1334, %v1325
    %1911 = vmatprep.subr.bf16.mxu0 %v1336
    %1912 = vmatpush1.bf16.msra.mxu0 %v1335
    %1913 = vmatprep.subr.bf16.mxu0 %v1345
    %1914 = vmatpush1.bf16.msra.mxu0 %v1344
    %1915 = vmatprep.subr.bf16.mxu0 %v1354
    %1916 = vmatpush1.bf16.msra.mxu0 %v1353
    %1917 = vmatprep.subr.bf16.mxu0 %v1363
    %1918 = vmatpush1.bf16.msra.mxu0 %v1362
    %1919 = vmatprep.subr.bf16.mxu0 %v1372
    %1920 = vmatpush1.bf16.msra.mxu0 %v1371
    %1921 = vmatprep.subr.bf16.mxu0 %v1381
    %1922 = vmatpush1.bf16.msra.mxu0 %v1380
    %1923 = vmatprep.subr.bf16.mxu0 %v1390
    %1924 = vmatpush1.bf16.msra.mxu0 %v1389
    %1925 = vmatprep.subr.bf16.mxu0 %v1399
    %1926 = vmatpush1.bf16.msra.mxu0 %v1398
    %1927 = vmatprep.subr.bf16.mxu0 %v1408
    %1928 = vmatpush1.bf16.msra.mxu0 %v1407
    %1929 = vmatprep.subr.bf16.mxu0 %v1417
    %1930 = vmatpush1.bf16.msra.mxu0 %v1416
    %1931 = vmatprep.subr.bf16.mxu0 %v1426
    %1932 = vmatpush1.bf16.msra.mxu0 %v1425
    %1933 = vmatprep.subr.bf16.mxu0 %v1435
    %1934 = vmatpush1.bf16.msra.mxu0 %v1434
    %1935 = vmatprep.subr.bf16.mxu0 %v1444
    %1936 = vmatpush1.bf16.msra.mxu0 %v1443
    %1937 = vmatprep.subr.bf16.mxu0 %v1453
    %1938 = vmatpush1.bf16.msra.mxu0 %v1452
    %1939 = vmatprep.subr.bf16.mxu0 %v1462
    %1940 = vmatpush1.bf16.msra.mxu0 %v1461
    %1941 = vmatprep.subr.bf16.mxu0 %v1471
    %1942 = vmatpush1.bf16.msra.mxu0 %v1470
    %1943 = vmatprep.mubr.bf16.mxu0 %v116
    %1944 = vmatmul.mubr.bf16.gmra.mrb[0].mxu0 %v115
    %v1945 = vpop.f32.mrb[0].mxu0
    %v1946 = vadd.f32 0.0, %v1945
    %v1947 = vpop.f32.mrb[0].mxu0
    %v1948 = vadd.f32 0.0, %v1947
    %v1949 = vpop.f32.mrb[0].mxu0
    %v1950 = vpop.f32.mrb[0].mxu0
    %1951 = vdwg.mxu0
    %1952 = vmatprep.subr.bf16.mxu0 %v1480
    %1953 = vmatpush1.bf16.msra.mxu0 %v1479
    %1954 = vmatprep.subr.bf16.mxu0 %v1489
    %1955 = vmatpush1.bf16.msra.mxu0 %v1488
    %1956 = vmatprep.subr.bf16.mxu0 %v1498
    %1957 = vmatpush1.bf16.msra.mxu0 %v1497
    %1958 = vmatprep.subr.bf16.mxu0 %v1507
    %1959 = vmatpush1.bf16.msra.mxu0 %v1506
    %1960 = vmatprep.subr.bf16.mxu0 %v1516
    %1961 = vmatpush1.bf16.msra.mxu0 %v1515
    %1962 = vmatprep.subr.bf16.mxu0 %v1525
    %1963 = vmatpush1.bf16.msra.mxu0 %v1524
    %1964 = vmatprep.subr.bf16.mxu0 %v1534
    %1965 = vmatpush1.bf16.msra.mxu0 %v1533
    %1966 = vmatprep.subr.bf16.mxu0 %v1543
    %1967 = vmatpush1.bf16.msra.mxu0 %v1542
    %1968 = vmatprep.subr.bf16.mxu0 %v1552
    %1969 = vmatpush1.bf16.msra.mxu0 %v1551
    %1970 = vmatprep.subr.bf16.mxu0 %v1561
    %1971 = vmatpush1.bf16.msra.mxu0 %v1560
    %1972 = vmatprep.subr.bf16.mxu0 %v1570
    %1973 = vmatpush1.bf16.msra.mxu0 %v1569
    %1974 = vmatprep.subr.bf16.mxu0 %v1579
    %1975 = vmatpush1.bf16.msra.mxu0 %v1578
    %1976 = vmatprep.subr.bf16.mxu0 %v1588
    %1977 = vmatpush1.bf16.msra.mxu0 %v1587
    %1978 = vmatprep.subr.bf16.mxu0 %v1597
    %1979 = vmatpush1.bf16.msra.mxu0 %v1596
    %1980 = vmatprep.subr.bf16.mxu0 %v1606
    %1981 = vmatpush1.bf16.msra.mxu0 %v1605
    %1982 = vmatprep.subr.bf16.mxu0 %v1615
    %1983 = vmatpush1.bf16.msra.mxu0 %v1614
    %1984 = vmatprep.mubr.bf16.mxu0 %v118
    %1985 = vmatmul.mubr.bf16.gmra.mrb[0].mxu0 %v117
    %v1986 = vpop.f32.mrb[0].mxu0
    %v1987 = vadd.f32 %v1946, %v1986
    %v1988 = vpop.f32.mrb[0].mxu0
    %v1989 = vadd.f32 %v1948, %v1988
    %v1990 = vpop.f32.mrb[0].mxu0
    %v1991 = vpop.f32.mrb[0].mxu0
    %1992 = vdwg.mxu0
    %1993 = vmatprep.subr.bf16.mxu0 %v1338
    %1994 = vmatpush1.bf16.msra.mxu0 %v1337
    %1995 = vmatprep.subr.bf16.mxu0 %v1347
    %1996 = vmatpush1.bf16.msra.mxu0 %v1346
    %1997 = vmatprep.subr.bf16.mxu0 %v1356
    %1998 = vmatpush1.bf16.msra.mxu0 %v1355
    %1999 = vmatprep.subr.bf16.mxu0 %v1365
    %2000 = vmatpush1.bf16.msra.mxu0 %v1364
    %2001 = vmatprep.subr.bf16.mxu0 %v1374
    %2002 = vmatpush1.bf16.msra.mxu0 %v1373
    %2003 = vmatprep.subr.bf16.mxu0 %v1383
    %2004 = vmatpush1.bf16.msra.mxu0 %v1382
    %2005 = vmatprep.subr.bf16.mxu0 %v1392
    %2006 = vmatpush1.bf16.msra.mxu0 %v1391
    %2007 = vmatprep.subr.bf16.mxu0 %v1401
    %2008 = vmatpush1.bf16.msra.mxu0 %v1400
    %2009 = vmatprep.subr.bf16.mxu0 %v1410
    %2010 = vmatpush1.bf16.msra.mxu0 %v1409
    %2011 = vmatprep.subr.bf16.mxu0 %v1419
    %2012 = vmatpush1.bf16.msra.mxu0 %v1418
    %2013 = vmatprep.subr.bf16.mxu0 %v1428
    %2014 = vmatpush1.bf16.msra.mxu0 %v1427
    %2015 = vmatprep.subr.bf16.mxu0 %v1437
    %2016 = vmatpush1.bf16.msra.mxu0 %v1436
    %2017 = vmatprep.subr.bf16.mxu0 %v1446
    %2018 = vmatpush1.bf16.msra.mxu0 %v1445
    %2019 = vmatprep.subr.bf16.mxu0 %v1455
    %2020 = vmatpush1.bf16.msra.mxu0 %v1454
    %2021 = vmatprep.subr.bf16.mxu0 %v1464
    %2022 = vmatpush1.bf16.msra.mxu0 %v1463
    %2023 = vmatprep.subr.bf16.mxu0 %v1473
    %2024 = vmatpush1.bf16.msra.mxu0 %v1472
    %2025 = vmatprep.mubr.bf16.mxu0 %v116
    %2026 = vmatmul.mubr.bf16.gmra.mrb[0].mxu0 %v115
    %v2027 = vpop.f32.mrb[0].mxu0
    %v2028 = vadd.f32 0.0, %v2027
    %v2029 = vpop.f32.mrb[0].mxu0
    %v2030 = vadd.f32 0.0, %v2029
    %v2031 = vpop.f32.mrb[0].mxu0
    %v2032 = vpop.f32.mrb[0].mxu0
    %2033 = vdwg.mxu0
    %2034 = vmatprep.subr.bf16.mxu0 %v1482
    %2035 = vmatpush1.bf16.msra.mxu0 %v1481
    %2036 = vmatprep.subr.bf16.mxu0 %v1491
    %2037 = vmatpush1.bf16.msra.mxu0 %v1490
    %2038 = vmatprep.subr.bf16.mxu0 %v1500
    %2039 = vmatpush1.bf16.msra.mxu0 %v1499
    %2040 = vmatprep.subr.bf16.mxu0 %v1509
    %2041 = vmatpush1.bf16.msra.mxu0 %v1508
    %2042 = vmatprep.subr.bf16.mxu0 %v1518
    %2043 = vmatpush1.bf16.msra.mxu0 %v1517
    %2044 = vmatprep.subr.bf16.mxu0 %v1527
    %2045 = vmatpush1.bf16.msra.mxu0 %v1526
    %2046 = vmatprep.subr.bf16.mxu0 %v1536
    %2047 = vmatpush1.bf16.msra.mxu0 %v1535
    %2048 = vmatprep.subr.bf16.mxu0 %v1545
    %2049 = vmatpush1.bf16.msra.mxu0 %v1544
    %2050 = vmatprep.subr.bf16.mxu0 %v1554
    %2051 = vmatpush1.bf16.msra.mxu0 %v1553
    %2052 = vmatprep.subr.bf16.mxu0 %v1563
    %2053 = vmatpush1.bf16.msra.mxu0 %v1562
    %2054 = vmatprep.subr.bf16.mxu0 %v1572
    %2055 = vmatpush1.bf16.msra.mxu0 %v1571
    %2056 = vmatprep.subr.bf16.mxu0 %v1581
    %2057 = vmatpush1.bf16.msra.mxu0 %v1580
    %2058 = vmatprep.subr.bf16.mxu0 %v1590
    %2059 = vmatpush1.bf16.msra.mxu0 %v1589
    %2060 = vmatprep.subr.bf16.mxu0 %v1599
    %2061 = vmatpush1.bf16.msra.mxu0 %v1598
    %2062 = vmatprep.subr.bf16.mxu0 %v1608
    %2063 = vmatpush1.bf16.msra.mxu0 %v1607
    %2064 = vmatprep.subr.bf16.mxu0 %v1617
    %2065 = vmatpush1.bf16.msra.mxu0 %v1616
    %2066 = vmatprep.mubr.bf16.mxu0 %v118
    %2067 = vmatmul.mubr.bf16.gmra.mrb[0].mxu0 %v117
    %v2068 = vpop.f32.mrb[0].mxu0
    %v2069 = vadd.f32 %v2028, %v2068
    %v2070 = vpop.f32.mrb[0].mxu0
    %v2071 = vadd.f32 %v2030, %v2070
    %v2072 = vpop.f32.mrb[0].mxu0
    %v2073 = vpop.f32.mrb[0].mxu0
    %2074 = vdwg.mxu0
    %2075 = vmatprep.subr.bf16.mxu0 %v1340
    %2076 = vmatpush1.bf16.msra.mxu0 %v1339
    %2077 = vmatprep.subr.bf16.mxu0 %v1349
    %2078 = vmatpush1.bf16.msra.mxu0 %v1348
    %2079 = vmatprep.subr.bf16.mxu0 %v1358
    %2080 = vmatpush1.bf16.msra.mxu0 %v1357
    %2081 = vmatprep.subr.bf16.mxu0 %v1367
    %2082 = vmatpush1.bf16.msra.mxu0 %v1366
    %2083 = vmatprep.subr.bf16.mxu0 %v1376
    %2084 = vmatpush1.bf16.msra.mxu0 %v1375
    %2085 = vmatprep.subr.bf16.mxu0 %v1385
    %2086 = vmatpush1.bf16.msra.mxu0 %v1384
    %2087 = vmatprep.subr.bf16.mxu0 %v1394
    %2088 = vmatpush1.bf16.msra.mxu0 %v1393
    %2089 = vmatprep.subr.bf16.mxu0 %v1403
    %2090 = vmatpush1.bf16.msra.mxu0 %v1402
    %2091 = vmatprep.subr.bf16.mxu0 %v1412
    %2092 = vmatpush1.bf16.msra.mxu0 %v1411
    %2093 = vmatprep.subr.bf16.mxu0 %v1421
    %2094 = vmatpush1.bf16.msra.mxu0 %v1420
    %2095 = vmatprep.subr.bf16.mxu0 %v1430
    %2096 = vmatpush1.bf16.msra.mxu0 %v1429
    %2097 = vmatprep.subr.bf16.mxu0 %v1439
    %2098 = vmatpush1.bf16.msra.mxu0 %v1438
    %2099 = vmatprep.subr.bf16.mxu0 %v1448
    %2100 = vmatpush1.bf16.msra.mxu0 %v1447
    %2101 = vmatprep.subr.bf16.mxu0 %v1457
    %2102 = vmatpush1.bf16.msra.mxu0 %v1456
    %2103 = vmatprep.subr.bf16.mxu0 %v1466
    %2104 = vmatpush1.bf16.msra.mxu0 %v1465
    %2105 = vmatprep.subr.bf16.mxu0 %v1475
    %2106 = vmatpush1.bf16.msra.mxu0 %v1474
    %2107 = vmatprep.mubr.bf16.mxu0 %v116
    %2108 = vmatmul.mubr.bf16.gmra.mrb[0].mxu0 %v115
    %v2109 = vpop.f32.mrb[0].mxu0
    %v2110 = vadd.f32 0.0, %v2109
    %v2111 = vpop.f32.mrb[0].mxu0
    %v2112 = vadd.f32 0.0, %v2111
    %v2113 = vpop.f32.mrb[0].mxu0
    %v2114 = vpop.f32.mrb[0].mxu0
    %2115 = vdwg.mxu0
    %2116 = vmatprep.subr.bf16.mxu0 %v1484
    %2117 = vmatpush1.bf16.msra.mxu0 %v1483
    %2118 = vmatprep.subr.bf16.mxu0 %v1493
    %2119 = vmatpush1.bf16.msra.mxu0 %v1492
    %2120 = vmatprep.subr.bf16.mxu0 %v1502
    %2121 = vmatpush1.bf16.msra.mxu0 %v1501
    %2122 = vmatprep.subr.bf16.mxu0 %v1511
    %2123 = vmatpush1.bf16.msra.mxu0 %v1510
    %2124 = vmatprep.subr.bf16.mxu0 %v1520
    %2125 = vmatpush1.bf16.msra.mxu0 %v1519
    %2126 = vmatprep.subr.bf16.mxu0 %v1529
    %2127 = vmatpush1.bf16.msra.mxu0 %v1528
    %2128 = vmatprep.subr.bf16.mxu0 %v1538
    %2129 = vmatpush1.bf16.msra.mxu0 %v1537
    %2130 = vmatprep.subr.bf16.mxu0 %v1547
    %2131 = vmatpush1.bf16.msra.mxu0 %v1546
    %2132 = vmatprep.subr.bf16.mxu0 %v1556
    %2133 = vmatpush1.bf16.msra.mxu0 %v1555
    %2134 = vmatprep.subr.bf16.mxu0 %v1565
    %2135 = vmatpush1.bf16.msra.mxu0 %v1564
    %2136 = vmatprep.subr.bf16.mxu0 %v1574
    %2137 = vmatpush1.bf16.msra.mxu0 %v1573
    %2138 = vmatprep.subr.bf16.mxu0 %v1583
    %2139 = vmatpush1.bf16.msra.mxu0 %v1582
    %2140 = vmatprep.subr.bf16.mxu0 %v1592
    %2141 = vmatpush1.bf16.msra.mxu0 %v1591
    %2142 = vmatprep.subr.bf16.mxu0 %v1601
    %2143 = vmatpush1.bf16.msra.mxu0 %v1600
    %2144 = vmatprep.subr.bf16.mxu0 %v1610
    %2145 = vmatpush1.bf16.msra.mxu0 %v1609
    %2146 = vmatprep.subr.bf16.mxu0 %v1619
    %2147 = vmatpush1.bf16.msra.mxu0 %v1618
    %2148 = vmatprep.mubr.bf16.mxu0 %v118
    %2149 = vmatmul.mubr.bf16.gmra.mrb[0].mxu0 %v117
    %v2150 = vpop.f32.mrb[0].mxu0
    %v2151 = vadd.f32 %v2110, %v2150
    %v2152 = vpop.f32.mrb[0].mxu0
    %v2153 = vadd.f32 %v2112, %v2152
    %v2154 = vpop.f32.mrb[0].mxu0
    %v2155 = vpop.f32.mrb[0].mxu0
    %2156 = vdwg.mxu0
    %2157 = vmatprep.subr.bf16.mxu0 %v1342
    %2158 = vmatpush1.bf16.msra.mxu0 %v1341
    %2159 = vmatprep.subr.bf16.mxu0 %v1351
    %2160 = vmatpush1.bf16.msra.mxu0 %v1350
    %2161 = vmatprep.subr.bf16.mxu0 %v1360
    %2162 = vmatpush1.bf16.msra.mxu0 %v1359
    %2163 = vmatprep.subr.bf16.mxu0 %v1369
    %2164 = vmatpush1.bf16.msra.mxu0 %v1368
    %2165 = vmatprep.subr.bf16.mxu0 %v1378
    %2166 = vmatpush1.bf16.msra.mxu0 %v1377
    %2167 = vmatprep.subr.bf16.mxu0 %v1387
    %2168 = vmatpush1.bf16.msra.mxu0 %v1386
    %2169 = vmatprep.subr.bf16.mxu0 %v1396
    %2170 = vmatpush1.bf16.msra.mxu0 %v1395
    %2171 = vmatprep.subr.bf16.mxu0 %v1405
    %2172 = vmatpush1.bf16.msra.mxu0 %v1404
    %2173 = vmatprep.subr.bf16.mxu0 %v1414
    %2174 = vmatpush1.bf16.msra.mxu0 %v1413
    %2175 = vmatprep.subr.bf16.mxu0 %v1423
    %2176 = vmatpush1.bf16.msra.mxu0 %v1422
    %2177 = vmatprep.subr.bf16.mxu0 %v1432
    %2178 = vmatpush1.bf16.msra.mxu0 %v1431
    %2179 = vmatprep.subr.bf16.mxu0 %v1441
    %2180 = vmatpush1.bf16.msra.mxu0 %v1440
    %2181 = vmatprep.subr.bf16.mxu0 %v1450
    %2182 = vmatpush1.bf16.msra.mxu0 %v1449
    %2183 = vmatprep.subr.bf16.mxu0 %v1459
    %2184 = vmatpush1.bf16.msra.mxu0 %v1458
    %2185 = vmatprep.subr.bf16.mxu0 %v1468
    %2186 = vmatpush1.bf16.msra.mxu0 %v1467
    %2187 = vmatprep.subr.bf16.mxu0 %v1477
    %2188 = vmatpush1.bf16.msra.mxu0 %v1476
    %2189 = vmatprep.mubr.bf16.mxu0 %v116
    %2190 = vmatmul.mubr.bf16.gmra.mrb[0].mxu0 %v115
    %v2191 = vpop.f32.mrb[0].mxu0
    %v2192 = vadd.f32 0.0, %v2191
    %v2193 = vpop.f32.mrb[0].mxu0
    %v2194 = vadd.f32 0.0, %v2193
    %v2195 = vpop.f32.mrb[0].mxu0
    %v2196 = vpop.f32.mrb[0].mxu0
    %2197 = vdwg.mxu0
    %2198 = vmatprep.subr.bf16.mxu0 %v1486
    %2199 = vmatpush1.bf16.msra.mxu0 %v1485
    %2200 = vmatprep.subr.bf16.mxu0 %v1495
    %2201 = vmatpush1.bf16.msra.mxu0 %v1494
    %2202 = vmatprep.subr.bf16.mxu0 %v1504
    %2203 = vmatpush1.bf16.msra.mxu0 %v1503
    %2204 = vmatprep.subr.bf16.mxu0 %v1513
    %2205 = vmatpush1.bf16.msra.mxu0 %v1512
    %2206 = vmatprep.subr.bf16.mxu0 %v1522
    %2207 = vmatpush1.bf16.msra.mxu0 %v1521
    %2208 = vmatprep.subr.bf16.mxu0 %v1531
    %2209 = vmatpush1.bf16.msra.mxu0 %v1530
    %2210 = vmatprep.subr.bf16.mxu0 %v1540
    %2211 = vmatpush1.bf16.msra.mxu0 %v1539
    %2212 = vmatprep.subr.bf16.mxu0 %v1549
    %2213 = vmatpush1.bf16.msra.mxu0 %v1548
    %2214 = vmatprep.subr.bf16.mxu0 %v1558
    %2215 = vmatpush1.bf16.msra.mxu0 %v1557
    %2216 = vmatprep.subr.bf16.mxu0 %v1567
    %2217 = vmatpush1.bf16.msra.mxu0 %v1566
    %2218 = vmatprep.subr.bf16.mxu0 %v1576
    %2219 = vmatpush1.bf16.msra.mxu0 %v1575
    %2220 = vmatprep.subr.bf16.mxu0 %v1585
    %2221 = vmatpush1.bf16.msra.mxu0 %v1584
    %2222 = vmatprep.subr.bf16.mxu0 %v1594
    %2223 = vmatpush1.bf16.msra.mxu0 %v1593
    %2224 = vmatprep.subr.bf16.mxu0 %v1603
    %2225 = vmatpush1.bf16.msra.mxu0 %v1602
    %2226 = vmatprep.subr.bf16.mxu0 %v1612
    %2227 = vmatpush1.bf16.msra.mxu0 %v1611
    %2228 = vmatprep.subr.bf16.mxu0 %v1621
    %2229 = vmatpush1.bf16.msra.mxu0 %v1620
    %2230 = vmatprep.mubr.bf16.mxu0 %v118
    %2231 = vmatmul.mubr.bf16.gmra.mrb[0].mxu0 %v117
    %v2232 = vpop.f32.mrb[0].mxu0
    %v2233 = vadd.f32 %v2192, %v2232
    %v2234 = vpop.f32.mrb[0].mxu0
    %v2235 = vadd.f32 %v2194, %v2234
    %v2236 = vpop.f32.mrb[0].mxu0
    %v2237 = vpop.f32.mrb[0].mxu0
    %2238 = vdwg.mxu0
    %2239 = vmatprep.subr.bf16.mxu0 0
    %2240 = vmatpush1.bf16.msra.mxu0 %v1343
    %2241 = vmatprep.subr.bf16.mxu0 0
    %2242 = vmatpush1.bf16.msra.mxu0 %v1352
    %2243 = vmatprep.subr.bf16.mxu0 0
    %2244 = vmatpush1.bf16.msra.mxu0 %v1361
    %2245 = vmatprep.subr.bf16.mxu0 0
    %2246 = vmatpush1.bf16.msra.mxu0 %v1370
    %2247 = vmatprep.subr.bf16.mxu0 0
    %2248 = vmatpush1.bf16.msra.mxu0 %v1379
    %2249 = vmatprep.subr.bf16.mxu0 0
    %2250 = vmatpush1.bf16.msra.mxu0 %v1388
    %2251 = vmatprep.subr.bf16.mxu0 0
    %2252 = vmatpush1.bf16.msra.mxu0 %v1397
    %2253 = vmatprep.subr.bf16.mxu0 0
    %2254 = vmatpush1.bf16.msra.mxu0 %v1406
    %2255 = vmatprep.subr.bf16.mxu0 0
    %2256 = vmatpush1.bf16.msra.mxu0 %v1415
    %2257 = vmatprep.subr.bf16.mxu0 0
    %2258 = vmatpush1.bf16.msra.mxu0 %v1424
    %2259 = vmatprep.subr.bf16.mxu0 0
    %2260 = vmatpush1.bf16.msra.mxu0 %v1433
    %2261 = vmatprep.subr.bf16.mxu0 0
    %2262 = vmatpush1.bf16.msra.mxu0 %v1442
    %2263 = vmatprep.subr.bf16.mxu0 0
    %2264 = vmatpush1.bf16.msra.mxu0 %v1451
    %2265 = vmatprep.subr.bf16.mxu0 0
    %2266 = vmatpush1.bf16.msra.mxu0 %v1460
    %2267 = vmatprep.subr.bf16.mxu0 0
    %2268 = vmatpush1.bf16.msra.mxu0 %v1469
    %2269 = vmatprep.subr.bf16.mxu0 0
    %2270 = vmatpush1.bf16.msra.mxu0 %v1478
    %2271 = vmatprep.mubr.bf16.mxu0 %v116
    %2272 = vmatmul.mubr.bf16.gmra.mrb[0].mxu0 %v115
    %v2273 = vpop.f32.mrb[0].mxu0
    %v2274 = vadd.f32 0.0, %v2273
    %v2275 = vpop.f32.mrb[0].mxu0
    %v2276 = vpop.f32.mrb[0].mxu0
    %v2277 = vpop.f32.mrb[0].mxu0
    %2278 = vdwg.mxu0
    %2279 = vmatprep.subr.bf16.mxu0 0
    %2280 = vmatpush1.bf16.msra.mxu0 %v1487
    %2281 = vmatprep.subr.bf16.mxu0 0
    %2282 = vmatpush1.bf16.msra.mxu0 %v1496
    %2283 = vmatprep.subr.bf16.mxu0 0
    %2284 = vmatpush1.bf16.msra.mxu0 %v1505
    %2285 = vmatprep.subr.bf16.mxu0 0
    %2286 = vmatpush1.bf16.msra.mxu0 %v1514
    %2287 = vmatprep.subr.bf16.mxu0 0
    %2288 = vmatpush1.bf16.msra.mxu0 %v1523
    %2289 = vmatprep.subr.bf16.mxu0 0
    %2290 = vmatpush1.bf16.msra.mxu0 %v1532
    %2291 = vmatprep.subr.bf16.mxu0 0
    %2292 = vmatpush1.bf16.msra.mxu0 %v1541
    %2293 = vmatprep.subr.bf16.mxu0 0
    %2294 = vmatpush1.bf16.msra.mxu0 %v1550
    %2295 = vmatprep.subr.bf16.mxu0 0
    %2296 = vmatpush1.bf16.msra.mxu0 %v1559
    %2297 = vmatprep.subr.bf16.mxu0 0
    %2298 = vmatpush1.bf16.msra.mxu0 %v1568
    %2299 = vmatprep.subr.bf16.mxu0 0
    %2300 = vmatpush1.bf16.msra.mxu0 %v1577
    %2301 = vmatprep.subr.bf16.mxu0 0
    %2302 = vmatpush1.bf16.msra.mxu0 %v1586
    %2303 = vmatprep.subr.bf16.mxu0 0
    %2304 = vmatpush1.bf16.msra.mxu0 %v1595
    %2305 = vmatprep.subr.bf16.mxu0 0
    %2306 = vmatpush1.bf16.msra.mxu0 %v1604
    %2307 = vmatprep.subr.bf16.mxu0 0
    %2308 = vmatpush1.bf16.msra.mxu0 %v1613
    %2309 = vmatprep.subr.bf16.mxu0 0
    %2310 = vmatpush1.bf16.msra.mxu0 %v1622
    %2311 = vmatprep.mubr.bf16.mxu0 %v118
    %2312 = vmatmul.mubr.bf16.gmra.mrb[0].mxu0 %v117
    %v2313 = vpop.f32.mrb[0].mxu0
    %v2314 = vadd.f32 %v2274, %v2313
    %v2315 = vpop.f32.mrb[0].mxu0
    %v2316 = vpop.f32.mrb[0].mxu0
    %v2317 = vpop.f32.mrb[0].mxu0
    %2318 = vdwg.mxu0
    %v2319 = vld [vmem:[%s1] sm:$0xff]
    %s2320 = scalar_lea.vmem %s1, 8
    %v2321 = vld [vmem:[%s2320] sm:$0xff]
    %vm2322 = vcmask 31744
    %v2324 = vsel %vm2322, %v2321, 0
    %vm2326 = vcmask 1043456
    %v2328 = vsel %vm2326, %v1989, 0
    %2330 = vmatprep.subr.mxu0 0.0
    %2331 = vmatpush1.msra.mxu0 %v2328
    %2332 = vmatprep.subr.mxu0 0.0
    %2333 = vmatpush1.msra.mxu0 0.0
    %2334 = vmatprep.subr.mxu0 0.0
    %2335 = vmatpush1.msra.mxu0 0.0
    %2336 = vmatprep.subr.mxu0 0.0
    %2337 = vmatpush1.msra.mxu0 0.0
    %2338 = vmatprep.subr.mxu0 0.0
    %2339 = vmatpush1.msra.mxu0 0.0
    %2340 = vmatprep.subr.mxu0 0.0
    %2341 = vmatpush1.msra.mxu0 0.0
    %2342 = vmatprep.subr.mxu0 0.0
    %2343 = vmatpush1.msra.mxu0 0.0
    %2344 = vmatprep.subr.mxu0 0.0
    %2345 = vmatpush1.msra.mxu0 0.0
    %2346 = vmatprep.subr.mxu0 0.0
    %2347 = vmatpush1.msra.mxu0 0.0
    %2348 = vmatprep.subr.mxu0 0.0
    %2349 = vmatpush1.msra.mxu0 0.0
    %2350 = vmatprep.subr.mxu0 0.0
    %2351 = vmatpush1.msra.mxu0 0.0
    %2352 = vmatprep.subr.mxu0 0.0
    %2353 = vmatpush1.msra.mxu0 0.0
    %2354 = vmatprep.subr.mxu0 0.0
    %2355 = vmatpush1.msra.mxu0 0.0
    %2356 = vmatprep.subr.mxu0 0.0
    %2357 = vmatpush1.msra.mxu0 0.0
    %2358 = vmatprep.subr.mxu0 0.0
    %2359 = vmatpush1.msra.mxu0 0.0
    %2360 = vmatprep.subr.mxu0 0.0
    %2361 = vmatpush1.msra.mxu0 0.0
    %2362 = vmatprep.subr.mxu0 0.0
    %2363 = vmatpush1.msra.mxu0 0.0
    %2364 = vmatprep.subr.mxu0 0.0
    %2365 = vmatpush1.msra.mxu0 0.0
    %2366 = vmatprep.subr.mxu0 0.0
    %2367 = vmatpush1.msra.mxu0 0.0
    %2368 = vmatprep.subr.mxu0 0.0
    %2369 = vmatpush1.msra.mxu0 0.0
    %2370 = vmatprep.subr.mxu0 0.0
    %2371 = vmatpush1.msra.mxu0 0.0
    %2372 = vmatprep.subr.mxu0 0.0
    %2373 = vmatpush1.msra.mxu0 0.0
    %2374 = vmatprep.subr.mxu0 0.0
    %2375 = vmatpush1.msra.mxu0 0.0
    %2376 = vmatprep.subr.mxu0 0.0
    %2377 = vmatpush1.msra.mxu0 0.0
    %2378 = vmatprep.subr.mxu0 0.0
    %2379 = vmatpush1.msra.mxu0 0.0
    %2380 = vmatprep.subr.mxu0 0.0
    %2381 = vmatpush1.msra.mxu0 0.0
    %2382 = vmatprep.subr.mxu0 0.0
    %2383 = vmatpush1.msra.mxu0 0.0
    %2384 = vmatprep.subr.mxu0 0.0
    %2385 = vmatpush1.msra.mxu0 0.0
    %2386 = vmatprep.subr.mxu0 0.0
    %2387 = vmatpush1.msra.mxu0 0.0
    %2388 = vmatprep.subr.mxu0 0.0
    %2389 = vmatpush1.msra.mxu0 0.0
    %2390 = vmatprep.subr.mxu0 0.0
    %2391 = vmatpush1.msra.mxu0 0.0
    %2392 = vmatprep.subr.mxu0 0.0
    %2393 = vmatpush1.msra.mxu0 0.0
    %2394 = vmatprep.mubr.f32.mxu0 0.0
    %2395 = vmatmul.mubr.f32.gmra.mrb[0].mxu0 %v2324
    %v2396 = vpop.f32.mrb[0].mxu0
    %v2397 = vadd.f32 0.0, %v2396
    %v2398 = vpop.f32.mrb[0].mxu0
    %2399 = vdwg.mxu0
    %v2401 = vsel %vm2322, %v2319, 0
    %v2404 = vsel %vm2326, %v1987, 0
    %2406 = vmatprep.subr.mxu0 0.0
    %2407 = vmatpush1.msra.mxu0 %v2404
    %2408 = vmatprep.subr.mxu0 0.0
    %2409 = vmatpush1.msra.mxu0 0.0
    %2410 = vmatprep.subr.mxu0 0.0
    %2411 = vmatpush1.msra.mxu0 0.0
    %2412 = vmatprep.subr.mxu0 0.0
    %2413 = vmatpush1.msra.mxu0 0.0
    %2414 = vmatprep.subr.mxu0 0.0
    %2415 = vmatpush1.msra.mxu0 0.0
    %2416 = vmatprep.subr.mxu0 0.0
    %2417 = vmatpush1.msra.mxu0 0.0
    %2418 = vmatprep.subr.mxu0 0.0
    %2419 = vmatpush1.msra.mxu0 0.0
    %2420 = vmatprep.subr.mxu0 0.0
    %2421 = vmatpush1.msra.mxu0 0.0
    %2422 = vmatprep.subr.mxu0 0.0
    %2423 = vmatpush1.msra.mxu0 0.0
    %2424 = vmatprep.subr.mxu0 0.0
    %2425 = vmatpush1.msra.mxu0 0.0
    %2426 = vmatprep.subr.mxu0 0.0
    %2427 = vmatpush1.msra.mxu0 0.0
    %2428 = vmatprep.subr.mxu0 0.0
    %2429 = vmatpush1.msra.mxu0 0.0
    %2430 = vmatprep.subr.mxu0 0.0
    %2431 = vmatpush1.msra.mxu0 0.0
    %2432 = vmatprep.subr.mxu0 0.0
    %2433 = vmatpush1.msra.mxu0 0.0
    %2434 = vmatprep.subr.mxu0 0.0
    %2435 = vmatpush1.msra.mxu0 0.0
    %2436 = vmatprep.subr.mxu0 0.0
    %2437 = vmatpush1.msra.mxu0 0.0
    %2438 = vmatprep.subr.mxu0 0.0
    %2439 = vmatpush1.msra.mxu0 0.0
    %2440 = vmatprep.subr.mxu0 0.0
    %2441 = vmatpush1.msra.mxu0 0.0
    %2442 = vmatprep.subr.mxu0 0.0
    %2443 = vmatpush1.msra.mxu0 0.0
    %2444 = vmatprep.subr.mxu0 0.0
    %2445 = vmatpush1.msra.mxu0 0.0
    %2446 = vmatprep.subr.mxu0 0.0
    %2447 = vmatpush1.msra.mxu0 0.0
    %2448 = vmatprep.subr.mxu0 0.0
    %2449 = vmatpush1.msra.mxu0 0.0
    %2450 = vmatprep.subr.mxu0 0.0
    %2451 = vmatpush1.msra.mxu0 0.0
    %2452 = vmatprep.subr.mxu0 0.0
    %2453 = vmatpush1.msra.mxu0 0.0
    %2454 = vmatprep.subr.mxu0 0.0
    %2455 = vmatpush1.msra.mxu0 0.0
    %2456 = vmatprep.subr.mxu0 0.0
    %2457 = vmatpush1.msra.mxu0 0.0
    %2458 = vmatprep.subr.mxu0 0.0
    %2459 = vmatpush1.msra.mxu0 0.0
    %2460 = vmatprep.subr.mxu0 0.0
    %2461 = vmatpush1.msra.mxu0 0.0
    %2462 = vmatprep.subr.mxu0 0.0
    %2463 = vmatpush1.msra.mxu0 0.0
    %2464 = vmatprep.subr.mxu0 0.0
    %2465 = vmatpush1.msra.mxu0 0.0
    %2466 = vmatprep.subr.mxu0 0.0
    %2467 = vmatpush1.msra.mxu0 0.0
    %2468 = vmatprep.subr.mxu0 0.0
    %2469 = vmatpush1.msra.mxu0 0.0
    %2470 = vmatprep.mubr.f32.mxu0 0.0
    %2471 = vmatmul.mubr.f32.gmra.mrb[0].mxu0 %v2401
    %v2472 = vpop.f32.mrb[0].mxu0
    %v2473 = vadd.f32 %v2397, %v2472
    %v2474 = vpop.f32.mrb[0].mxu0
    %2475 = vdwg.mxu0
    %s2476 = scalar_lea.vmem %s1, 16
    %v2477 = vld [vmem:[%s2476] sm:$0xff]
    %v2479 = vsel %vm2322, %v2477, 0
    %v2482 = vsel %vm2326, %v2069, 0
    %2484 = vmatprep.subr.mxu0 0.0
    %2485 = vmatpush1.msra.mxu0 %v2482
    %2486 = vmatprep.subr.mxu0 0.0
    %2487 = vmatpush1.msra.mxu0 0.0
    %2488 = vmatprep.subr.mxu0 0.0
    %2489 = vmatpush1.msra.mxu0 0.0
    %2490 = vmatprep.subr.mxu0 0.0
    %2491 = vmatpush1.msra.mxu0 0.0
    %2492 = vmatprep.subr.mxu0 0.0
    %2493 = vmatpush1.msra.mxu0 0.0
    %2494 = vmatprep.subr.mxu0 0.0
    %2495 = vmatpush1.msra.mxu0 0.0
    %2496 = vmatprep.subr.mxu0 0.0
    %2497 = vmatpush1.msra.mxu0 0.0
    %2498 = vmatprep.subr.mxu0 0.0
    %2499 = vmatpush1.msra.mxu0 0.0
    %2500 = vmatprep.subr.mxu0 0.0
    %2501 = vmatpush1.msra.mxu0 0.0
    %2502 = vmatprep.subr.mxu0 0.0
    %2503 = vmatpush1.msra.mxu0 0.0
    %2504 = vmatprep.subr.mxu0 0.0
    %2505 = vmatpush1.msra.mxu0 0.0
    %2506 = vmatprep.subr.mxu0 0.0
    %2507 = vmatpush1.msra.mxu0 0.0
    %2508 = vmatprep.subr.mxu0 0.0
    %2509 = vmatpush1.msra.mxu0 0.0
    %2510 = vmatprep.subr.mxu0 0.0
    %2511 = vmatpush1.msra.mxu0 0.0
    %2512 = vmatprep.subr.mxu0 0.0
    %2513 = vmatpush1.msra.mxu0 0.0
    %2514 = vmatprep.subr.mxu0 0.0
    %2515 = vmatpush1.msra.mxu0 0.0
    %2516 = vmatprep.subr.mxu0 0.0
    %2517 = vmatpush1.msra.mxu0 0.0
    %2518 = vmatprep.subr.mxu0 0.0
    %2519 = vmatpush1.msra.mxu0 0.0
    %2520 = vmatprep.subr.mxu0 0.0
    %2521 = vmatpush1.msra.mxu0 0.0
    %2522 = vmatprep.subr.mxu0 0.0
    %2523 = vmatpush1.msra.mxu0 0.0
    %2524 = vmatprep.subr.mxu0 0.0
    %2525 = vmatpush1.msra.mxu0 0.0
    %2526 = vmatprep.subr.mxu0 0.0
    %2527 = vmatpush1.msra.mxu0 0.0
    %2528 = vmatprep.subr.mxu0 0.0
    %2529 = vmatpush1.msra.mxu0 0.0
    %2530 = vmatprep.subr.mxu0 0.0
    %2531 = vmatpush1.msra.mxu0 0.0
    %2532 = vmatprep.subr.mxu0 0.0
    %2533 = vmatpush1.msra.mxu0 0.0
    %2534 = vmatprep.subr.mxu0 0.0
    %2535 = vmatpush1.msra.mxu0 0.0
    %2536 = vmatprep.subr.mxu0 0.0
    %2537 = vmatpush1.msra.mxu0 0.0
    %2538 = vmatprep.subr.mxu0 0.0
    %2539 = vmatpush1.msra.mxu0 0.0
    %2540 = vmatprep.subr.mxu0 0.0
    %2541 = vmatpush1.msra.mxu0 0.0
    %2542 = vmatprep.subr.mxu0 0.0
    %2543 = vmatpush1.msra.mxu0 0.0
    %2544 = vmatprep.subr.mxu0 0.0
    %2545 = vmatpush1.msra.mxu0 0.0
    %2546 = vmatprep.subr.mxu0 0.0
    %2547 = vmatpush1.msra.mxu0 0.0
    %2548 = vmatprep.mubr.f32.mxu0 0.0
    %2549 = vmatmul.mubr.f32.gmra.mrb[0].mxu0 %v2479
    %v2550 = vpop.f32.mrb[0].mxu0
    %v2551 = vadd.f32 0.0, %v2550
    %v2552 = vpop.f32.mrb[0].mxu0
    %2553 = vdwg.mxu0
    %v2554 = vadd.f32 %v2473, %v2551
    %s2555 = scalar_lea.vmem %s1, 24
    %v2556 = vld [vmem:[%s2555] sm:$0xff]
    %v2558 = vsel %vm2322, %v2556, 0
    %v2561 = vsel %vm2326, %v2071, 0
    %2563 = vmatprep.subr.mxu0 0.0
    %2564 = vmatpush1.msra.mxu0 %v2561
    %2565 = vmatprep.subr.mxu0 0.0
    %2566 = vmatpush1.msra.mxu0 0.0
    %2567 = vmatprep.subr.mxu0 0.0
    %2568 = vmatpush1.msra.mxu0 0.0
    %2569 = vmatprep.subr.mxu0 0.0
    %2570 = vmatpush1.msra.mxu0 0.0
    %2571 = vmatprep.subr.mxu0 0.0
    %2572 = vmatpush1.msra.mxu0 0.0
    %2573 = vmatprep.subr.mxu0 0.0
    %2574 = vmatpush1.msra.mxu0 0.0
    %2575 = vmatprep.subr.mxu0 0.0
    %2576 = vmatpush1.msra.mxu0 0.0
    %2577 = vmatprep.subr.mxu0 0.0
    %2578 = vmatpush1.msra.mxu0 0.0
    %2579 = vmatprep.subr.mxu0 0.0
    %2580 = vmatpush1.msra.mxu0 0.0
    %2581 = vmatprep.subr.mxu0 0.0
    %2582 = vmatpush1.msra.mxu0 0.0
    %2583 = vmatprep.subr.mxu0 0.0
    %2584 = vmatpush1.msra.mxu0 0.0
    %2585 = vmatprep.subr.mxu0 0.0
    %2586 = vmatpush1.msra.mxu0 0.0
    %2587 = vmatprep.subr.mxu0 0.0
    %2588 = vmatpush1.msra.mxu0 0.0
    %2589 = vmatprep.subr.mxu0 0.0
    %2590 = vmatpush1.msra.mxu0 0.0
    %2591 = vmatprep.subr.mxu0 0.0
    %2592 = vmatpush1.msra.mxu0 0.0
    %2593 = vmatprep.subr.mxu0 0.0
    %2594 = vmatpush1.msra.mxu0 0.0
    %2595 = vmatprep.subr.mxu0 0.0
    %2596 = vmatpush1.msra.mxu0 0.0
    %2597 = vmatprep.subr.mxu0 0.0
    %2598 = vmatpush1.msra.mxu0 0.0
    %2599 = vmatprep.subr.mxu0 0.0
    %2600 = vmatpush1.msra.mxu0 0.0
    %2601 = vmatprep.subr.mxu0 0.0
    %2602 = vmatpush1.msra.mxu0 0.0
    %2603 = vmatprep.subr.mxu0 0.0
    %2604 = vmatpush1.msra.mxu0 0.0
    %2605 = vmatprep.subr.mxu0 0.0
    %2606 = vmatpush1.msra.mxu0 0.0
    %2607 = vmatprep.subr.mxu0 0.0
    %2608 = vmatpush1.msra.mxu0 0.0
    %2609 = vmatprep.subr.mxu0 0.0
    %2610 = vmatpush1.msra.mxu0 0.0
    %2611 = vmatprep.subr.mxu0 0.0
    %2612 = vmatpush1.msra.mxu0 0.0
    %2613 = vmatprep.subr.mxu0 0.0
    %2614 = vmatpush1.msra.mxu0 0.0
    %2615 = vmatprep.subr.mxu0 0.0
    %2616 = vmatpush1.msra.mxu0 0.0
    %2617 = vmatprep.subr.mxu0 0.0
    %2618 = vmatpush1.msra.mxu0 0.0
    %2619 = vmatprep.subr.mxu0 0.0
    %2620 = vmatpush1.msra.mxu0 0.0
    %2621 = vmatprep.subr.mxu0 0.0
    %2622 = vmatpush1.msra.mxu0 0.0
    %2623 = vmatprep.subr.mxu0 0.0
    %2624 = vmatpush1.msra.mxu0 0.0
    %2625 = vmatprep.subr.mxu0 0.0
    %2626 = vmatpush1.msra.mxu0 0.0
    %2627 = vmatprep.mubr.f32.mxu0 0.0
    %2628 = vmatmul.mubr.f32.gmra.mrb[0].mxu0 %v2558
    %v2629 = vpop.f32.mrb[0].mxu0
    %v2630 = vadd.f32 0.0, %v2629
    %v2631 = vpop.f32.mrb[0].mxu0
    %2632 = vdwg.mxu0
    %v2633 = vadd.f32 %v2554, %v2630
    %s2634 = scalar_lea.vmem %s1, 32
    %v2635 = vld [vmem:[%s2634] sm:$0xff]
    %v2637 = vsel %vm2322, %v2635, 0
    %v2640 = vsel %vm2326, %v2151, 0
    %2642 = vmatprep.subr.mxu0 0.0
    %2643 = vmatpush1.msra.mxu0 %v2640
    %2644 = vmatprep.subr.mxu0 0.0
    %2645 = vmatpush1.msra.mxu0 0.0
    %2646 = vmatprep.subr.mxu0 0.0
    %2647 = vmatpush1.msra.mxu0 0.0
    %2648 = vmatprep.subr.mxu0 0.0
    %2649 = vmatpush1.msra.mxu0 0.0
    %2650 = vmatprep.subr.mxu0 0.0
    %2651 = vmatpush1.msra.mxu0 0.0
    %2652 = vmatprep.subr.mxu0 0.0
    %2653 = vmatpush1.msra.mxu0 0.0
    %2654 = vmatprep.subr.mxu0 0.0
    %2655 = vmatpush1.msra.mxu0 0.0
    %2656 = vmatprep.subr.mxu0 0.0
    %2657 = vmatpush1.msra.mxu0 0.0
    %2658 = vmatprep.subr.mxu0 0.0
    %2659 = vmatpush1.msra.mxu0 0.0
    %2660 = vmatprep.subr.mxu0 0.0
    %2661 = vmatpush1.msra.mxu0 0.0
    %2662 = vmatprep.subr.mxu0 0.0
    %2663 = vmatpush1.msra.mxu0 0.0
    %2664 = vmatprep.subr.mxu0 0.0
    %2665 = vmatpush1.msra.mxu0 0.0
    %2666 = vmatprep.subr.mxu0 0.0
    %2667 = vmatpush1.msra.mxu0 0.0
    %2668 = vmatprep.subr.mxu0 0.0
    %2669 = vmatpush1.msra.mxu0 0.0
    %2670 = vmatprep.subr.mxu0 0.0
    %2671 = vmatpush1.msra.mxu0 0.0
    %2672 = vmatprep.subr.mxu0 0.0
    %2673 = vmatpush1.msra.mxu0 0.0
    %2674 = vmatprep.subr.mxu0 0.0
    %2675 = vmatpush1.msra.mxu0 0.0
    %2676 = vmatprep.subr.mxu0 0.0
    %2677 = vmatpush1.msra.mxu0 0.0
    %2678 = vmatprep.subr.mxu0 0.0
    %2679 = vmatpush1.msra.mxu0 0.0
    %2680 = vmatprep.subr.mxu0 0.0
    %2681 = vmatpush1.msra.mxu0 0.0
    %2682 = vmatprep.subr.mxu0 0.0
    %2683 = vmatpush1.msra.mxu0 0.0
    %2684 = vmatprep.subr.mxu0 0.0
    %2685 = vmatpush1.msra.mxu0 0.0
    %2686 = vmatprep.subr.mxu0 0.0
    %2687 = vmatpush1.msra.mxu0 0.0
    %2688 = vmatprep.subr.mxu0 0.0
    %2689 = vmatpush1.msra.mxu0 0.0
    %2690 = vmatprep.subr.mxu0 0.0
    %2691 = vmatpush1.msra.mxu0 0.0
    %2692 = vmatprep.subr.mxu0 0.0
    %2693 = vmatpush1.msra.mxu0 0.0
    %2694 = vmatprep.subr.mxu0 0.0
    %2695 = vmatpush1.msra.mxu0 0.0
    %2696 = vmatprep.subr.mxu0 0.0
    %2697 = vmatpush1.msra.mxu0 0.0
    %2698 = vmatprep.subr.mxu0 0.0
    %2699 = vmatpush1.msra.mxu0 0.0
    %2700 = vmatprep.subr.mxu0 0.0
    %2701 = vmatpush1.msra.mxu0 0.0
    %2702 = vmatprep.subr.mxu0 0.0
    %2703 = vmatpush1.msra.mxu0 0.0
    %2704 = vmatprep.subr.mxu0 0.0
    %2705 = vmatpush1.msra.mxu0 0.0
    %2706 = vmatprep.mubr.f32.mxu0 0.0
    %2707 = vmatmul.mubr.f32.gmra.mrb[0].mxu0 %v2637
    %v2708 = vpop.f32.mrb[0].mxu0
    %v2709 = vadd.f32 0.0, %v2708
    %v2710 = vpop.f32.mrb[0].mxu0
    %2711 = vdwg.mxu0
    %v2712 = vadd.f32 %v2633, %v2709
    %s2713 = scalar_lea.vmem %s1, 40
    %v2714 = vld [vmem:[%s2713] sm:$0xff]
    %v2716 = vsel %vm2322, %v2714, 0
    %v2719 = vsel %vm2326, %v2153, 0
    %2721 = vmatprep.subr.mxu0 0.0
    %2722 = vmatpush1.msra.mxu0 %v2719
    %2723 = vmatprep.subr.mxu0 0.0
    %2724 = vmatpush1.msra.mxu0 0.0
    %2725 = vmatprep.subr.mxu0 0.0
    %2726 = vmatpush1.msra.mxu0 0.0
    %2727 = vmatprep.subr.mxu0 0.0
    %2728 = vmatpush1.msra.mxu0 0.0
    %2729 = vmatprep.subr.mxu0 0.0
    %2730 = vmatpush1.msra.mxu0 0.0
    %2731 = vmatprep.subr.mxu0 0.0
    %2732 = vmatpush1.msra.mxu0 0.0
    %2733 = vmatprep.subr.mxu0 0.0
    %2734 = vmatpush1.msra.mxu0 0.0
    %2735 = vmatprep.subr.mxu0 0.0
    %2736 = vmatpush1.msra.mxu0 0.0
    %2737 = vmatprep.subr.mxu0 0.0
    %2738 = vmatpush1.msra.mxu0 0.0
    %2739 = vmatprep.subr.mxu0 0.0
    %2740 = vmatpush1.msra.mxu0 0.0
    %2741 = vmatprep.subr.mxu0 0.0
    %2742 = vmatpush1.msra.mxu0 0.0
    %2743 = vmatprep.subr.mxu0 0.0
    %2744 = vmatpush1.msra.mxu0 0.0
    %2745 = vmatprep.subr.mxu0 0.0
    %2746 = vmatpush1.msra.mxu0 0.0
    %2747 = vmatprep.subr.mxu0 0.0
    %2748 = vmatpush1.msra.mxu0 0.0
    %2749 = vmatprep.subr.mxu0 0.0
    %2750 = vmatpush1.msra.mxu0 0.0
    %2751 = vmatprep.subr.mxu0 0.0
    %2752 = vmatpush1.msra.mxu0 0.0
    %2753 = vmatprep.subr.mxu0 0.0
    %2754 = vmatpush1.msra.mxu0 0.0
    %2755 = vmatprep.subr.mxu0 0.0
    %2756 = vmatpush1.msra.mxu0 0.0
    %2757 = vmatprep.subr.mxu0 0.0
    %2758 = vmatpush1.msra.mxu0 0.0
    %2759 = vmatprep.subr.mxu0 0.0
    %2760 = vmatpush1.msra.mxu0 0.0
    %2761 = vmatprep.subr.mxu0 0.0
    %2762 = vmatpush1.msra.mxu0 0.0
    %2763 = vmatprep.subr.mxu0 0.0
    %2764 = vmatpush1.msra.mxu0 0.0
    %2765 = vmatprep.subr.mxu0 0.0
    %2766 = vmatpush1.msra.mxu0 0.0
    %2767 = vmatprep.subr.mxu0 0.0
    %2768 = vmatpush1.msra.mxu0 0.0
    %2769 = vmatprep.subr.mxu0 0.0
    %2770 = vmatpush1.msra.mxu0 0.0
    %2771 = vmatprep.subr.mxu0 0.0
    %2772 = vmatpush1.msra.mxu0 0.0
    %2773 = vmatprep.subr.mxu0 0.0
    %2774 = vmatpush1.msra.mxu0 0.0
    %2775 = vmatprep.subr.mxu0 0.0
    %2776 = vmatpush1.msra.mxu0 0.0
    %2777 = vmatprep.subr.mxu0 0.0
    %2778 = vmatpush1.msra.mxu0 0.0
    %2779 = vmatprep.subr.mxu0 0.0
    %2780 = vmatpush1.msra.mxu0 0.0
    %2781 = vmatprep.subr.mxu0 0.0
    %2782 = vmatpush1.msra.mxu0 0.0
    %2783 = vmatprep.subr.mxu0 0.0
    %2784 = vmatpush1.msra.mxu0 0.0
    %2785 = vmatprep.mubr.f32.mxu0 0.0
    %2786 = vmatmul.mubr.f32.gmra.mrb[0].mxu0 %v2716
    %v2787 = vpop.f32.mrb[0].mxu0
    %v2788 = vadd.f32 0.0, %v2787
    %v2789 = vpop.f32.mrb[0].mxu0
    %2790 = vdwg.mxu0
    %v2791 = vadd.f32 %v2712, %v2788
    %s2792 = scalar_lea.vmem %s1, 48
    %v2793 = vld [vmem:[%s2792] sm:$0xff]
    %v2795 = vsel %vm2322, %v2793, 0
    %v2798 = vsel %vm2326, %v2233, 0
    %2800 = vmatprep.subr.mxu0 0.0
    %2801 = vmatpush1.msra.mxu0 %v2798
    %2802 = vmatprep.subr.mxu0 0.0
    %2803 = vmatpush1.msra.mxu0 0.0
    %2804 = vmatprep.subr.mxu0 0.0
    %2805 = vmatpush1.msra.mxu0 0.0
    %2806 = vmatprep.subr.mxu0 0.0
    %2807 = vmatpush1.msra.mxu0 0.0
    %2808 = vmatprep.subr.mxu0 0.0
    %2809 = vmatpush1.msra.mxu0 0.0
    %2810 = vmatprep.subr.mxu0 0.0
    %2811 = vmatpush1.msra.mxu0 0.0
    %2812 = vmatprep.subr.mxu0 0.0
    %2813 = vmatpush1.msra.mxu0 0.0
    %2814 = vmatprep.subr.mxu0 0.0
    %2815 = vmatpush1.msra.mxu0 0.0
    %2816 = vmatprep.subr.mxu0 0.0
    %2817 = vmatpush1.msra.mxu0 0.0
    %2818 = vmatprep.subr.mxu0 0.0
    %2819 = vmatpush1.msra.mxu0 0.0
    %2820 = vmatprep.subr.mxu0 0.0
    %2821 = vmatpush1.msra.mxu0 0.0
    %2822 = vmatprep.subr.mxu0 0.0
    %2823 = vmatpush1.msra.mxu0 0.0
    %2824 = vmatprep.subr.mxu0 0.0
    %2825 = vmatpush1.msra.mxu0 0.0
    %2826 = vmatprep.subr.mxu0 0.0
    %2827 = vmatpush1.msra.mxu0 0.0
    %2828 = vmatprep.subr.mxu0 0.0
    %2829 = vmatpush1.msra.mxu0 0.0
    %2830 = vmatprep.subr.mxu0 0.0
    %2831 = vmatpush1.msra.mxu0 0.0
    %2832 = vmatprep.subr.mxu0 0.0
    %2833 = vmatpush1.msra.mxu0 0.0
    %2834 = vmatprep.subr.mxu0 0.0
    %2835 = vmatpush1.msra.mxu0 0.0
    %2836 = vmatprep.subr.mxu0 0.0
    %2837 = vmatpush1.msra.mxu0 0.0
    %2838 = vmatprep.subr.mxu0 0.0
    %2839 = vmatpush1.msra.mxu0 0.0
    %2840 = vmatprep.subr.mxu0 0.0
    %2841 = vmatpush1.msra.mxu0 0.0
    %2842 = vmatprep.subr.mxu0 0.0
    %2843 = vmatpush1.msra.mxu0 0.0
    %2844 = vmatprep.subr.mxu0 0.0
    %2845 = vmatpush1.msra.mxu0 0.0
    %2846 = vmatprep.subr.mxu0 0.0
    %2847 = vmatpush1.msra.mxu0 0.0
    %2848 = vmatprep.subr.mxu0 0.0
    %2849 = vmatpush1.msra.mxu0 0.0
    %2850 = vmatprep.subr.mxu0 0.0
    %2851 = vmatpush1.msra.mxu0 0.0
    %2852 = vmatprep.subr.mxu0 0.0
    %2853 = vmatpush1.msra.mxu0 0.0
    %2854 = vmatprep.subr.mxu0 0.0
    %2855 = vmatpush1.msra.mxu0 0.0
    %2856 = vmatprep.subr.mxu0 0.0
    %2857 = vmatpush1.msra.mxu0 0.0
    %2858 = vmatprep.subr.mxu0 0.0
    %2859 = vmatpush1.msra.mxu0 0.0
    %2860 = vmatprep.subr.mxu0 0.0
    %2861 = vmatpush1.msra.mxu0 0.0
    %2862 = vmatprep.subr.mxu0 0.0
    %2863 = vmatpush1.msra.mxu0 0.0
    %2864 = vmatprep.mubr.f32.mxu0 0.0
    %2865 = vmatmul.mubr.f32.gmra.mrb[0].mxu0 %v2795
    %v2866 = vpop.f32.mrb[0].mxu0
    %v2867 = vadd.f32 0.0, %v2866
    %v2868 = vpop.f32.mrb[0].mxu0
    %2869 = vdwg.mxu0
    %v2870 = vadd.f32 %v2791, %v2867
    %s2871 = scalar_lea.vmem %s1, 56
    %v2872 = vld [vmem:[%s2871] sm:$0xff]
    %v2874 = vsel %vm2322, %v2872, 0
    %v2877 = vsel %vm2326, %v2235, 0
    %2879 = vmatprep.subr.mxu0 0.0
    %2880 = vmatpush1.msra.mxu0 %v2877
    %2881 = vmatprep.subr.mxu0 0.0
    %2882 = vmatpush1.msra.mxu0 0.0
    %2883 = vmatprep.subr.mxu0 0.0
    %2884 = vmatpush1.msra.mxu0 0.0
    %2885 = vmatprep.subr.mxu0 0.0
    %2886 = vmatpush1.msra.mxu0 0.0
    %2887 = vmatprep.subr.mxu0 0.0
    %2888 = vmatpush1.msra.mxu0 0.0
    %2889 = vmatprep.subr.mxu0 0.0
    %2890 = vmatpush1.msra.mxu0 0.0
    %2891 = vmatprep.subr.mxu0 0.0
    %2892 = vmatpush1.msra.mxu0 0.0
    %2893 = vmatprep.subr.mxu0 0.0
    %2894 = vmatpush1.msra.mxu0 0.0
    %2895 = vmatprep.subr.mxu0 0.0
    %2896 = vmatpush1.msra.mxu0 0.0
    %2897 = vmatprep.subr.mxu0 0.0
    %2898 = vmatpush1.msra.mxu0 0.0
    %2899 = vmatprep.subr.mxu0 0.0
    %2900 = vmatpush1.msra.mxu0 0.0
    %2901 = vmatprep.subr.mxu0 0.0
    %2902 = vmatpush1.msra.mxu0 0.0
    %2903 = vmatprep.subr.mxu0 0.0
    %2904 = vmatpush1.msra.mxu0 0.0
    %2905 = vmatprep.subr.mxu0 0.0
    %2906 = vmatpush1.msra.mxu0 0.0
    %2907 = vmatprep.subr.mxu0 0.0
    %2908 = vmatpush1.msra.mxu0 0.0
    %2909 = vmatprep.subr.mxu0 0.0
    %2910 = vmatpush1.msra.mxu0 0.0
    %2911 = vmatprep.subr.mxu0 0.0
    %2912 = vmatpush1.msra.mxu0 0.0
    %2913 = vmatprep.subr.mxu0 0.0
    %2914 = vmatpush1.msra.mxu0 0.0
    %2915 = vmatprep.subr.mxu0 0.0
    %2916 = vmatpush1.msra.mxu0 0.0
    %2917 = vmatprep.subr.mxu0 0.0
    %2918 = vmatpush1.msra.mxu0 0.0
    %2919 = vmatprep.subr.mxu0 0.0
    %2920 = vmatpush1.msra.mxu0 0.0
    %2921 = vmatprep.subr.mxu0 0.0
    %2922 = vmatpush1.msra.mxu0 0.0
    %2923 = vmatprep.subr.mxu0 0.0
    %2924 = vmatpush1.msra.mxu0 0.0
    %2925 = vmatprep.subr.mxu0 0.0
    %2926 = vmatpush1.msra.mxu0 0.0
    %2927 = vmatprep.subr.mxu0 0.0
    %2928 = vmatpush1.msra.mxu0 0.0
    %2929 = vmatprep.subr.mxu0 0.0
    %2930 = vmatpush1.msra.mxu0 0.0
    %2931 = vmatprep.subr.mxu0 0.0
    %2932 = vmatpush1.msra.mxu0 0.0
    %2933 = vmatprep.subr.mxu0 0.0
    %2934 = vmatpush1.msra.mxu0 0.0
    %2935 = vmatprep.subr.mxu0 0.0
    %2936 = vmatpush1.msra.mxu0 0.0
    %2937 = vmatprep.subr.mxu0 0.0
    %2938 = vmatpush1.msra.mxu0 0.0
    %2939 = vmatprep.subr.mxu0 0.0
    %2940 = vmatpush1.msra.mxu0 0.0
    %2941 = vmatprep.subr.mxu0 0.0
    %2942 = vmatpush1.msra.mxu0 0.0
    %2943 = vmatprep.mubr.f32.mxu0 0.0
    %2944 = vmatmul.mubr.f32.gmra.mrb[0].mxu0 %v2874
    %v2945 = vpop.f32.mrb[0].mxu0
    %v2946 = vadd.f32 0.0, %v2945
    %v2947 = vpop.f32.mrb[0].mxu0
    %2948 = vdwg.mxu0
    %v2949 = vadd.f32 %v2870, %v2946
    %s2950 = scalar_lea.vmem %s1, 64
    %v2951 = vld [vmem:[%s2950] sm:$0xff]
    %v2953 = vsel %vm2322, %v2951, 0
    %v2956 = vsel %vm2326, %v2314, 0
    %2958 = vmatprep.subr.mxu0 0.0
    %2959 = vmatpush1.msra.mxu0 %v2956
    %2960 = vmatprep.subr.mxu0 0.0
    %2961 = vmatpush1.msra.mxu0 0.0
    %2962 = vmatprep.subr.mxu0 0.0
    %2963 = vmatpush1.msra.mxu0 0.0
    %2964 = vmatprep.subr.mxu0 0.0
    %2965 = vmatpush1.msra.mxu0 0.0
    %2966 = vmatprep.subr.mxu0 0.0
    %2967 = vmatpush1.msra.mxu0 0.0
    %2968 = vmatprep.subr.mxu0 0.0
    %2969 = vmatpush1.msra.mxu0 0.0
    %2970 = vmatprep.subr.mxu0 0.0
    %2971 = vmatpush1.msra.mxu0 0.0
    %2972 = vmatprep.subr.mxu0 0.0
    %2973 = vmatpush1.msra.mxu0 0.0
    %2974 = vmatprep.subr.mxu0 0.0
    %2975 = vmatpush1.msra.mxu0 0.0
    %2976 = vmatprep.subr.mxu0 0.0
    %2977 = vmatpush1.msra.mxu0 0.0
    %2978 = vmatprep.subr.mxu0 0.0
    %2979 = vmatpush1.msra.mxu0 0.0
    %2980 = vmatprep.subr.mxu0 0.0
    %2981 = vmatpush1.msra.mxu0 0.0
    %2982 = vmatprep.subr.mxu0 0.0
    %2983 = vmatpush1.msra.mxu0 0.0
    %2984 = vmatprep.subr.mxu0 0.0
    %2985 = vmatpush1.msra.mxu0 0.0
    %2986 = vmatprep.subr.mxu0 0.0
    %2987 = vmatpush1.msra.mxu0 0.0
    %2988 = vmatprep.subr.mxu0 0.0
    %2989 = vmatpush1.msra.mxu0 0.0
    %2990 = vmatprep.subr.mxu0 0.0
    %2991 = vmatpush1.msra.mxu0 0.0
    %2992 = vmatprep.subr.mxu0 0.0
    %2993 = vmatpush1.msra.mxu0 0.0
    %2994 = vmatprep.subr.mxu0 0.0
    %2995 = vmatpush1.msra.mxu0 0.0
    %2996 = vmatprep.subr.mxu0 0.0
    %2997 = vmatpush1.msra.mxu0 0.0
    %2998 = vmatprep.subr.mxu0 0.0
    %2999 = vmatpush1.msra.mxu0 0.0
    %3000 = vmatprep.subr.mxu0 0.0
    %3001 = vmatpush1.msra.mxu0 0.0
    %3002 = vmatprep.subr.mxu0 0.0
    %3003 = vmatpush1.msra.mxu0 0.0
    %3004 = vmatprep.subr.mxu0 0.0
    %3005 = vmatpush1.msra.mxu0 0.0
    %3006 = vmatprep.subr.mxu0 0.0
    %3007 = vmatpush1.msra.mxu0 0.0
    %3008 = vmatprep.subr.mxu0 0.0
    %3009 = vmatpush1.msra.mxu0 0.0
    %3010 = vmatprep.subr.mxu0 0.0
    %3011 = vmatpush1.msra.mxu0 0.0
    %3012 = vmatprep.subr.mxu0 0.0
    %3013 = vmatpush1.msra.mxu0 0.0
    %3014 = vmatprep.subr.mxu0 0.0
    %3015 = vmatpush1.msra.mxu0 0.0
    %3016 = vmatprep.subr.mxu0 0.0
    %3017 = vmatpush1.msra.mxu0 0.0
    %3018 = vmatprep.subr.mxu0 0.0
    %3019 = vmatpush1.msra.mxu0 0.0
    %3020 = vmatprep.subr.mxu0 0.0
    %3021 = vmatpush1.msra.mxu0 0.0
    %3022 = vmatprep.mubr.f32.mxu0 0.0
    %3023 = vmatmul.mubr.f32.gmra.mrb[0].mxu0 %v2953
    %v3024 = vpop.f32.mrb[0].mxu0
    %v3025 = vadd.f32 0.0, %v3024
    %v3026 = vpop.f32.mrb[0].mxu0
    %3027 = vdwg.mxu0
    %v3028 = vadd.f32 %v2949, %v3025
    %v3029 = vld [vmem:[%s2] sm:$0xff]
    %3031 = vset.pattern.permute.xlu0 0
    %3032 = vperm.xlu0 %3031, %v3029
    %v3033 = vpop.permute.xlu0 %3032
    %v3035 = vadd.f32 %v3028, %v3033
    %v3036 = vxor.u32 %v3035, 2147483648
    %v3037 = vmul.f32 %v3036, 1.442695
    %v3038 = vpow.pop %v3037
    %v3039 = vadd.f32 %v3038, 1.0
    %v3040 = vrcp.pop %v3039
    %v3041 = vmul.f32 1.0, %v3040
    %v3042 = vmul.f32 %v3035, %v3041
    %v3043 = vpack.c.bf16 %v3042, %v3042
    %v3044 = vld [vmem:[%s6] sm:$0xff]
    %v3045 = vld [vmem:[%s6 + $0x8] sm:$0xf]
    %v3046 = vld [vmem:[%s6 + $0xc] sm:$0xff]
    %v3047 = vld [vmem:[%s6 + $0x14] sm:$0xf]
    %v3048 = vld [vmem:[%s6 + $0x18] sm:$0xff]
    %v3049 = vld [vmem:[%s6 + $0x20] sm:$0xf]
    %v3050 = vld [vmem:[%s6 + $0x24] sm:$0xff]
    %v3051 = vld [vmem:[%s6 + $0x2c] sm:$0xf]
    %v3052 = vld [vmem:[%s6 + $0x30] sm:$0xff]
    %v3053 = vld [vmem:[%s6 + $0x38] sm:$0xf]
    %v3054 = vld [vmem:[%s6 + $0x3c] sm:$0xff]
    %v3055 = vld [vmem:[%s6 + $0x44] sm:$0xf]
    %v3056 = vld [vmem:[%s6 + $0x48] sm:$0xff]
    %v3057 = vld [vmem:[%s6 + $0x50] sm:$0xf]
    %v3058 = vld [vmem:[%s6 + $0x54] sm:$0xff]
    %v3059 = vld [vmem:[%s6 + $0x5c] sm:$0xf]
    %v3060 = vld [vmem:[%s6 + $0x60] sm:$0xff]
    %v3061 = vld [vmem:[%s6 + $0x68] sm:$0xf]
    %v3062 = vld [vmem:[%s6 + $0x6c] sm:$0xff]
    %v3063 = vld [vmem:[%s6 + $0x74] sm:$0xf]
    %v3064 = vld [vmem:[%s6 + $0x78] sm:$0xff]
    %v3065 = vld [vmem:[%s6 + $0x80] sm:$0xf]
    %v3066 = vld [vmem:[%s6 + $0x84] sm:$0xff]
    %v3067 = vld [vmem:[%s6 + $0x8c] sm:$0xf]
    %v3068 = vld [vmem:[%s6 + $0x90] sm:$0xff]
    %v3069 = vld [vmem:[%s6 + $0x98] sm:$0xf]
    %v3070 = vld [vmem:[%s6 + $0x9c] sm:$0xff]
    %v3071 = vld [vmem:[%s6 + $0xa4] sm:$0xf]
    %v3072 = vld [vmem:[%s6 + $0xa8] sm:$0xff]
    %v3073 = vld [vmem:[%s6 + $0xb0] sm:$0xf]
    %v3074 = vld [vmem:[%s6 + $0xb4] sm:$0xff]
    %v3075 = vld [vmem:[%s6 + $0xbc] sm:$0xf]
    %v3108 = vunpack.c.l.b16 %v3044
    %v3109 = vunpack.c.h.b16 %v3044
    %v3110 = vunpack.c.l.b16 %v3045
    %v3111 = vunpack.c.l.b16 %v3046
    %v3112 = vunpack.c.h.b16 %v3046
    %v3113 = vunpack.c.l.b16 %v3047
    %v3114 = vunpack.c.l.b16 %v3048
    %v3115 = vunpack.c.h.b16 %v3048
    %v3116 = vunpack.c.l.b16 %v3049
    %v3117 = vunpack.c.l.b16 %v3050
    %v3118 = vunpack.c.h.b16 %v3050
    %v3119 = vunpack.c.l.b16 %v3051
    %v3120 = vunpack.c.l.b16 %v3052
    %v3121 = vunpack.c.h.b16 %v3052
    %v3122 = vunpack.c.l.b16 %v3053
    %v3123 = vunpack.c.l.b16 %v3054
    %v3124 = vunpack.c.h.b16 %v3054
    %v3125 = vunpack.c.l.b16 %v3055
    %v3126 = vunpack.c.l.b16 %v3056
    %v3127 = vunpack.c.h.b16 %v3056
    %v3128 = vunpack.c.l.b16 %v3057
    %v3129 = vunpack.c.l.b16 %v3058
    %v3130 = vunpack.c.h.b16 %v3058
    %v3131 = vunpack.c.l.b16 %v3059
    %v3132 = vunpack.c.l.b16 %v3060
    %v3133 = vunpack.c.h.b16 %v3060
    %v3134 = vunpack.c.l.b16 %v3061
    %v3135 = vunpack.c.l.b16 %v3062
    %v3136 = vunpack.c.h.b16 %v3062
    %v3137 = vunpack.c.l.b16 %v3063
    %v3138 = vunpack.c.l.b16 %v3064
    %v3139 = vunpack.c.h.b16 %v3064
    %v3140 = vunpack.c.l.b16 %v3065
    %v3141 = vunpack.c.l.b16 %v3066
    %v3142 = vunpack.c.h.b16 %v3066
    %v3143 = vunpack.c.l.b16 %v3067
    %v3144 = vunpack.c.l.b16 %v3068
    %v3145 = vunpack.c.h.b16 %v3068
    %v3146 = vunpack.c.l.b16 %v3069
    %v3147 = vunpack.c.l.b16 %v3070
    %v3148 = vunpack.c.h.b16 %v3070
    %v3149 = vunpack.c.l.b16 %v3071
    %v3150 = vunpack.c.l.b16 %v3072
    %v3151 = vunpack.c.h.b16 %v3072
    %v3152 = vunpack.c.l.b16 %v3073
    %v3153 = vunpack.c.l.b16 %v3074
    %v3154 = vunpack.c.h.b16 %v3074
    %v3155 = vunpack.c.l.b16 %v3075
    %v3156 = vpack.c.b16 %v3111, %v3108
    %v3157 = vpack.c.b16 %v3112, %v3109
    %v3158 = vpack.c.b16 %v3113, %v3110
    %v3159 = vpack.c.b16 %v3117, %v3114
    %v3160 = vpack.c.b16 %v3118, %v3115
    %v3161 = vpack.c.b16 %v3119, %v3116
    %v3162 = vpack.c.b16 %v3123, %v3120
    %v3163 = vpack.c.b16 %v3124, %v3121
    %v3164 = vpack.c.b16 %v3125, %v3122
    %v3165 = vpack.c.b16 %v3129, %v3126
    %v3166 = vpack.c.b16 %v3130, %v3127
    %v3167 = vpack.c.b16 %v3131, %v3128
    %v3168 = vpack.c.b16 %v3135, %v3132
    %v3169 = vpack.c.b16 %v3136, %v3133
    %v3170 = vpack.c.b16 %v3137, %v3134
    %v3171 = vpack.c.b16 %v3141, %v3138
    %v3172 = vpack.c.b16 %v3142, %v3139
    %v3173 = vpack.c.b16 %v3143, %v3140
    %v3174 = vpack.c.b16 %v3147, %v3144
    %v3175 = vpack.c.b16 %v3148, %v3145
    %v3176 = vpack.c.b16 %v3149, %v3146
    %v3177 = vpack.c.b16 %v3153, %v3150
    %v3178 = vpack.c.b16 %v3154, %v3151
    %v3179 = vpack.c.b16 %v3155, %v3152
    %3204 = vmatprep.subr.bf16.mxu0 %v3157
    %3205 = vmatpush1.bf16.msra.mxu0 %v3156
    %3206 = vmatprep.subr.bf16.mxu0 %v3160
    %3207 = vmatpush1.bf16.msra.mxu0 %v3159
    %3208 = vmatprep.subr.bf16.mxu0 %v3163
    %3209 = vmatpush1.bf16.msra.mxu0 %v3162
    %3210 = vmatprep.subr.bf16.mxu0 %v3166
    %3211 = vmatpush1.bf16.msra.mxu0 %v3165
    %3212 = vmatprep.subr.bf16.mxu0 %v3169
    %3213 = vmatpush1.bf16.msra.mxu0 %v3168
    %3214 = vmatprep.subr.bf16.mxu0 %v3172
    %3215 = vmatpush1.bf16.msra.mxu0 %v3171
    %3216 = vmatprep.subr.bf16.mxu0 %v3175
    %3217 = vmatpush1.bf16.msra.mxu0 %v3174
    %3218 = vmatprep.subr.bf16.mxu0 %v3178
    %3219 = vmatpush1.bf16.msra.mxu0 %v3177
    %3220 = vmatprep.subr.bf16.mxu0 0
    %3221 = vmatpush1.bf16.msra.mxu0 0
    %3222 = vmatprep.subr.bf16.mxu0 0
    %3223 = vmatpush1.bf16.msra.mxu0 0
    %3224 = vmatprep.subr.bf16.mxu0 0
    %3225 = vmatpush1.bf16.msra.mxu0 0
    %3226 = vmatprep.subr.bf16.mxu0 0
    %3227 = vmatpush1.bf16.msra.mxu0 0
    %3228 = vmatprep.subr.bf16.mxu0 0
    %3229 = vmatpush1.bf16.msra.mxu0 0
    %3230 = vmatprep.subr.bf16.mxu0 0
    %3231 = vmatpush1.bf16.msra.mxu0 0
    %3232 = vmatprep.subr.bf16.mxu0 0
    %3233 = vmatpush1.bf16.msra.mxu0 0
    %3234 = vmatprep.subr.bf16.mxu0 0
    %3235 = vmatpush1.bf16.msra.mxu0 0
    %3236 = vmatprep.mubr.bf16.mxu0 0
    %3237 = vmatmul.mubr.bf16.gmra.mrb[0].mxu0 %v3043
    %v3238 = vpop.f32.mrb[0].mxu0
    %v3239 = vadd.f32 0.0, %v3238
    %v3240 = vpop.f32.mrb[0].mxu0
    %v3241 = vadd.f32 0.0, %v3240
    %v3242 = vpop.f32.mrb[0].mxu0
    %v3243 = vpop.f32.mrb[0].mxu0
    %3244 = vdwg.mxu0
    %3245 = vmatprep.subr.bf16.mxu0 0
    %3246 = vmatpush1.bf16.msra.mxu0 %v3158
    %3247 = vmatprep.subr.bf16.mxu0 0
    %3248 = vmatpush1.bf16.msra.mxu0 %v3161
    %3249 = vmatprep.subr.bf16.mxu0 0
    %3250 = vmatpush1.bf16.msra.mxu0 %v3164
    %3251 = vmatprep.subr.bf16.mxu0 0
    %3252 = vmatpush1.bf16.msra.mxu0 %v3167
    %3253 = vmatprep.subr.bf16.mxu0 0
    %3254 = vmatpush1.bf16.msra.mxu0 %v3170
    %3255 = vmatprep.subr.bf16.mxu0 0
    %3256 = vmatpush1.bf16.msra.mxu0 %v3173
    %3257 = vmatprep.subr.bf16.mxu0 0
    %3258 = vmatpush1.bf16.msra.mxu0 %v3176
    %3259 = vmatprep.subr.bf16.mxu0 0
    %3260 = vmatpush1.bf16.msra.mxu0 %v3179
    %3261 = vmatprep.subr.bf16.mxu0 0
    %3262 = vmatpush1.bf16.msra.mxu0 0
    %3263 = vmatprep.subr.bf16.mxu0 0
    %3264 = vmatpush1.bf16.msra.mxu0 0
    %3265 = vmatprep.subr.bf16.mxu0 0
    %3266 = vmatpush1.bf16.msra.mxu0 0
    %3267 = vmatprep.subr.bf16.mxu0 0
    %3268 = vmatpush1.bf16.msra.mxu0 0
    %3269 = vmatprep.subr.bf16.mxu0 0
    %3270 = vmatpush1.bf16.msra.mxu0 0
    %3271 = vmatprep.subr.bf16.mxu0 0
    %3272 = vmatpush1.bf16.msra.mxu0 0
    %3273 = vmatprep.subr.bf16.mxu0 0
    %3274 = vmatpush1.bf16.msra.mxu0 0
    %3275 = vmatprep.subr.bf16.mxu0 0
    %3276 = vmatpush1.bf16.msra.mxu0 0
    %3277 = vmatprep.mubr.bf16.mxu0 0
    %3278 = vmatmul.mubr.bf16.gmra.mrb[0].mxu0 %v3043
    %v3279 = vpop.f32.mrb[0].mxu0
    %v3280 = vadd.f32 0.0, %v3279
    %v3281 = vpop.f32.mrb[0].mxu0
    %v3282 = vpop.f32.mrb[0].mxu0
    %v3283 = vpop.f32.mrb[0].mxu0
    %3284 = vdwg.mxu0
    %v3285 = vld [vmem:[%s4] sm:$0xff]
    %v3286 = vld [vmem:[%s4 + $0x8] sm:$0xff]
    %s3287 = scalar_lea.vmem %s4, 16
    %v3288 = vld [vmem:[%s3287] sm:$0xff]
    %v3289 = vld [vmem:[%s3287 + $0x8] sm:$0xff]
    %3291 = vrot.lane.b32.xlu0 %v3239, 96
    %v3292 = vpop.permute.xlu0 %3291
    %vm3294 = vcmask 64512
    %v3296 = vsel %vm3294, %v3288, 0
    %v3299 = vsel %vm3294, %v3289, 0
    %3301 = vmatprep.subr.mxu0 0.0
    %3302 = vmatpush1.msra.mxu0 %v3292
    %3303 = vmatprep.subr.mxu0 0.0
    %3304 = vmatpush1.msra.mxu0 0.0
    %3305 = vmatprep.subr.mxu0 0.0
    %3306 = vmatpush1.msra.mxu0 0.0
    %3307 = vmatprep.subr.mxu0 0.0
    %3308 = vmatpush1.msra.mxu0 0.0
    %3309 = vmatprep.subr.mxu0 0.0
    %3310 = vmatpush1.msra.mxu0 0.0
    %3311 = vmatprep.subr.mxu0 0.0
    %3312 = vmatpush1.msra.mxu0 0.0
    %3313 = vmatprep.subr.mxu0 0.0
    %3314 = vmatpush1.msra.mxu0 0.0
    %3315 = vmatprep.subr.mxu0 0.0
    %3316 = vmatpush1.msra.mxu0 0.0
    %3317 = vmatprep.subr.mxu0 0.0
    %3318 = vmatpush1.msra.mxu0 0.0
    %3319 = vmatprep.subr.mxu0 0.0
    %3320 = vmatpush1.msra.mxu0 0.0
    %3321 = vmatprep.subr.mxu0 0.0
    %3322 = vmatpush1.msra.mxu0 0.0
    %3323 = vmatprep.subr.mxu0 0.0
    %3324 = vmatpush1.msra.mxu0 0.0
    %3325 = vmatprep.subr.mxu0 0.0
    %3326 = vmatpush1.msra.mxu0 0.0
    %3327 = vmatprep.subr.mxu0 0.0
    %3328 = vmatpush1.msra.mxu0 0.0
    %3329 = vmatprep.subr.mxu0 0.0
    %3330 = vmatpush1.msra.mxu0 0.0
    %3331 = vmatprep.subr.mxu0 0.0
    %3332 = vmatpush1.msra.mxu0 0.0
    %3333 = vmatprep.subr.mxu0 0.0
    %3334 = vmatpush1.msra.mxu0 0.0
    %3335 = vmatprep.subr.mxu0 0.0
    %3336 = vmatpush1.msra.mxu0 0.0
    %3337 = vmatprep.subr.mxu0 0.0
    %3338 = vmatpush1.msra.mxu0 0.0
    %3339 = vmatprep.subr.mxu0 0.0
    %3340 = vmatpush1.msra.mxu0 0.0
    %3341 = vmatprep.subr.mxu0 0.0
    %3342 = vmatpush1.msra.mxu0 0.0
    %3343 = vmatprep.subr.mxu0 0.0
    %3344 = vmatpush1.msra.mxu0 0.0
    %3345 = vmatprep.subr.mxu0 0.0
    %3346 = vmatpush1.msra.mxu0 0.0
    %3347 = vmatprep.subr.mxu0 0.0
    %3348 = vmatpush1.msra.mxu0 0.0
    %3349 = vmatprep.subr.mxu0 0.0
    %3350 = vmatpush1.msra.mxu0 0.0
    %3351 = vmatprep.subr.mxu0 0.0
    %3352 = vmatpush1.msra.mxu0 0.0
    %3353 = vmatprep.subr.mxu0 0.0
    %3354 = vmatpush1.msra.mxu0 0.0
    %3355 = vmatprep.subr.mxu0 0.0
    %3356 = vmatpush1.msra.mxu0 0.0
    %3357 = vmatprep.subr.mxu0 0.0
    %3358 = vmatpush1.msra.mxu0 0.0
    %3359 = vmatprep.subr.mxu0 0.0
    %3360 = vmatpush1.msra.mxu0 0.0
    %3361 = vmatprep.subr.mxu0 0.0
    %3362 = vmatpush1.msra.mxu0 0.0
    %3363 = vmatprep.subr.mxu0 0.0
    %3364 = vmatpush1.msra.mxu0 0.0
    %3365 = vmatprep.mubr.f32.mxu0 0.0
    %3366 = vmatmul.mubr.f32.gmra.mrb[0].mxu0 %v3296
    %v3367 = vpop.f32.mrb[0].mxu0
    %v3368 = vadd.f32 0.0, %v3367
    %v3369 = vpop.f32.mrb[0].mxu0
    %3370 = vmatprep.mubr.f32.mxu0 0.0
    %3371 = vmatmul.mubr.f32.gmra.mrb[0].mxu0 %v3299
    %v3372 = vpop.f32.mrb[0].mxu0
    %v3373 = vadd.f32 0.0, %v3372
    %v3374 = vpop.f32.mrb[0].mxu0
    %3375 = vdwg.mxu0
    %v3377 = vsel %vm3294, %v3285, 0
    %v3380 = vsel %vm3294, %v3286, 0
    %3382 = vmatprep.subr.mxu0 0.0
    %3383 = vmatpush1.msra.mxu0 %v3239
    %3384 = vmatprep.subr.mxu0 0.0
    %3385 = vmatpush1.msra.mxu0 0.0
    %3386 = vmatprep.subr.mxu0 0.0
    %3387 = vmatpush1.msra.mxu0 0.0
    %3388 = vmatprep.subr.mxu0 0.0
    %3389 = vmatpush1.msra.mxu0 0.0
    %3390 = vmatprep.subr.mxu0 0.0
    %3391 = vmatpush1.msra.mxu0 0.0
    %3392 = vmatprep.subr.mxu0 0.0
    %3393 = vmatpush1.msra.mxu0 0.0
    %3394 = vmatprep.subr.mxu0 0.0
    %3395 = vmatpush1.msra.mxu0 0.0
    %3396 = vmatprep.subr.mxu0 0.0
    %3397 = vmatpush1.msra.mxu0 0.0
    %3398 = vmatprep.subr.mxu0 0.0
    %3399 = vmatpush1.msra.mxu0 0.0
    %3400 = vmatprep.subr.mxu0 0.0
    %3401 = vmatpush1.msra.mxu0 0.0
    %3402 = vmatprep.subr.mxu0 0.0
    %3403 = vmatpush1.msra.mxu0 0.0
    %3404 = vmatprep.subr.mxu0 0.0
    %3405 = vmatpush1.msra.mxu0 0.0
    %3406 = vmatprep.subr.mxu0 0.0
    %3407 = vmatpush1.msra.mxu0 0.0
    %3408 = vmatprep.subr.mxu0 0.0
    %3409 = vmatpush1.msra.mxu0 0.0
    %3410 = vmatprep.subr.mxu0 0.0
    %3411 = vmatpush1.msra.mxu0 0.0
    %3412 = vmatprep.subr.mxu0 0.0
    %3413 = vmatpush1.msra.mxu0 0.0
    %3414 = vmatprep.subr.mxu0 0.0
    %3415 = vmatpush1.msra.mxu0 0.0
    %3416 = vmatprep.subr.mxu0 0.0
    %3417 = vmatpush1.msra.mxu0 0.0
    %3418 = vmatprep.subr.mxu0 0.0
    %3419 = vmatpush1.msra.mxu0 0.0
    %3420 = vmatprep.subr.mxu0 0.0
    %3421 = vmatpush1.msra.mxu0 0.0
    %3422 = vmatprep.subr.mxu0 0.0
    %3423 = vmatpush1.msra.mxu0 0.0
    %3424 = vmatprep.subr.mxu0 0.0
    %3425 = vmatpush1.msra.mxu0 0.0
    %3426 = vmatprep.subr.mxu0 0.0
    %3427 = vmatpush1.msra.mxu0 0.0
    %3428 = vmatprep.subr.mxu0 0.0
    %3429 = vmatpush1.msra.mxu0 0.0
    %3430 = vmatprep.subr.mxu0 0.0
    %3431 = vmatpush1.msra.mxu0 0.0
    %3432 = vmatprep.subr.mxu0 0.0
    %3433 = vmatpush1.msra.mxu0 0.0
    %3434 = vmatprep.subr.mxu0 0.0
    %3435 = vmatpush1.msra.mxu0 0.0
    %3436 = vmatprep.subr.mxu0 0.0
    %3437 = vmatpush1.msra.mxu0 0.0
    %3438 = vmatprep.subr.mxu0 0.0
    %3439 = vmatpush1.msra.mxu0 0.0
    %3440 = vmatprep.subr.mxu0 0.0
    %3441 = vmatpush1.msra.mxu0 0.0
    %3442 = vmatprep.subr.mxu0 0.0
    %3443 = vmatpush1.msra.mxu0 0.0
    %3444 = vmatprep.subr.mxu0 0.0
    %3445 = vmatpush1.msra.mxu0 0.0
    %3446 = vmatprep.mubr.f32.mxu0 0.0
    %3447 = vmatmul.mubr.f32.gmra.mrb[0].mxu0 %v3377
    %v3448 = vpop.f32.mrb[0].mxu0
    %v3449 = vadd.f32 %v3368, %v3448
    %v3450 = vpop.f32.mrb[0].mxu0
    %3451 = vmatprep.mubr.f32.mxu0 0.0
    %3452 = vmatmul.mubr.f32.gmra.mrb[0].mxu0 %v3380
    %v3453 = vpop.f32.mrb[0].mxu0
    %v3454 = vadd.f32 %v3373, %v3453
    %v3455 = vpop.f32.mrb[0].mxu0
    %3456 = vdwg.mxu0
    %s3457 = scalar_lea.vmem %s4, 32
    %v3458 = vld [vmem:[%s3457] sm:$0xff]
    %v3459 = vld [vmem:[%s3457 + $0x8] sm:$0xff]
    %3460 = vrot.lane.b32.xlu0 %v3239, 64
    %v3461 = vpop.permute.xlu0 %3460
    %v3464 = vsel %vm3294, %v3458, 0
    %v3467 = vsel %vm3294, %v3459, 0
    %3469 = vmatprep.subr.mxu0 0.0
    %3470 = vmatpush1.msra.mxu0 %v3461
    %3471 = vmatprep.subr.mxu0 0.0
    %3472 = vmatpush1.msra.mxu0 0.0
    %3473 = vmatprep.subr.mxu0 0.0
    %3474 = vmatpush1.msra.mxu0 0.0
    %3475 = vmatprep.subr.mxu0 0.0
    %3476 = vmatpush1.msra.mxu0 0.0
    %3477 = vmatprep.subr.mxu0 0.0
    %3478 = vmatpush1.msra.mxu0 0.0
    %3479 = vmatprep.subr.mxu0 0.0
    %3480 = vmatpush1.msra.mxu0 0.0
    %3481 = vmatprep.subr.mxu0 0.0
    %3482 = vmatpush1.msra.mxu0 0.0
    %3483 = vmatprep.subr.mxu0 0.0
    %3484 = vmatpush1.msra.mxu0 0.0
    %3485 = vmatprep.subr.mxu0 0.0
    %3486 = vmatpush1.msra.mxu0 0.0
    %3487 = vmatprep.subr.mxu0 0.0
    %3488 = vmatpush1.msra.mxu0 0.0
    %3489 = vmatprep.subr.mxu0 0.0
    %3490 = vmatpush1.msra.mxu0 0.0
    %3491 = vmatprep.subr.mxu0 0.0
    %3492 = vmatpush1.msra.mxu0 0.0
    %3493 = vmatprep.subr.mxu0 0.0
    %3494 = vmatpush1.msra.mxu0 0.0
    %3495 = vmatprep.subr.mxu0 0.0
    %3496 = vmatpush1.msra.mxu0 0.0
    %3497 = vmatprep.subr.mxu0 0.0
    %3498 = vmatpush1.msra.mxu0 0.0
    %3499 = vmatprep.subr.mxu0 0.0
    %3500 = vmatpush1.msra.mxu0 0.0
    %3501 = vmatprep.subr.mxu0 0.0
    %3502 = vmatpush1.msra.mxu0 0.0
    %3503 = vmatprep.subr.mxu0 0.0
    %3504 = vmatpush1.msra.mxu0 0.0
    %3505 = vmatprep.subr.mxu0 0.0
    %3506 = vmatpush1.msra.mxu0 0.0
    %3507 = vmatprep.subr.mxu0 0.0
    %3508 = vmatpush1.msra.mxu0 0.0
    %3509 = vmatprep.subr.mxu0 0.0
    %3510 = vmatpush1.msra.mxu0 0.0
    %3511 = vmatprep.subr.mxu0 0.0
    %3512 = vmatpush1.msra.mxu0 0.0
    %3513 = vmatprep.subr.mxu0 0.0
    %3514 = vmatpush1.msra.mxu0 0.0
    %3515 = vmatprep.subr.mxu0 0.0
    %3516 = vmatpush1.msra.mxu0 0.0
    %3517 = vmatprep.subr.mxu0 0.0
    %3518 = vmatpush1.msra.mxu0 0.0
    %3519 = vmatprep.subr.mxu0 0.0
    %3520 = vmatpush1.msra.mxu0 0.0
    %3521 = vmatprep.subr.mxu0 0.0
    %3522 = vmatpush1.msra.mxu0 0.0
    %3523 = vmatprep.subr.mxu0 0.0
    %3524 = vmatpush1.msra.mxu0 0.0
    %3525 = vmatprep.subr.mxu0 0.0
    %3526 = vmatpush1.msra.mxu0 0.0
    %3527 = vmatprep.subr.mxu0 0.0
    %3528 = vmatpush1.msra.mxu0 0.0
    %3529 = vmatprep.subr.mxu0 0.0
    %3530 = vmatpush1.msra.mxu0 0.0
    %3531 = vmatprep.subr.mxu0 0.0
    %3532 = vmatpush1.msra.mxu0 0.0
    %3533 = vmatprep.mubr.f32.mxu0 0.0
    %3534 = vmatmul.mubr.f32.gmra.mrb[0].mxu0 %v3464
    %v3535 = vpop.f32.mrb[0].mxu0
    %v3536 = vadd.f32 0.0, %v3535
    %v3537 = vpop.f32.mrb[0].mxu0
    %3538 = vmatprep.mubr.f32.mxu0 0.0
    %3539 = vmatmul.mubr.f32.gmra.mrb[0].mxu0 %v3467
    %v3540 = vpop.f32.mrb[0].mxu0
    %v3541 = vadd.f32 0.0, %v3540
    %v3542 = vpop.f32.mrb[0].mxu0
    %3543 = vdwg.mxu0
    %v3544 = vadd.f32 %v3449, %v3536
    %v3545 = vadd.f32 %v3454, %v3541
    %s3546 = scalar_lea.vmem %s4, 48
    %v3547 = vld [vmem:[%s3546] sm:$0xff]
    %v3548 = vld [vmem:[%s3546 + $0x8] sm:$0xff]
    %3549 = vrot.lane.b32.xlu0 %v3239, 32
    %v3550 = vpop.permute.xlu0 %3549
    %v3553 = vsel %vm3294, %v3547, 0
    %v3556 = vsel %vm3294, %v3548, 0
    %3558 = vmatprep.subr.mxu0 0.0
    %3559 = vmatpush1.msra.mxu0 %v3550
    %3560 = vmatprep.subr.mxu0 0.0
    %3561 = vmatpush1.msra.mxu0 0.0
    %3562 = vmatprep.subr.mxu0 0.0
    %3563 = vmatpush1.msra.mxu0 0.0
    %3564 = vmatprep.subr.mxu0 0.0
    %3565 = vmatpush1.msra.mxu0 0.0
    %3566 = vmatprep.subr.mxu0 0.0
    %3567 = vmatpush1.msra.mxu0 0.0
    %3568 = vmatprep.subr.mxu0 0.0
    %3569 = vmatpush1.msra.mxu0 0.0
    %3570 = vmatprep.subr.mxu0 0.0
    %3571 = vmatpush1.msra.mxu0 0.0
    %3572 = vmatprep.subr.mxu0 0.0
    %3573 = vmatpush1.msra.mxu0 0.0
    %3574 = vmatprep.subr.mxu0 0.0
    %3575 = vmatpush1.msra.mxu0 0.0
    %3576 = vmatprep.subr.mxu0 0.0
    %3577 = vmatpush1.msra.mxu0 0.0
    %3578 = vmatprep.subr.mxu0 0.0
    %3579 = vmatpush1.msra.mxu0 0.0
    %3580 = vmatprep.subr.mxu0 0.0
    %3581 = vmatpush1.msra.mxu0 0.0
    %3582 = vmatprep.subr.mxu0 0.0
    %3583 = vmatpush1.msra.mxu0 0.0
    %3584 = vmatprep.subr.mxu0 0.0
    %3585 = vmatpush1.msra.mxu0 0.0
    %3586 = vmatprep.subr.mxu0 0.0
    %3587 = vmatpush1.msra.mxu0 0.0
    %3588 = vmatprep.subr.mxu0 0.0
    %3589 = vmatpush1.msra.mxu0 0.0
    %3590 = vmatprep.subr.mxu0 0.0
    %3591 = vmatpush1.msra.mxu0 0.0
    %3592 = vmatprep.subr.mxu0 0.0
    %3593 = vmatpush1.msra.mxu0 0.0
    %3594 = vmatprep.subr.mxu0 0.0
    %3595 = vmatpush1.msra.mxu0 0.0
    %3596 = vmatprep.subr.mxu0 0.0
    %3597 = vmatpush1.msra.mxu0 0.0
    %3598 = vmatprep.subr.mxu0 0.0
    %3599 = vmatpush1.msra.mxu0 0.0
    %3600 = vmatprep.subr.mxu0 0.0
    %3601 = vmatpush1.msra.mxu0 0.0
    %3602 = vmatprep.subr.mxu0 0.0
    %3603 = vmatpush1.msra.mxu0 0.0
    %3604 = vmatprep.subr.mxu0 0.0
    %3605 = vmatpush1.msra.mxu0 0.0
    %3606 = vmatprep.subr.mxu0 0.0
    %3607 = vmatpush1.msra.mxu0 0.0
    %3608 = vmatprep.subr.mxu0 0.0
    %3609 = vmatpush1.msra.mxu0 0.0
    %3610 = vmatprep.subr.mxu0 0.0
    %3611 = vmatpush1.msra.mxu0 0.0
    %3612 = vmatprep.subr.mxu0 0.0
    %3613 = vmatpush1.msra.mxu0 0.0
    %3614 = vmatprep.subr.mxu0 0.0
    %3615 = vmatpush1.msra.mxu0 0.0
    %3616 = vmatprep.subr.mxu0 0.0
    %3617 = vmatpush1.msra.mxu0 0.0
    %3618 = vmatprep.subr.mxu0 0.0
    %3619 = vmatpush1.msra.mxu0 0.0
    %3620 = vmatprep.subr.mxu0 0.0
    %3621 = vmatpush1.msra.mxu0 0.0
    %3622 = vmatprep.mubr.f32.mxu0 0.0
    %3623 = vmatmul.mubr.f32.gmra.mrb[0].mxu0 %v3553
    %v3624 = vpop.f32.mrb[0].mxu0
    %v3625 = vadd.f32 0.0, %v3624
    %v3626 = vpop.f32.mrb[0].mxu0
    %3627 = vmatprep.mubr.f32.mxu0 0.0
    %3628 = vmatmul.mubr.f32.gmra.mrb[0].mxu0 %v3556
    %v3629 = vpop.f32.mrb[0].mxu0
    %v3630 = vadd.f32 0.0, %v3629
    %v3631 = vpop.f32.mrb[0].mxu0
    %3632 = vdwg.mxu0
    %v3633 = vadd.f32 %v3544, %v3625
    %v3634 = vadd.f32 %v3545, %v3630
    %s3635 = scalar_lea.vmem %s4, 64
    %v3636 = vld [vmem:[%s3635] sm:$0xff]
    %v3637 = vld [vmem:[%s3635 + $0x8] sm:$0xff]
    %v3639 = vsel %vm3294, %v3636, 0
    %v3642 = vsel %vm3294, %v3637, 0
    %3644 = vmatprep.subr.mxu0 0.0
    %3645 = vmatpush1.msra.mxu0 %v3241
    %3646 = vmatprep.subr.mxu0 0.0
    %3647 = vmatpush1.msra.mxu0 0.0
    %3648 = vmatprep.subr.mxu0 0.0
    %3649 = vmatpush1.msra.mxu0 0.0
    %3650 = vmatprep.subr.mxu0 0.0
    %3651 = vmatpush1.msra.mxu0 0.0
    %3652 = vmatprep.subr.mxu0 0.0
    %3653 = vmatpush1.msra.mxu0 0.0
    %3654 = vmatprep.subr.mxu0 0.0
    %3655 = vmatpush1.msra.mxu0 0.0
    %3656 = vmatprep.subr.mxu0 0.0
    %3657 = vmatpush1.msra.mxu0 0.0
    %3658 = vmatprep.subr.mxu0 0.0
    %3659 = vmatpush1.msra.mxu0 0.0
    %3660 = vmatprep.subr.mxu0 0.0
    %3661 = vmatpush1.msra.mxu0 0.0
    %3662 = vmatprep.subr.mxu0 0.0
    %3663 = vmatpush1.msra.mxu0 0.0
    %3664 = vmatprep.subr.mxu0 0.0
    %3665 = vmatpush1.msra.mxu0 0.0
    %3666 = vmatprep.subr.mxu0 0.0
    %3667 = vmatpush1.msra.mxu0 0.0
    %3668 = vmatprep.subr.mxu0 0.0
    %3669 = vmatpush1.msra.mxu0 0.0
    %3670 = vmatprep.subr.mxu0 0.0
    %3671 = vmatpush1.msra.mxu0 0.0
    %3672 = vmatprep.subr.mxu0 0.0
    %3673 = vmatpush1.msra.mxu0 0.0
    %3674 = vmatprep.subr.mxu0 0.0
    %3675 = vmatpush1.msra.mxu0 0.0
    %3676 = vmatprep.subr.mxu0 0.0
    %3677 = vmatpush1.msra.mxu0 0.0
    %3678 = vmatprep.subr.mxu0 0.0
    %3679 = vmatpush1.msra.mxu0 0.0
    %3680 = vmatprep.subr.mxu0 0.0
    %3681 = vmatpush1.msra.mxu0 0.0
    %3682 = vmatprep.subr.mxu0 0.0
    %3683 = vmatpush1.msra.mxu0 0.0
    %3684 = vmatprep.subr.mxu0 0.0
    %3685 = vmatpush1.msra.mxu0 0.0
    %3686 = vmatprep.subr.mxu0 0.0
    %3687 = vmatpush1.msra.mxu0 0.0
    %3688 = vmatprep.subr.mxu0 0.0
    %3689 = vmatpush1.msra.mxu0 0.0
    %3690 = vmatprep.subr.mxu0 0.0
    %3691 = vmatpush1.msra.mxu0 0.0
    %3692 = vmatprep.subr.mxu0 0.0
    %3693 = vmatpush1.msra.mxu0 0.0
    %3694 = vmatprep.subr.mxu0 0.0
    %3695 = vmatpush1.msra.mxu0 0.0
    %3696 = vmatprep.subr.mxu0 0.0
    %3697 = vmatpush1.msra.mxu0 0.0
    %3698 = vmatprep.subr.mxu0 0.0
    %3699 = vmatpush1.msra.mxu0 0.0
    %3700 = vmatprep.subr.mxu0 0.0
    %3701 = vmatpush1.msra.mxu0 0.0
    %3702 = vmatprep.subr.mxu0 0.0
    %3703 = vmatpush1.msra.mxu0 0.0
    %3704 = vmatprep.subr.mxu0 0.0
    %3705 = vmatpush1.msra.mxu0 0.0
    %3706 = vmatprep.subr.mxu0 0.0
    %3707 = vmatpush1.msra.mxu0 0.0
    %3708 = vmatprep.mubr.f32.mxu0 0.0
    %3709 = vmatmul.mubr.f32.gmra.mrb[0].mxu0 %v3639
    %v3710 = vpop.f32.mrb[0].mxu0
    %v3711 = vadd.f32 0.0, %v3710
    %v3712 = vpop.f32.mrb[0].mxu0
    %3713 = vmatprep.mubr.f32.mxu0 0.0
    %3714 = vmatmul.mubr.f32.gmra.mrb[0].mxu0 %v3642
    %v3715 = vpop.f32.mrb[0].mxu0
    %v3716 = vadd.f32 0.0, %v3715
    %v3717 = vpop.f32.mrb[0].mxu0
    %3718 = vdwg.mxu0
    %v3719 = vadd.f32 %v3633, %v3711
    %v3720 = vadd.f32 %v3634, %v3716
    %s3721 = scalar_lea.vmem %s4, 80
    %v3722 = vld [vmem:[%s3721] sm:$0xff]
    %v3723 = vld [vmem:[%s3721 + $0x8] sm:$0xff]
    %3725 = vrot.lane.b32.xlu0 %v3241, 96
    %v3726 = vpop.permute.xlu0 %3725
    %v3729 = vsel %vm3294, %v3722, 0
    %v3732 = vsel %vm3294, %v3723, 0
    %3734 = vmatprep.subr.mxu0 0.0
    %3735 = vmatpush1.msra.mxu0 %v3726
    %3736 = vmatprep.subr.mxu0 0.0
    %3737 = vmatpush1.msra.mxu0 0.0
    %3738 = vmatprep.subr.mxu0 0.0
    %3739 = vmatpush1.msra.mxu0 0.0
    %3740 = vmatprep.subr.mxu0 0.0
    %3741 = vmatpush1.msra.mxu0 0.0
    %3742 = vmatprep.subr.mxu0 0.0
    %3743 = vmatpush1.msra.mxu0 0.0
    %3744 = vmatprep.subr.mxu0 0.0
    %3745 = vmatpush1.msra.mxu0 0.0
    %3746 = vmatprep.subr.mxu0 0.0
    %3747 = vmatpush1.msra.mxu0 0.0
    %3748 = vmatprep.subr.mxu0 0.0
    %3749 = vmatpush1.msra.mxu0 0.0
    %3750 = vmatprep.subr.mxu0 0.0
    %3751 = vmatpush1.msra.mxu0 0.0
    %3752 = vmatprep.subr.mxu0 0.0
    %3753 = vmatpush1.msra.mxu0 0.0
    %3754 = vmatprep.subr.mxu0 0.0
    %3755 = vmatpush1.msra.mxu0 0.0
    %3756 = vmatprep.subr.mxu0 0.0
    %3757 = vmatpush1.msra.mxu0 0.0
    %3758 = vmatprep.subr.mxu0 0.0
    %3759 = vmatpush1.msra.mxu0 0.0
    %3760 = vmatprep.subr.mxu0 0.0
    %3761 = vmatpush1.msra.mxu0 0.0
    %3762 = vmatprep.subr.mxu0 0.0
    %3763 = vmatpush1.msra.mxu0 0.0
    %3764 = vmatprep.subr.mxu0 0.0
    %3765 = vmatpush1.msra.mxu0 0.0
    %3766 = vmatprep.subr.mxu0 0.0
    %3767 = vmatpush1.msra.mxu0 0.0
    %3768 = vmatprep.subr.mxu0 0.0
    %3769 = vmatpush1.msra.mxu0 0.0
    %3770 = vmatprep.subr.mxu0 0.0
    %3771 = vmatpush1.msra.mxu0 0.0
    %3772 = vmatprep.subr.mxu0 0.0
    %3773 = vmatpush1.msra.mxu0 0.0
    %3774 = vmatprep.subr.mxu0 0.0
    %3775 = vmatpush1.msra.mxu0 0.0
    %3776 = vmatprep.subr.mxu0 0.0
    %3777 = vmatpush1.msra.mxu0 0.0
    %3778 = vmatprep.subr.mxu0 0.0
    %3779 = vmatpush1.msra.mxu0 0.0
    %3780 = vmatprep.subr.mxu0 0.0
    %3781 = vmatpush1.msra.mxu0 0.0
    %3782 = vmatprep.subr.mxu0 0.0
    %3783 = vmatpush1.msra.mxu0 0.0
    %3784 = vmatprep.subr.mxu0 0.0
    %3785 = vmatpush1.msra.mxu0 0.0
    %3786 = vmatprep.subr.mxu0 0.0
    %3787 = vmatpush1.msra.mxu0 0.0
    %3788 = vmatprep.subr.mxu0 0.0
    %3789 = vmatpush1.msra.mxu0 0.0
    %3790 = vmatprep.subr.mxu0 0.0
    %3791 = vmatpush1.msra.mxu0 0.0
    %3792 = vmatprep.subr.mxu0 0.0
    %3793 = vmatpush1.msra.mxu0 0.0
    %3794 = vmatprep.subr.mxu0 0.0
    %3795 = vmatpush1.msra.mxu0 0.0
    %3796 = vmatprep.subr.mxu0 0.0
    %3797 = vmatpush1.msra.mxu0 0.0
    %3798 = vmatprep.mubr.f32.mxu0 0.0
    %3799 = vmatmul.mubr.f32.gmra.mrb[0].mxu0 %v3729
    %v3800 = vpop.f32.mrb[0].mxu0
    %v3801 = vadd.f32 0.0, %v3800
    %v3802 = vpop.f32.mrb[0].mxu0
    %3803 = vmatprep.mubr.f32.mxu0 0.0
    %3804 = vmatmul.mubr.f32.gmra.mrb[0].mxu0 %v3732
    %v3805 = vpop.f32.mrb[0].mxu0
    %v3806 = vadd.f32 0.0, %v3805
    %v3807 = vpop.f32.mrb[0].mxu0
    %3808 = vdwg.mxu0
    %v3809 = vadd.f32 %v3719, %v3801
    %v3810 = vadd.f32 %v3720, %v3806
    %s3811 = scalar_lea.vmem %s4, 96
    %v3812 = vld [vmem:[%s3811] sm:$0xff]
    %v3813 = vld [vmem:[%s3811 + $0x8] sm:$0xff]
    %3814 = vrot.lane.b32.xlu0 %v3241, 64
    %v3815 = vpop.permute.xlu0 %3814
    %v3818 = vsel %vm3294, %v3812, 0
    %v3821 = vsel %vm3294, %v3813, 0
    %3823 = vmatprep.subr.mxu0 0.0
    %3824 = vmatpush1.msra.mxu0 %v3815
    %3825 = vmatprep.subr.mxu0 0.0
    %3826 = vmatpush1.msra.mxu0 0.0
    %3827 = vmatprep.subr.mxu0 0.0
    %3828 = vmatpush1.msra.mxu0 0.0
    %3829 = vmatprep.subr.mxu0 0.0
    %3830 = vmatpush1.msra.mxu0 0.0
    %3831 = vmatprep.subr.mxu0 0.0
    %3832 = vmatpush1.msra.mxu0 0.0
    %3833 = vmatprep.subr.mxu0 0.0
    %3834 = vmatpush1.msra.mxu0 0.0
    %3835 = vmatprep.subr.mxu0 0.0
    %3836 = vmatpush1.msra.mxu0 0.0
    %3837 = vmatprep.subr.mxu0 0.0
    %3838 = vmatpush1.msra.mxu0 0.0
    %3839 = vmatprep.subr.mxu0 0.0
    %3840 = vmatpush1.msra.mxu0 0.0
    %3841 = vmatprep.subr.mxu0 0.0
    %3842 = vmatpush1.msra.mxu0 0.0
    %3843 = vmatprep.subr.mxu0 0.0
    %3844 = vmatpush1.msra.mxu0 0.0
    %3845 = vmatprep.subr.mxu0 0.0
    %3846 = vmatpush1.msra.mxu0 0.0
    %3847 = vmatprep.subr.mxu0 0.0
    %3848 = vmatpush1.msra.mxu0 0.0
    %3849 = vmatprep.subr.mxu0 0.0
    %3850 = vmatpush1.msra.mxu0 0.0
    %3851 = vmatprep.subr.mxu0 0.0
    %3852 = vmatpush1.msra.mxu0 0.0
    %3853 = vmatprep.subr.mxu0 0.0
    %3854 = vmatpush1.msra.mxu0 0.0
    %3855 = vmatprep.subr.mxu0 0.0
    %3856 = vmatpush1.msra.mxu0 0.0
    %3857 = vmatprep.subr.mxu0 0.0
    %3858 = vmatpush1.msra.mxu0 0.0
    %3859 = vmatprep.subr.mxu0 0.0
    %3860 = vmatpush1.msra.mxu0 0.0
    %3861 = vmatprep.subr.mxu0 0.0
    %3862 = vmatpush1.msra.mxu0 0.0
    %3863 = vmatprep.subr.mxu0 0.0
    %3864 = vmatpush1.msra.mxu0 0.0
    %3865 = vmatprep.subr.mxu0 0.0
    %3866 = vmatpush1.msra.mxu0 0.0
    %3867 = vmatprep.subr.mxu0 0.0
    %3868 = vmatpush1.msra.mxu0 0.0
    %3869 = vmatprep.subr.mxu0 0.0
    %3870 = vmatpush1.msra.mxu0 0.0
    %3871 = vmatprep.subr.mxu0 0.0
    %3872 = vmatpush1.msra.mxu0 0.0
    %3873 = vmatprep.subr.mxu0 0.0
    %3874 = vmatpush1.msra.mxu0 0.0
    %3875 = vmatprep.subr.mxu0 0.0
    %3876 = vmatpush1.msra.mxu0 0.0
    %3877 = vmatprep.subr.mxu0 0.0
    %3878 = vmatpush1.msra.mxu0 0.0
    %3879 = vmatprep.subr.mxu0 0.0
    %3880 = vmatpush1.msra.mxu0 0.0
    %3881 = vmatprep.subr.mxu0 0.0
    %3882 = vmatpush1.msra.mxu0 0.0
    %3883 = vmatprep.subr.mxu0 0.0
    %3884 = vmatpush1.msra.mxu0 0.0
    %3885 = vmatprep.subr.mxu0 0.0
    %3886 = vmatpush1.msra.mxu0 0.0
    %3887 = vmatprep.mubr.f32.mxu0 0.0
    %3888 = vmatmul.mubr.f32.gmra.mrb[0].mxu0 %v3818
    %v3889 = vpop.f32.mrb[0].mxu0
    %v3890 = vadd.f32 0.0, %v3889
    %v3891 = vpop.f32.mrb[0].mxu0
    %3892 = vmatprep.mubr.f32.mxu0 0.0
    %3893 = vmatmul.mubr.f32.gmra.mrb[0].mxu0 %v3821
    %v3894 = vpop.f32.mrb[0].mxu0
    %v3895 = vadd.f32 0.0, %v3894
    %v3896 = vpop.f32.mrb[0].mxu0
    %3897 = vdwg.mxu0
    %v3898 = vadd.f32 %v3809, %v3890
    %v3899 = vadd.f32 %v3810, %v3895
    %s3900 = scalar_lea.vmem %s4, 112
    %v3901 = vld [vmem:[%s3900] sm:$0xff]
    %v3902 = vld [vmem:[%s3900 + $0x8] sm:$0xff]
    %3903 = vrot.lane.b32.xlu0 %v3241, 32
    %v3904 = vpop.permute.xlu0 %3903
    %v3907 = vsel %vm3294, %v3901, 0
    %v3910 = vsel %vm3294, %v3902, 0
    %3912 = vmatprep.subr.mxu0 0.0
    %3913 = vmatpush1.msra.mxu0 %v3904
    %3914 = vmatprep.subr.mxu0 0.0
    %3915 = vmatpush1.msra.mxu0 0.0
    %3916 = vmatprep.subr.mxu0 0.0
    %3917 = vmatpush1.msra.mxu0 0.0
    %3918 = vmatprep.subr.mxu0 0.0
    %3919 = vmatpush1.msra.mxu0 0.0
    %3920 = vmatprep.subr.mxu0 0.0
    %3921 = vmatpush1.msra.mxu0 0.0
    %3922 = vmatprep.subr.mxu0 0.0
    %3923 = vmatpush1.msra.mxu0 0.0
    %3924 = vmatprep.subr.mxu0 0.0
    %3925 = vmatpush1.msra.mxu0 0.0
    %3926 = vmatprep.subr.mxu0 0.0
    %3927 = vmatpush1.msra.mxu0 0.0
    %3928 = vmatprep.subr.mxu0 0.0
    %3929 = vmatpush1.msra.mxu0 0.0
    %3930 = vmatprep.subr.mxu0 0.0
    %3931 = vmatpush1.msra.mxu0 0.0
    %3932 = vmatprep.subr.mxu0 0.0
    %3933 = vmatpush1.msra.mxu0 0.0
    %3934 = vmatprep.subr.mxu0 0.0
    %3935 = vmatpush1.msra.mxu0 0.0
    %3936 = vmatprep.subr.mxu0 0.0
    %3937 = vmatpush1.msra.mxu0 0.0
    %3938 = vmatprep.subr.mxu0 0.0
    %3939 = vmatpush1.msra.mxu0 0.0
    %3940 = vmatprep.subr.mxu0 0.0
    %3941 = vmatpush1.msra.mxu0 0.0
    %3942 = vmatprep.subr.mxu0 0.0
    %3943 = vmatpush1.msra.mxu0 0.0
    %3944 = vmatprep.subr.mxu0 0.0
    %3945 = vmatpush1.msra.mxu0 0.0
    %3946 = vmatprep.subr.mxu0 0.0
    %3947 = vmatpush1.msra.mxu0 0.0
    %3948 = vmatprep.subr.mxu0 0.0
    %3949 = vmatpush1.msra.mxu0 0.0
    %3950 = vmatprep.subr.mxu0 0.0
    %3951 = vmatpush1.msra.mxu0 0.0
    %3952 = vmatprep.subr.mxu0 0.0
    %3953 = vmatpush1.msra.mxu0 0.0
    %3954 = vmatprep.subr.mxu0 0.0
    %3955 = vmatpush1.msra.mxu0 0.0
    %3956 = vmatprep.subr.mxu0 0.0
    %3957 = vmatpush1.msra.mxu0 0.0
    %3958 = vmatprep.subr.mxu0 0.0
    %3959 = vmatpush1.msra.mxu0 0.0
    %3960 = vmatprep.subr.mxu0 0.0
    %3961 = vmatpush1.msra.mxu0 0.0
    %3962 = vmatprep.subr.mxu0 0.0
    %3963 = vmatpush1.msra.mxu0 0.0
    %3964 = vmatprep.subr.mxu0 0.0
    %3965 = vmatpush1.msra.mxu0 0.0
    %3966 = vmatprep.subr.mxu0 0.0
    %3967 = vmatpush1.msra.mxu0 0.0
    %3968 = vmatprep.subr.mxu0 0.0
    %3969 = vmatpush1.msra.mxu0 0.0
    %3970 = vmatprep.subr.mxu0 0.0
    %3971 = vmatpush1.msra.mxu0 0.0
    %3972 = vmatprep.subr.mxu0 0.0
    %3973 = vmatpush1.msra.mxu0 0.0
    %3974 = vmatprep.subr.mxu0 0.0
    %3975 = vmatpush1.msra.mxu0 0.0
    %3976 = vmatprep.mubr.f32.mxu0 0.0
    %3977 = vmatmul.mubr.f32.gmra.mrb[0].mxu0 %v3907
    %v3978 = vpop.f32.mrb[0].mxu0
    %v3979 = vadd.f32 0.0, %v3978
    %v3980 = vpop.f32.mrb[0].mxu0
    %3981 = vmatprep.mubr.f32.mxu0 0.0
    %3982 = vmatmul.mubr.f32.gmra.mrb[0].mxu0 %v3910
    %v3983 = vpop.f32.mrb[0].mxu0
    %v3984 = vadd.f32 0.0, %v3983
    %v3985 = vpop.f32.mrb[0].mxu0
    %3986 = vdwg.mxu0
    %v3987 = vadd.f32 %v3898, %v3979
    %v3988 = vadd.f32 %v3899, %v3984
    %s3989 = scalar_lea.vmem %s4, 128
    %v3990 = vld [vmem:[%s3989] sm:$0xff]
    %v3991 = vld [vmem:[%s3989 + $0x8] sm:$0xff]
    %v3993 = vsel %vm3294, %v3990, 0
    %v3996 = vsel %vm3294, %v3991, 0
    %3998 = vmatprep.subr.mxu0 0.0
    %3999 = vmatpush1.msra.mxu0 %v3280
    %4000 = vmatprep.subr.mxu0 0.0
    %4001 = vmatpush1.msra.mxu0 0.0
    %4002 = vmatprep.subr.mxu0 0.0
    %4003 = vmatpush1.msra.mxu0 0.0
    %4004 = vmatprep.subr.mxu0 0.0
    %4005 = vmatpush1.msra.mxu0 0.0
    %4006 = vmatprep.subr.mxu0 0.0
    %4007 = vmatpush1.msra.mxu0 0.0
    %4008 = vmatprep.subr.mxu0 0.0
    %4009 = vmatpush1.msra.mxu0 0.0
    %4010 = vmatprep.subr.mxu0 0.0
    %4011 = vmatpush1.msra.mxu0 0.0
    %4012 = vmatprep.subr.mxu0 0.0
    %4013 = vmatpush1.msra.mxu0 0.0
    %4014 = vmatprep.subr.mxu0 0.0
    %4015 = vmatpush1.msra.mxu0 0.0
    %4016 = vmatprep.subr.mxu0 0.0
    %4017 = vmatpush1.msra.mxu0 0.0
    %4018 = vmatprep.subr.mxu0 0.0
    %4019 = vmatpush1.msra.mxu0 0.0
    %4020 = vmatprep.subr.mxu0 0.0
    %4021 = vmatpush1.msra.mxu0 0.0
    %4022 = vmatprep.subr.mxu0 0.0
    %4023 = vmatpush1.msra.mxu0 0.0
    %4024 = vmatprep.subr.mxu0 0.0
    %4025 = vmatpush1.msra.mxu0 0.0
    %4026 = vmatprep.subr.mxu0 0.0
    %4027 = vmatpush1.msra.mxu0 0.0
    %4028 = vmatprep.subr.mxu0 0.0
    %4029 = vmatpush1.msra.mxu0 0.0
    %4030 = vmatprep.subr.mxu0 0.0
    %4031 = vmatpush1.msra.mxu0 0.0
    %4032 = vmatprep.subr.mxu0 0.0
    %4033 = vmatpush1.msra.mxu0 0.0
    %4034 = vmatprep.subr.mxu0 0.0
    %4035 = vmatpush1.msra.mxu0 0.0
    %4036 = vmatprep.subr.mxu0 0.0
    %4037 = vmatpush1.msra.mxu0 0.0
    %4038 = vmatprep.subr.mxu0 0.0
    %4039 = vmatpush1.msra.mxu0 0.0
    %4040 = vmatprep.subr.mxu0 0.0
    %4041 = vmatpush1.msra.mxu0 0.0
    %4042 = vmatprep.subr.mxu0 0.0
    %4043 = vmatpush1.msra.mxu0 0.0
    %4044 = vmatprep.subr.mxu0 0.0
    %4045 = vmatpush1.msra.mxu0 0.0
    %4046 = vmatprep.subr.mxu0 0.0
    %4047 = vmatpush1.msra.mxu0 0.0
    %4048 = vmatprep.subr.mxu0 0.0
    %4049 = vmatpush1.msra.mxu0 0.0
    %4050 = vmatprep.subr.mxu0 0.0
    %4051 = vmatpush1.msra.mxu0 0.0
    %4052 = vmatprep.subr.mxu0 0.0
    %4053 = vmatpush1.msra.mxu0 0.0
    %4054 = vmatprep.subr.mxu0 0.0
    %4055 = vmatpush1.msra.mxu0 0.0
    %4056 = vmatprep.subr.mxu0 0.0
    %4057 = vmatpush1.msra.mxu0 0.0
    %4058 = vmatprep.subr.mxu0 0.0
    %4059 = vmatpush1.msra.mxu0 0.0
    %4060 = vmatprep.subr.mxu0 0.0
    %4061 = vmatpush1.msra.mxu0 0.0
    %4062 = vmatprep.mubr.f32.mxu0 0.0
    %4063 = vmatmul.mubr.f32.gmra.mrb[0].mxu0 %v3993
    %v4064 = vpop.f32.mrb[0].mxu0
    %v4065 = vadd.f32 0.0, %v4064
    %v4066 = vpop.f32.mrb[0].mxu0
    %4067 = vmatprep.mubr.f32.mxu0 0.0
    %4068 = vmatmul.mubr.f32.gmra.mrb[0].mxu0 %v3996
    %v4069 = vpop.f32.mrb[0].mxu0
    %v4070 = vadd.f32 0.0, %v4069
    %v4071 = vpop.f32.mrb[0].mxu0
    %4072 = vdwg.mxu0
    %v4073 = vadd.f32 %v3987, %v4065
    %v4074 = vadd.f32 %v3988, %v4070
    %v4075 = vld [vmem:[%s5] sm:$0xff]
    %v4076 = vld [vmem:[%s5 + $0x8] sm:$0xff]
    %4078 = vset.pattern.permute.xlu0 0
    %4079 = vperm.xlu0 %4078, %v4075
    %v4080 = vpop.permute.xlu0 %4079
    %4083 = vset.pattern.permute.xlu0 0
    %4084 = vperm.xlu0 %4083, %v4076
    %v4085 = vpop.permute.xlu0 %4084
    %v4087 = vadd.f32 %v4073, %v4080
    %v4088 = vadd.f32 %v4074, %v4085
    %v4089 = vxor.u32 %v4087, 2147483648
    %v4090 = vxor.u32 %v4088, 2147483648
    %v4091 = vmul.f32 %v4089, 1.442695
    %v4092 = vpow.pop %v4091
    %v4093 = vmul.f32 %v4090, 1.442695
    %v4094 = vpow.pop %v4093
    %v4095 = vadd.f32 %v4092, 1.0
    %v4096 = vadd.f32 %v4094, 1.0
    %v4097 = vrcp.pop %v4095
    %v4098 = vmul.f32 1.0, %v4097
    %v4099 = vrcp.pop %v4096
    %v4100 = vmul.f32 1.0, %v4099
    %v4101 = vmul.f32 %v4087, %v4098
    %v4102 = vmul.f32 %v4088, %v4100
    %v4103 = vpack.c.bf16 %v4102, %v4101
    %v4104 = vld [vmem:[#allocation8] sm:$0xff]
    %v4105 = vld [vmem:[#allocation8 + $0x8] sm:$0xff]
    %v4106 = vld [vmem:[#allocation8 + $0x10] sm:$0xff]
    %v4107 = vld [vmem:[#allocation8 + $0x18] sm:$0xff]
    %v4108 = vld [vmem:[#allocation8 + $0x20] sm:$0xf]
    %v4109 = vld [vmem:[#allocation8 + $0x24] sm:$0xff]
    %v4110 = vld [vmem:[#allocation8 + $0x2c] sm:$0xff]
    %v4111 = vld [vmem:[#allocation8 + $0x34] sm:$0xff]
    %v4112 = vld [vmem:[#allocation8 + $0x3c] sm:$0xff]
    %v4113 = vld [vmem:[#allocation8 + $0x44] sm:$0xf]
    %v4114 = vld [vmem:[#allocation8 + $0x48] sm:$0xff]
    %v4115 = vld [vmem:[#allocation8 + $0x50] sm:$0xff]
    %v4116 = vld [vmem:[#allocation8 + $0x58] sm:$0xff]
    %v4117 = vld [vmem:[#allocation8 + $0x60] sm:$0xff]
    %v4118 = vld [vmem:[#allocation8 + $0x68] sm:$0xf]
    %v4119 = vld [vmem:[#allocation8 + $0x6c] sm:$0xff]
    %v4120 = vld [vmem:[#allocation8 + $0x74] sm:$0xff]
    %v4121 = vld [vmem:[#allocation8 + $0x7c] sm:$0xff]
    %v4122 = vld [vmem:[#allocation8 + $0x84] sm:$0xff]
    %v4123 = vld [vmem:[#allocation8 + $0x8c] sm:$0xf]
    %v4144 = vunpack.c.l.b16 %v4104
    %v4145 = vunpack.c.h.b16 %v4104
    %v4146 = vunpack.c.l.b16 %v4105
    %v4147 = vunpack.c.h.b16 %v4105
    %v4148 = vunpack.c.l.b16 %v4106
    %v4149 = vunpack.c.h.b16 %v4106
    %v4150 = vunpack.c.l.b16 %v4107
    %v4151 = vunpack.c.h.b16 %v4107
    %v4152 = vunpack.c.l.b16 %v4108
    %v4153 = vunpack.c.l.b16 %v4109
    %v4154 = vunpack.c.h.b16 %v4109
    %v4155 = vunpack.c.l.b16 %v4110
    %v4156 = vunpack.c.h.b16 %v4110
    %v4157 = vunpack.c.l.b16 %v4111
    %v4158 = vunpack.c.h.b16 %v4111
    %v4159 = vunpack.c.l.b16 %v4112
    %v4160 = vunpack.c.h.b16 %v4112
    %v4161 = vunpack.c.l.b16 %v4113
    %v4162 = vunpack.c.l.b16 %v4114
    %v4163 = vunpack.c.h.b16 %v4114
    %v4164 = vunpack.c.l.b16 %v4115
    %v4165 = vunpack.c.h.b16 %v4115
    %v4166 = vunpack.c.l.b16 %v4116
    %v4167 = vunpack.c.h.b16 %v4116
    %v4168 = vunpack.c.l.b16 %v4117
    %v4169 = vunpack.c.h.b16 %v4117
    %v4170 = vunpack.c.l.b16 %v4118
    %v4171 = vunpack.c.l.b16 %v4119
    %v4172 = vunpack.c.h.b16 %v4119
    %v4173 = vunpack.c.l.b16 %v4120
    %v4174 = vunpack.c.h.b16 %v4120
    %v4175 = vunpack.c.l.b16 %v4121
    %v4176 = vunpack.c.h.b16 %v4121
    %v4177 = vunpack.c.l.b16 %v4122
    %v4178 = vunpack.c.h.b16 %v4122
    %v4179 = vunpack.c.l.b16 %v4123
    %v4180 = vpack.c.b16 %v4153, %v4144
    %v4181 = vpack.c.b16 %v4154, %v4145
    %v4182 = vpack.c.b16 %v4155, %v4146
    %v4183 = vpack.c.b16 %v4156, %v4147
    %v4184 = vpack.c.b16 %v4157, %v4148
    %v4185 = vpack.c.b16 %v4158, %v4149
    %v4186 = vpack.c.b16 %v4159, %v4150
    %v4187 = vpack.c.b16 %v4160, %v4151
    %v4188 = vpack.c.b16 %v4161, %v4152
    %v4189 = vpack.c.b16 %v4171, %v4162
    %v4190 = vpack.c.b16 %v4172, %v4163
    %v4191 = vpack.c.b16 %v4173, %v4164
    %v4192 = vpack.c.b16 %v4174, %v4165
    %v4193 = vpack.c.b16 %v4175, %v4166
    %v4194 = vpack.c.b16 %v4176, %v4167
    %v4195 = vpack.c.b16 %v4177, %v4168
    %v4196 = vpack.c.b16 %v4178, %v4169
    %v4197 = vpack.c.b16 %v4179, %v4170
    %vm4216 = vcmask 261120
    %v4218 = vsel %vm4216, %v4103, 0
    %4220 = vmatprep.subr.bf16.mxu0 %v4181
    %4221 = vmatpush1.bf16.msra.mxu0 %v4180
    %4222 = vmatprep.subr.bf16.mxu0 %v4190
    %4223 = vmatpush1.bf16.msra.mxu0 %v4189
    %4224 = vmatprep.subr.bf16.mxu0 0
    %4225 = vmatpush1.bf16.msra.mxu0 0
    %4226 = vmatprep.subr.bf16.mxu0 0
    %4227 = vmatpush1.bf16.msra.mxu0 0
    %4228 = vmatprep.subr.bf16.mxu0 0
    %4229 = vmatpush1.bf16.msra.mxu0 0
    %4230 = vmatprep.subr.bf16.mxu0 0
    %4231 = vmatpush1.bf16.msra.mxu0 0
    %4232 = vmatprep.subr.bf16.mxu0 0
    %4233 = vmatpush1.bf16.msra.mxu0 0
    %4234 = vmatprep.subr.bf16.mxu0 0
    %4235 = vmatpush1.bf16.msra.mxu0 0
    %4236 = vmatprep.subr.bf16.mxu0 0
    %4237 = vmatpush1.bf16.msra.mxu0 0
    %4238 = vmatprep.subr.bf16.mxu0 0
    %4239 = vmatpush1.bf16.msra.mxu0 0
    %4240 = vmatprep.subr.bf16.mxu0 0
    %4241 = vmatpush1.bf16.msra.mxu0 0
    %4242 = vmatprep.subr.bf16.mxu0 0
    %4243 = vmatpush1.bf16.msra.mxu0 0
    %4244 = vmatprep.subr.bf16.mxu0 0
    %4245 = vmatpush1.bf16.msra.mxu0 0
    %4246 = vmatprep.subr.bf16.mxu0 0
    %4247 = vmatpush1.bf16.msra.mxu0 0
    %4248 = vmatprep.subr.bf16.mxu0 0
    %4249 = vmatpush1.bf16.msra.mxu0 0
    %4250 = vmatprep.subr.bf16.mxu0 0
    %4251 = vmatpush1.bf16.msra.mxu0 0
    %4252 = vmatprep.mubr.bf16.mxu0 0
    %4253 = vmatmul.mubr.bf16.gmra.mrb[0].mxu0 %v4218
    %v4254 = vpop.f32.mrb[0].mxu0
    %v4255 = vadd.f32 0.0, %v4254
    %v4256 = vpop.f32.mrb[0].mxu0
    %v4257 = vadd.f32 0.0, %v4256
    %v4258 = vpop.f32.mrb[0].mxu0
    %v4259 = vadd.f32 0.0, %v4258
    %v4260 = vpop.f32.mrb[0].mxu0
    %v4261 = vadd.f32 0.0, %v4260
    %4262 = vdwg.mxu0
    %4263 = vmatprep.subr.bf16.mxu0 %v4183
    %4264 = vmatpush1.bf16.msra.mxu0 %v4182
    %4265 = vmatprep.subr.bf16.mxu0 %v4192
    %4266 = vmatpush1.bf16.msra.mxu0 %v4191
    %4267 = vmatprep.subr.bf16.mxu0 0
    %4268 = vmatpush1.bf16.msra.mxu0 0
    %4269 = vmatprep.subr.bf16.mxu0 0
    %4270 = vmatpush1.bf16.msra.mxu0 0
    %4271 = vmatprep.subr.bf16.mxu0 0
    %4272 = vmatpush1.bf16.msra.mxu0 0
    %4273 = vmatprep.subr.bf16.mxu0 0
    %4274 = vmatpush1.bf16.msra.mxu0 0
    %4275 = vmatprep.subr.bf16.mxu0 0
    %4276 = vmatpush1.bf16.msra.mxu0 0
    %4277 = vmatprep.subr.bf16.mxu0 0
    %4278 = vmatpush1.bf16.msra.mxu0 0
    %4279 = vmatprep.subr.bf16.mxu0 0
    %4280 = vmatpush1.bf16.msra.mxu0 0
    %4281 = vmatprep.subr.bf16.mxu0 0
    %4282 = vmatpush1.bf16.msra.mxu0 0
    %4283 = vmatprep.subr.bf16.mxu0 0
    %4284 = vmatpush1.bf16.msra.mxu0 0
    %4285 = vmatprep.subr.bf16.mxu0 0
    %4286 = vmatpush1.bf16.msra.mxu0 0
    %4287 = vmatprep.subr.bf16.mxu0 0
    %4288 = vmatpush1.bf16.msra.mxu0 0
    %4289 = vmatprep.subr.bf16.mxu0 0
    %4290 = vmatpush1.bf16.msra.mxu0 0
    %4291 = vmatprep.subr.bf16.mxu0 0
    %4292 = vmatpush1.bf16.msra.mxu0 0
    %4293 = vmatprep.subr.bf16.mxu0 0
    %4294 = vmatpush1.bf16.msra.mxu0 0
    %4295 = vmatprep.mubr.bf16.mxu0 0
    %4296 = vmatmul.mubr.bf16.gmra.mrb[0].mxu0 %v4218
    %v4297 = vpop.f32.mrb[0].mxu0
    %v4298 = vadd.f32 0.0, %v4297
    %v4299 = vpop.f32.mrb[0].mxu0
    %v4300 = vadd.f32 0.0, %v4299
    %v4301 = vpop.f32.mrb[0].mxu0
    %v4302 = vadd.f32 0.0, %v4301
    %v4303 = vpop.f32.mrb[0].mxu0
    %v4304 = vadd.f32 0.0, %v4303
    %4305 = vdwg.mxu0
    %4306 = vmatprep.subr.bf16.mxu0 %v4185
    %4307 = vmatpush1.bf16.msra.mxu0 %v4184
    %4308 = vmatprep.subr.bf16.mxu0 %v4194
    %4309 = vmatpush1.bf16.msra.mxu0 %v4193
    %4310 = vmatprep.subr.bf16.mxu0 0
    %4311 = vmatpush1.bf16.msra.mxu0 0
    %4312 = vmatprep.subr.bf16.mxu0 0
    %4313 = vmatpush1.bf16.msra.mxu0 0
    %4314 = vmatprep.subr.bf16.mxu0 0
    %4315 = vmatpush1.bf16.msra.mxu0 0
    %4316 = vmatprep.subr.bf16.mxu0 0
    %4317 = vmatpush1.bf16.msra.mxu0 0
    %4318 = vmatprep.subr.bf16.mxu0 0
    %4319 = vmatpush1.bf16.msra.mxu0 0
    %4320 = vmatprep.subr.bf16.mxu0 0
    %4321 = vmatpush1.bf16.msra.mxu0 0
    %4322 = vmatprep.subr.bf16.mxu0 0
    %4323 = vmatpush1.bf16.msra.mxu0 0
    %4324 = vmatprep.subr.bf16.mxu0 0
    %4325 = vmatpush1.bf16.msra.mxu0 0
    %4326 = vmatprep.subr.bf16.mxu0 0
    %4327 = vmatpush1.bf16.msra.mxu0 0
    %4328 = vmatprep.subr.bf16.mxu0 0
    %4329 = vmatpush1.bf16.msra.mxu0 0
    %4330 = vmatprep.subr.bf16.mxu0 0
    %4331 = vmatpush1.bf16.msra.mxu0 0
    %4332 = vmatprep.subr.bf16.mxu0 0
    %4333 = vmatpush1.bf16.msra.mxu0 0
    %4334 = vmatprep.subr.bf16.mxu0 0
    %4335 = vmatpush1.bf16.msra.mxu0 0
    %4336 = vmatprep.subr.bf16.mxu0 0
    %4337 = vmatpush1.bf16.msra.mxu0 0
    %4338 = vmatprep.mubr.bf16.mxu0 0
    %4339 = vmatmul.mubr.bf16.gmra.mrb[0].mxu0 %v4218
    %v4340 = vpop.f32.mrb[0].mxu0
    %v4341 = vadd.f32 0.0, %v4340
    %v4342 = vpop.f32.mrb[0].mxu0
    %v4343 = vadd.f32 0.0, %v4342
    %v4344 = vpop.f32.mrb[0].mxu0
    %v4345 = vadd.f32 0.0, %v4344
    %v4346 = vpop.f32.mrb[0].mxu0
    %v4347 = vadd.f32 0.0, %v4346
    %4348 = vdwg.mxu0
    %4349 = vmatprep.subr.bf16.mxu0 %v4187
    %4350 = vmatpush1.bf16.msra.mxu0 %v4186
    %4351 = vmatprep.subr.bf16.mxu0 %v4196
    %4352 = vmatpush1.bf16.msra.mxu0 %v4195
    %4353 = vmatprep.subr.bf16.mxu0 0
    %4354 = vmatpush1.bf16.msra.mxu0 0
    %4355 = vmatprep.subr.bf16.mxu0 0
    %4356 = vmatpush1.bf16.msra.mxu0 0
    %4357 = vmatprep.subr.bf16.mxu0 0
    %4358 = vmatpush1.bf16.msra.mxu0 0
    %4359 = vmatprep.subr.bf16.mxu0 0
    %4360 = vmatpush1.bf16.msra.mxu0 0
    %4361 = vmatprep.subr.bf16.mxu0 0
    %4362 = vmatpush1.bf16.msra.mxu0 0
    %4363 = vmatprep.subr.bf16.mxu0 0
    %4364 = vmatpush1.bf16.msra.mxu0 0
    %4365 = vmatprep.subr.bf16.mxu0 0
    %4366 = vmatpush1.bf16.msra.mxu0 0
    %4367 = vmatprep.subr.bf16.mxu0 0
    %4368 = vmatpush1.bf16.msra.mxu0 0
    %4369 = vmatprep.subr.bf16.mxu0 0
    %4370 = vmatpush1.bf16.msra.mxu0 0
    %4371 = vmatprep.subr.bf16.mxu0 0
    %4372 = vmatpush1.bf16.msra.mxu0 0
    %4373 = vmatprep.subr.bf16.mxu0 0
    %4374 = vmatpush1.bf16.msra.mxu0 0
    %4375 = vmatprep.subr.bf16.mxu0 0
    %4376 = vmatpush1.bf16.msra.mxu0 0
    %4377 = vmatprep.subr.bf16.mxu0 0
    %4378 = vmatpush1.bf16.msra.mxu0 0
    %4379 = vmatprep.subr.bf16.mxu0 0
    %4380 = vmatpush1.bf16.msra.mxu0 0
    %4381 = vmatprep.mubr.bf16.mxu0 0
    %4382 = vmatmul.mubr.bf16.gmra.mrb[0].mxu0 %v4218
    %v4383 = vpop.f32.mrb[0].mxu0
    %v4384 = vadd.f32 0.0, %v4383
    %v4385 = vpop.f32.mrb[0].mxu0
    %v4386 = vadd.f32 0.0, %v4385
    %v4387 = vpop.f32.mrb[0].mxu0
    %v4388 = vadd.f32 0.0, %v4387
    %v4389 = vpop.f32.mrb[0].mxu0
    %v4390 = vadd.f32 0.0, %v4389
    %4391 = vdwg.mxu0
    %4392 = vmatprep.subr.bf16.mxu0 0
    %4393 = vmatpush1.bf16.msra.mxu0 %v4188
    %4394 = vmatprep.subr.bf16.mxu0 0
    %4395 = vmatpush1.bf16.msra.mxu0 %v4197
    %4396 = vmatprep.subr.bf16.mxu0 0
    %4397 = vmatpush1.bf16.msra.mxu0 0
    %4398 = vmatprep.subr.bf16.mxu0 0
    %4399 = vmatpush1.bf16.msra.mxu0 0
    %4400 = vmatprep.subr.bf16.mxu0 0
    %4401 = vmatpush1.bf16.msra.mxu0 0
    %4402 = vmatprep.subr.bf16.mxu0 0
    %4403 = vmatpush1.bf16.msra.mxu0 0
    %4404 = vmatprep.subr.bf16.mxu0 0
    %4405 = vmatpush1.bf16.msra.mxu0 0
    %4406 = vmatprep.subr.bf16.mxu0 0
    %4407 = vmatpush1.bf16.msra.mxu0 0
    %4408 = vmatprep.subr.bf16.mxu0 0
    %4409 = vmatpush1.bf16.msra.mxu0 0
    %4410 = vmatprep.subr.bf16.mxu0 0
    %4411 = vmatpush1.bf16.msra.mxu0 0
    %4412 = vmatprep.subr.bf16.mxu0 0
    %4413 = vmatpush1.bf16.msra.mxu0 0
    %4414 = vmatprep.subr.bf16.mxu0 0
    %4415 = vmatpush1.bf16.msra.mxu0 0
    %4416 = vmatprep.subr.bf16.mxu0 0
    %4417 = vmatpush1.bf16.msra.mxu0 0
    %4418 = vmatprep.subr.bf16.mxu0 0
    %4419 = vmatpush1.bf16.msra.mxu0 0
    %4420 = vmatprep.subr.bf16.mxu0 0
    %4421 = vmatpush1.bf16.msra.mxu0 0
    %4422 = vmatprep.subr.bf16.mxu0 0
    %4423 = vmatpush1.bf16.msra.mxu0 0
    %4424 = vmatprep.mubr.bf16.mxu0 0
    %4425 = vmatmul.mubr.bf16.gmra.mrb[0].mxu0 %v4218
    %v4426 = vpop.f32.mrb[0].mxu0
    %v4427 = vadd.f32 0.0, %v4426
    %v4428 = vpop.f32.mrb[0].mxu0
    %v4429 = vpop.f32.mrb[0].mxu0
    %v4430 = vadd.f32 0.0, %v4429
    %v4431 = vpop.f32.mrb[0].mxu0
    %4432 = vdwg.mxu0
    %v4433 = vld [vmem:[#allocation7] sm:$0xff]
    %v4434 = vld [vmem:[#allocation7 + $0x8] sm:$0xff]
    %s4435 = scalar_lea.vmem [#allocation7], 16
    %v4436 = vld [vmem:[%s4435] sm:$0xff]
    %v4437 = vld [vmem:[%s4435 + $0x8] sm:$0xff]
    %vm4438 = vcmask 130048
    %v4440 = vsel %vm4438, %v4436, 0
    %v4443 = vsel %vm4438, %v4437, 0
    %4445 = vmatprep.subr.mxu0 0.0
    %4446 = vmatpush1.msra.mxu0 %v4257
    %4447 = vmatprep.subr.mxu0 0.0
    %4448 = vmatpush1.msra.mxu0 %v4261
    %4449 = vmatprep.subr.mxu0 0.0
    %4450 = vmatpush1.msra.mxu0 0.0
    %4451 = vmatprep.subr.mxu0 0.0
    %4452 = vmatpush1.msra.mxu0 0.0
    %4453 = vmatprep.subr.mxu0 0.0
    %4454 = vmatpush1.msra.mxu0 0.0
    %4455 = vmatprep.subr.mxu0 0.0
    %4456 = vmatpush1.msra.mxu0 0.0
    %4457 = vmatprep.subr.mxu0 0.0
    %4458 = vmatpush1.msra.mxu0 0.0
    %4459 = vmatprep.subr.mxu0 0.0
    %4460 = vmatpush1.msra.mxu0 0.0
    %4461 = vmatprep.subr.mxu0 0.0
    %4462 = vmatpush1.msra.mxu0 0.0
    %4463 = vmatprep.subr.mxu0 0.0
    %4464 = vmatpush1.msra.mxu0 0.0
    %4465 = vmatprep.subr.mxu0 0.0
    %4466 = vmatpush1.msra.mxu0 0.0
    %4467 = vmatprep.subr.mxu0 0.0
    %4468 = vmatpush1.msra.mxu0 0.0
    %4469 = vmatprep.subr.mxu0 0.0
    %4470 = vmatpush1.msra.mxu0 0.0
    %4471 = vmatprep.subr.mxu0 0.0
    %4472 = vmatpush1.msra.mxu0 0.0
    %4473 = vmatprep.subr.mxu0 0.0
    %4474 = vmatpush1.msra.mxu0 0.0
    %4475 = vmatprep.subr.mxu0 0.0
    %4476 = vmatpush1.msra.mxu0 0.0
    %4477 = vmatprep.subr.mxu0 0.0
    %4478 = vmatpush1.msra.mxu0 0.0
    %4479 = vmatprep.subr.mxu0 0.0
    %4480 = vmatpush1.msra.mxu0 0.0
    %4481 = vmatprep.subr.mxu0 0.0
    %4482 = vmatpush1.msra.mxu0 0.0
    %4483 = vmatprep.subr.mxu0 0.0
    %4484 = vmatpush1.msra.mxu0 0.0
    %4485 = vmatprep.subr.mxu0 0.0
    %4486 = vmatpush1.msra.mxu0 0.0
    %4487 = vmatprep.subr.mxu0 0.0
    %4488 = vmatpush1.msra.mxu0 0.0
    %4489 = vmatprep.subr.mxu0 0.0
    %4490 = vmatpush1.msra.mxu0 0.0
    %4491 = vmatprep.subr.mxu0 0.0
    %4492 = vmatpush1.msra.mxu0 0.0
    %4493 = vmatprep.subr.mxu0 0.0
    %4494 = vmatpush1.msra.mxu0 0.0
    %4495 = vmatprep.subr.mxu0 0.0
    %4496 = vmatpush1.msra.mxu0 0.0
    %4497 = vmatprep.subr.mxu0 0.0
    %4498 = vmatpush1.msra.mxu0 0.0
    %4499 = vmatprep.subr.mxu0 0.0
    %4500 = vmatpush1.msra.mxu0 0.0
    %4501 = vmatprep.subr.mxu0 0.0
    %4502 = vmatpush1.msra.mxu0 0.0
    %4503 = vmatprep.subr.mxu0 0.0
    %4504 = vmatpush1.msra.mxu0 0.0
    %4505 = vmatprep.subr.mxu0 0.0
    %4506 = vmatpush1.msra.mxu0 0.0
    %4507 = vmatprep.subr.mxu0 0.0
    %4508 = vmatpush1.msra.mxu0 0.0
    %4509 = vmatprep.mubr.f32.mxu0 0.0
    %4510 = vmatmul.mubr.f32.gmra.mrb[0].mxu0 %v4440
    %v4511 = vpop.f32.mrb[0].mxu0
    %v4512 = vadd.f32 0.0, %v4511
    %v4513 = vpop.f32.mrb[0].mxu0
    %4514 = vmatprep.mubr.f32.mxu0 0.0
    %4515 = vmatmul.mubr.f32.gmra.mrb[0].mxu0 %v4443
    %v4516 = vpop.f32.mrb[0].mxu0
    %v4517 = vadd.f32 0.0, %v4516
    %v4518 = vpop.f32.mrb[0].mxu0
    %4519 = vdwg.mxu0
    %v4521 = vsel %vm4438, %v4433, 0
    %v4524 = vsel %vm4438, %v4434, 0
    %4526 = vmatprep.subr.mxu0 0.0
    %4527 = vmatpush1.msra.mxu0 %v4255
    %4528 = vmatprep.subr.mxu0 0.0
    %4529 = vmatpush1.msra.mxu0 %v4259
    %4530 = vmatprep.subr.mxu0 0.0
    %4531 = vmatpush1.msra.mxu0 0.0
    %4532 = vmatprep.subr.mxu0 0.0
    %4533 = vmatpush1.msra.mxu0 0.0
    %4534 = vmatprep.subr.mxu0 0.0
    %4535 = vmatpush1.msra.mxu0 0.0
    %4536 = vmatprep.subr.mxu0 0.0
    %4537 = vmatpush1.msra.mxu0 0.0
    %4538 = vmatprep.subr.mxu0 0.0
    %4539 = vmatpush1.msra.mxu0 0.0
    %4540 = vmatprep.subr.mxu0 0.0
    %4541 = vmatpush1.msra.mxu0 0.0
    %4542 = vmatprep.subr.mxu0 0.0
    %4543 = vmatpush1.msra.mxu0 0.0
    %4544 = vmatprep.subr.mxu0 0.0
    %4545 = vmatpush1.msra.mxu0 0.0
    %4546 = vmatprep.subr.mxu0 0.0
    %4547 = vmatpush1.msra.mxu0 0.0
    %4548 = vmatprep.subr.mxu0 0.0
    %4549 = vmatpush1.msra.mxu0 0.0
    %4550 = vmatprep.subr.mxu0 0.0
    %4551 = vmatpush1.msra.mxu0 0.0
    %4552 = vmatprep.subr.mxu0 0.0
    %4553 = vmatpush1.msra.mxu0 0.0
    %4554 = vmatprep.subr.mxu0 0.0
    %4555 = vmatpush1.msra.mxu0 0.0
    %4556 = vmatprep.subr.mxu0 0.0
    %4557 = vmatpush1.msra.mxu0 0.0
    %4558 = vmatprep.subr.mxu0 0.0
    %4559 = vmatpush1.msra.mxu0 0.0
    %4560 = vmatprep.subr.mxu0 0.0
    %4561 = vmatpush1.msra.mxu0 0.0
    %4562 = vmatprep.subr.mxu0 0.0
    %4563 = vmatpush1.msra.mxu0 0.0
    %4564 = vmatprep.subr.mxu0 0.0
    %4565 = vmatpush1.msra.mxu0 0.0
    %4566 = vmatprep.subr.mxu0 0.0
    %4567 = vmatpush1.msra.mxu0 0.0
    %4568 = vmatprep.subr.mxu0 0.0
    %4569 = vmatpush1.msra.mxu0 0.0
    %4570 = vmatprep.subr.mxu0 0.0
    %4571 = vmatpush1.msra.mxu0 0.0
    %4572 = vmatprep.subr.mxu0 0.0
    %4573 = vmatpush1.msra.mxu0 0.0
    %4574 = vmatprep.subr.mxu0 0.0
    %4575 = vmatpush1.msra.mxu0 0.0
    %4576 = vmatprep.subr.mxu0 0.0
    %4577 = vmatpush1.msra.mxu0 0.0
    %4578 = vmatprep.subr.mxu0 0.0
    %4579 = vmatpush1.msra.mxu0 0.0
    %4580 = vmatprep.subr.mxu0 0.0
    %4581 = vmatpush1.msra.mxu0 0.0
    %4582 = vmatprep.subr.mxu0 0.0
    %4583 = vmatpush1.msra.mxu0 0.0
    %4584 = vmatprep.subr.mxu0 0.0
    %4585 = vmatpush1.msra.mxu0 0.0
    %4586 = vmatprep.subr.mxu0 0.0
    %4587 = vmatpush1.msra.mxu0 0.0
    %4588 = vmatprep.subr.mxu0 0.0
    %4589 = vmatpush1.msra.mxu0 0.0
    %4590 = vmatprep.mubr.f32.mxu0 0.0
    %4591 = vmatmul.mubr.f32.gmra.mrb[0].mxu0 %v4521
    %v4592 = vpop.f32.mrb[0].mxu0
    %v4593 = vadd.f32 %v4512, %v4592
    %v4594 = vpop.f32.mrb[0].mxu0
    %4595 = vmatprep.mubr.f32.mxu0 0.0
    %4596 = vmatmul.mubr.f32.gmra.mrb[0].mxu0 %v4524
    %v4597 = vpop.f32.mrb[0].mxu0
    %v4598 = vadd.f32 %v4517, %v4597
    %v4599 = vpop.f32.mrb[0].mxu0
    %4600 = vdwg.mxu0
    %s4601 = scalar_lea.vmem [#allocation7], 32
    %v4602 = vld [vmem:[%s4601] sm:$0xff]
    %v4603 = vld [vmem:[%s4601 + $0x8] sm:$0xff]
    %v4605 = vsel %vm4438, %v4602, 0
    %v4608 = vsel %vm4438, %v4603, 0
    %4610 = vmatprep.subr.mxu0 0.0
    %4611 = vmatpush1.msra.mxu0 %v4298
    %4612 = vmatprep.subr.mxu0 0.0
    %4613 = vmatpush1.msra.mxu0 %v4302
    %4614 = vmatprep.subr.mxu0 0.0
    %4615 = vmatpush1.msra.mxu0 0.0
    %4616 = vmatprep.subr.mxu0 0.0
    %4617 = vmatpush1.msra.mxu0 0.0
    %4618 = vmatprep.subr.mxu0 0.0
    %4619 = vmatpush1.msra.mxu0 0.0
    %4620 = vmatprep.subr.mxu0 0.0
    %4621 = vmatpush1.msra.mxu0 0.0
    %4622 = vmatprep.subr.mxu0 0.0
    %4623 = vmatpush1.msra.mxu0 0.0
    %4624 = vmatprep.subr.mxu0 0.0
    %4625 = vmatpush1.msra.mxu0 0.0
    %4626 = vmatprep.subr.mxu0 0.0
    %4627 = vmatpush1.msra.mxu0 0.0
    %4628 = vmatprep.subr.mxu0 0.0
    %4629 = vmatpush1.msra.mxu0 0.0
    %4630 = vmatprep.subr.mxu0 0.0
    %4631 = vmatpush1.msra.mxu0 0.0
    %4632 = vmatprep.subr.mxu0 0.0
    %4633 = vmatpush1.msra.mxu0 0.0
    %4634 = vmatprep.subr.mxu0 0.0
    %4635 = vmatpush1.msra.mxu0 0.0
    %4636 = vmatprep.subr.mxu0 0.0
    %4637 = vmatpush1.msra.mxu0 0.0
    %4638 = vmatprep.subr.mxu0 0.0
    %4639 = vmatpush1.msra.mxu0 0.0
    %4640 = vmatprep.subr.mxu0 0.0
    %4641 = vmatpush1.msra.mxu0 0.0
    %4642 = vmatprep.subr.mxu0 0.0
    %4643 = vmatpush1.msra.mxu0 0.0
    %4644 = vmatprep.subr.mxu0 0.0
    %4645 = vmatpush1.msra.mxu0 0.0
    %4646 = vmatprep.subr.mxu0 0.0
    %4647 = vmatpush1.msra.mxu0 0.0
    %4648 = vmatprep.subr.mxu0 0.0
    %4649 = vmatpush1.msra.mxu0 0.0
    %4650 = vmatprep.subr.mxu0 0.0
    %4651 = vmatpush1.msra.mxu0 0.0
    %4652 = vmatprep.subr.mxu0 0.0
    %4653 = vmatpush1.msra.mxu0 0.0
    %4654 = vmatprep.subr.mxu0 0.0
    %4655 = vmatpush1.msra.mxu0 0.0
    %4656 = vmatprep.subr.mxu0 0.0
    %4657 = vmatpush1.msra.mxu0 0.0
    %4658 = vmatprep.subr.mxu0 0.0
    %4659 = vmatpush1.msra.mxu0 0.0
    %4660 = vmatprep.subr.mxu0 0.0
    %4661 = vmatpush1.msra.mxu0 0.0
    %4662 = vmatprep.subr.mxu0 0.0
    %4663 = vmatpush1.msra.mxu0 0.0
    %4664 = vmatprep.subr.mxu0 0.0
    %4665 = vmatpush1.msra.mxu0 0.0
    %4666 = vmatprep.subr.mxu0 0.0
    %4667 = vmatpush1.msra.mxu0 0.0
    %4668 = vmatprep.subr.mxu0 0.0
    %4669 = vmatpush1.msra.mxu0 0.0
    %4670 = vmatprep.subr.mxu0 0.0
    %4671 = vmatpush1.msra.mxu0 0.0
    %4672 = vmatprep.subr.mxu0 0.0
    %4673 = vmatpush1.msra.mxu0 0.0
    %4674 = vmatprep.mubr.f32.mxu0 0.0
    %4675 = vmatmul.mubr.f32.gmra.mrb[0].mxu0 %v4605
    %v4676 = vpop.f32.mrb[0].mxu0
    %v4677 = vadd.f32 0.0, %v4676
    %v4678 = vpop.f32.mrb[0].mxu0
    %4679 = vmatprep.mubr.f32.mxu0 0.0
    %4680 = vmatmul.mubr.f32.gmra.mrb[0].mxu0 %v4608
    %v4681 = vpop.f32.mrb[0].mxu0
    %v4682 = vadd.f32 0.0, %v4681
    %v4683 = vpop.f32.mrb[0].mxu0
    %4684 = vdwg.mxu0
    %v4685 = vadd.f32 %v4593, %v4677
    %v4686 = vadd.f32 %v4598, %v4682
    %s4687 = scalar_lea.vmem [#allocation7], 48
    %v4688 = vld [vmem:[%s4687] sm:$0xff]
    %v4689 = vld [vmem:[%s4687 + $0x8] sm:$0xff]
    %v4691 = vsel %vm4438, %v4688, 0
    %v4694 = vsel %vm4438, %v4689, 0
    %4696 = vmatprep.subr.mxu0 0.0
    %4697 = vmatpush1.msra.mxu0 %v4300
    %4698 = vmatprep.subr.mxu0 0.0
    %4699 = vmatpush1.msra.mxu0 %v4304
    %4700 = vmatprep.subr.mxu0 0.0
    %4701 = vmatpush1.msra.mxu0 0.0
    %4702 = vmatprep.subr.mxu0 0.0
    %4703 = vmatpush1.msra.mxu0 0.0
    %4704 = vmatprep.subr.mxu0 0.0
    %4705 = vmatpush1.msra.mxu0 0.0
    %4706 = vmatprep.subr.mxu0 0.0
    %4707 = vmatpush1.msra.mxu0 0.0
    %4708 = vmatprep.subr.mxu0 0.0
    %4709 = vmatpush1.msra.mxu0 0.0
    %4710 = vmatprep.subr.mxu0 0.0
    %4711 = vmatpush1.msra.mxu0 0.0
    %4712 = vmatprep.subr.mxu0 0.0
    %4713 = vmatpush1.msra.mxu0 0.0
    %4714 = vmatprep.subr.mxu0 0.0
    %4715 = vmatpush1.msra.mxu0 0.0
    %4716 = vmatprep.subr.mxu0 0.0
    %4717 = vmatpush1.msra.mxu0 0.0
    %4718 = vmatprep.subr.mxu0 0.0
    %4719 = vmatpush1.msra.mxu0 0.0
    %4720 = vmatprep.subr.mxu0 0.0
    %4721 = vmatpush1.msra.mxu0 0.0
    %4722 = vmatprep.subr.mxu0 0.0
    %4723 = vmatpush1.msra.mxu0 0.0
    %4724 = vmatprep.subr.mxu0 0.0
    %4725 = vmatpush1.msra.mxu0 0.0
    %4726 = vmatprep.subr.mxu0 0.0
    %4727 = vmatpush1.msra.mxu0 0.0
    %4728 = vmatprep.subr.mxu0 0.0
    %4729 = vmatpush1.msra.mxu0 0.0
    %4730 = vmatprep.subr.mxu0 0.0
    %4731 = vmatpush1.msra.mxu0 0.0
    %4732 = vmatprep.subr.mxu0 0.0
    %4733 = vmatpush1.msra.mxu0 0.0
    %4734 = vmatprep.subr.mxu0 0.0
    %4735 = vmatpush1.msra.mxu0 0.0
    %4736 = vmatprep.subr.mxu0 0.0
    %4737 = vmatpush1.msra.mxu0 0.0
    %4738 = vmatprep.subr.mxu0 0.0
    %4739 = vmatpush1.msra.mxu0 0.0
    %4740 = vmatprep.subr.mxu0 0.0
    %4741 = vmatpush1.msra.mxu0 0.0
    %4742 = vmatprep.subr.mxu0 0.0
    %4743 = vmatpush1.msra.mxu0 0.0
    %4744 = vmatprep.subr.mxu0 0.0
    %4745 = vmatpush1.msra.mxu0 0.0
    %4746 = vmatprep.subr.mxu0 0.0
    %4747 = vmatpush1.msra.mxu0 0.0
    %4748 = vmatprep.subr.mxu0 0.0
    %4749 = vmatpush1.msra.mxu0 0.0
    %4750 = vmatprep.subr.mxu0 0.0
    %4751 = vmatpush1.msra.mxu0 0.0
    %4752 = vmatprep.subr.mxu0 0.0
    %4753 = vmatpush1.msra.mxu0 0.0
    %4754 = vmatprep.subr.mxu0 0.0
    %4755 = vmatpush1.msra.mxu0 0.0
    %4756 = vmatprep.subr.mxu0 0.0
    %4757 = vmatpush1.msra.mxu0 0.0
    %4758 = vmatprep.subr.mxu0 0.0
    %4759 = vmatpush1.msra.mxu0 0.0
    %4760 = vmatprep.mubr.f32.mxu0 0.0
    %4761 = vmatmul.mubr.f32.gmra.mrb[0].mxu0 %v4691
    %v4762 = vpop.f32.mrb[0].mxu0
    %v4763 = vadd.f32 0.0, %v4762
    %v4764 = vpop.f32.mrb[0].mxu0
    %4765 = vmatprep.mubr.f32.mxu0 0.0
    %4766 = vmatmul.mubr.f32.gmra.mrb[0].mxu0 %v4694
    %v4767 = vpop.f32.mrb[0].mxu0
    %v4768 = vadd.f32 0.0, %v4767
    %v4769 = vpop.f32.mrb[0].mxu0
    %4770 = vdwg.mxu0
    %v4771 = vadd.f32 %v4685, %v4763
    %v4772 = vadd.f32 %v4686, %v4768
    %s4773 = scalar_lea.vmem [#allocation7], 64
    %v4774 = vld [vmem:[%s4773] sm:$0xff]
    %v4775 = vld [vmem:[%s4773 + $0x8] sm:$0xff]
    %v4777 = vsel %vm4438, %v4774, 0
    %v4780 = vsel %vm4438, %v4775, 0
    %4782 = vmatprep.subr.mxu0 0.0
    %4783 = vmatpush1.msra.mxu0 %v4341
    %4784 = vmatprep.subr.mxu0 0.0
    %4785 = vmatpush1.msra.mxu0 %v4345
    %4786 = vmatprep.subr.mxu0 0.0
    %4787 = vmatpush1.msra.mxu0 0.0
    %4788 = vmatprep.subr.mxu0 0.0
    %4789 = vmatpush1.msra.mxu0 0.0
    %4790 = vmatprep.subr.mxu0 0.0
    %4791 = vmatpush1.msra.mxu0 0.0
    %4792 = vmatprep.subr.mxu0 0.0
    %4793 = vmatpush1.msra.mxu0 0.0
    %4794 = vmatprep.subr.mxu0 0.0
    %4795 = vmatpush1.msra.mxu0 0.0
    %4796 = vmatprep.subr.mxu0 0.0
    %4797 = vmatpush1.msra.mxu0 0.0
    %4798 = vmatprep.subr.mxu0 0.0
    %4799 = vmatpush1.msra.mxu0 0.0
    %4800 = vmatprep.subr.mxu0 0.0
    %4801 = vmatpush1.msra.mxu0 0.0
    %4802 = vmatprep.subr.mxu0 0.0
    %4803 = vmatpush1.msra.mxu0 0.0
    %4804 = vmatprep.subr.mxu0 0.0
    %4805 = vmatpush1.msra.mxu0 0.0
    %4806 = vmatprep.subr.mxu0 0.0
    %4807 = vmatpush1.msra.mxu0 0.0
    %4808 = vmatprep.subr.mxu0 0.0
    %4809 = vmatpush1.msra.mxu0 0.0
    %4810 = vmatprep.subr.mxu0 0.0
    %4811 = vmatpush1.msra.mxu0 0.0
    %4812 = vmatprep.subr.mxu0 0.0
    %4813 = vmatpush1.msra.mxu0 0.0
    %4814 = vmatprep.subr.mxu0 0.0
    %4815 = vmatpush1.msra.mxu0 0.0
    %4816 = vmatprep.subr.mxu0 0.0
    %4817 = vmatpush1.msra.mxu0 0.0
    %4818 = vmatprep.subr.mxu0 0.0
    %4819 = vmatpush1.msra.mxu0 0.0
    %4820 = vmatprep.subr.mxu0 0.0
    %4821 = vmatpush1.msra.mxu0 0.0
    %4822 = vmatprep.subr.mxu0 0.0
    %4823 = vmatpush1.msra.mxu0 0.0
    %4824 = vmatprep.subr.mxu0 0.0
    %4825 = vmatpush1.msra.mxu0 0.0
    %4826 = vmatprep.subr.mxu0 0.0
    %4827 = vmatpush1.msra.mxu0 0.0
    %4828 = vmatprep.subr.mxu0 0.0
    %4829 = vmatpush1.msra.mxu0 0.0
    %4830 = vmatprep.subr.mxu0 0.0
    %4831 = vmatpush1.msra.mxu0 0.0
    %4832 = vmatprep.subr.mxu0 0.0
    %4833 = vmatpush1.msra.mxu0 0.0
    %4834 = vmatprep.subr.mxu0 0.0
    %4835 = vmatpush1.msra.mxu0 0.0
    %4836 = vmatprep.subr.mxu0 0.0
    %4837 = vmatpush1.msra.mxu0 0.0
    %4838 = vmatprep.subr.mxu0 0.0
    %4839 = vmatpush1.msra.mxu0 0.0
    %4840 = vmatprep.subr.mxu0 0.0
    %4841 = vmatpush1.msra.mxu0 0.0
    %4842 = vmatprep.subr.mxu0 0.0
    %4843 = vmatpush1.msra.mxu0 0.0
    %4844 = vmatprep.subr.mxu0 0.0
    %4845 = vmatpush1.msra.mxu0 0.0
    %4846 = vmatprep.mubr.f32.mxu0 0.0
    %4847 = vmatmul.mubr.f32.gmra.mrb[0].mxu0 %v4777
    %v4848 = vpop.f32.mrb[0].mxu0
    %v4849 = vadd.f32 0.0, %v4848
    %v4850 = vpop.f32.mrb[0].mxu0
    %4851 = vmatprep.mubr.f32.mxu0 0.0
    %4852 = vmatmul.mubr.f32.gmra.mrb[0].mxu0 %v4780
    %v4853 = vpop.f32.mrb[0].mxu0
    %v4854 = vadd.f32 0.0, %v4853
    %v4855 = vpop.f32.mrb[0].mxu0
    %4856 = vdwg.mxu0
    %v4857 = vadd.f32 %v4771, %v4849
    %v4858 = vadd.f32 %v4772, %v4854
    %s4859 = scalar_lea.vmem [#allocation7], 80
    %v4860 = vld [vmem:[%s4859] sm:$0xff]
    %v4861 = vld [vmem:[%s4859 + $0x8] sm:$0xff]
    %v4863 = vsel %vm4438, %v4860, 0
    %v4866 = vsel %vm4438, %v4861, 0
    %4868 = vmatprep.subr.mxu0 0.0
    %4869 = vmatpush1.msra.mxu0 %v4343
    %4870 = vmatprep.subr.mxu0 0.0
    %4871 = vmatpush1.msra.mxu0 %v4347
    %4872 = vmatprep.subr.mxu0 0.0
    %4873 = vmatpush1.msra.mxu0 0.0
    %4874 = vmatprep.subr.mxu0 0.0
    %4875 = vmatpush1.msra.mxu0 0.0
    %4876 = vmatprep.subr.mxu0 0.0
    %4877 = vmatpush1.msra.mxu0 0.0
    %4878 = vmatprep.subr.mxu0 0.0
    %4879 = vmatpush1.msra.mxu0 0.0
    %4880 = vmatprep.subr.mxu0 0.0
    %4881 = vmatpush1.msra.mxu0 0.0
    %4882 = vmatprep.subr.mxu0 0.0
    %4883 = vmatpush1.msra.mxu0 0.0
    %4884 = vmatprep.subr.mxu0 0.0
    %4885 = vmatpush1.msra.mxu0 0.0
    %4886 = vmatprep.subr.mxu0 0.0
    %4887 = vmatpush1.msra.mxu0 0.0
    %4888 = vmatprep.subr.mxu0 0.0
    %4889 = vmatpush1.msra.mxu0 0.0
    %4890 = vmatprep.subr.mxu0 0.0
    %4891 = vmatpush1.msra.mxu0 0.0
    %4892 = vmatprep.subr.mxu0 0.0
    %4893 = vmatpush1.msra.mxu0 0.0
    %4894 = vmatprep.subr.mxu0 0.0
    %4895 = vmatpush1.msra.mxu0 0.0
    %4896 = vmatprep.subr.mxu0 0.0
    %4897 = vmatpush1.msra.mxu0 0.0
    %4898 = vmatprep.subr.mxu0 0.0
    %4899 = vmatpush1.msra.mxu0 0.0
    %4900 = vmatprep.subr.mxu0 0.0
    %4901 = vmatpush1.msra.mxu0 0.0
    %4902 = vmatprep.subr.mxu0 0.0
    %4903 = vmatpush1.msra.mxu0 0.0
    %4904 = vmatprep.subr.mxu0 0.0
    %4905 = vmatpush1.msra.mxu0 0.0
    %4906 = vmatprep.subr.mxu0 0.0
    %4907 = vmatpush1.msra.mxu0 0.0
    %4908 = vmatprep.subr.mxu0 0.0
    %4909 = vmatpush1.msra.mxu0 0.0
    %4910 = vmatprep.subr.mxu0 0.0
    %4911 = vmatpush1.msra.mxu0 0.0
    %4912 = vmatprep.subr.mxu0 0.0
    %4913 = vmatpush1.msra.mxu0 0.0
    %4914 = vmatprep.subr.mxu0 0.0
    %4915 = vmatpush1.msra.mxu0 0.0
    %4916 = vmatprep.subr.mxu0 0.0
    %4917 = vmatpush1.msra.mxu0 0.0
    %4918 = vmatprep.subr.mxu0 0.0
    %4919 = vmatpush1.msra.mxu0 0.0
    %4920 = vmatprep.subr.mxu0 0.0
    %4921 = vmatpush1.msra.mxu0 0.0
    %4922 = vmatprep.subr.mxu0 0.0
    %4923 = vmatpush1.msra.mxu0 0.0
    %4924 = vmatprep.subr.mxu0 0.0
    %4925 = vmatpush1.msra.mxu0 0.0
    %4926 = vmatprep.subr.mxu0 0.0
    %4927 = vmatpush1.msra.mxu0 0.0
    %4928 = vmatprep.subr.mxu0 0.0
    %4929 = vmatpush1.msra.mxu0 0.0
    %4930 = vmatprep.subr.mxu0 0.0
    %4931 = vmatpush1.msra.mxu0 0.0
    %4932 = vmatprep.mubr.f32.mxu0 0.0
    %4933 = vmatmul.mubr.f32.gmra.mrb[0].mxu0 %v4863
    %v4934 = vpop.f32.mrb[0].mxu0
    %v4935 = vadd.f32 0.0, %v4934
    %v4936 = vpop.f32.mrb[0].mxu0
    %4937 = vmatprep.mubr.f32.mxu0 0.0
    %4938 = vmatmul.mubr.f32.gmra.mrb[0].mxu0 %v4866
    %v4939 = vpop.f32.mrb[0].mxu0
    %v4940 = vadd.f32 0.0, %v4939
    %v4941 = vpop.f32.mrb[0].mxu0
    %4942 = vdwg.mxu0
    %v4943 = vadd.f32 %v4857, %v4935
    %v4944 = vadd.f32 %v4858, %v4940
    %s4945 = scalar_lea.vmem [#allocation7], 96
    %v4946 = vld [vmem:[%s4945] sm:$0xff]
    %v4947 = vld [vmem:[%s4945 + $0x8] sm:$0xff]
    %v4949 = vsel %vm4438, %v4946, 0
    %v4952 = vsel %vm4438, %v4947, 0
    %4954 = vmatprep.subr.mxu0 0.0
    %4955 = vmatpush1.msra.mxu0 %v4384
    %4956 = vmatprep.subr.mxu0 0.0
    %4957 = vmatpush1.msra.mxu0 %v4388
    %4958 = vmatprep.subr.mxu0 0.0
    %4959 = vmatpush1.msra.mxu0 0.0
    %4960 = vmatprep.subr.mxu0 0.0
    %4961 = vmatpush1.msra.mxu0 0.0
    %4962 = vmatprep.subr.mxu0 0.0
    %4963 = vmatpush1.msra.mxu0 0.0
    %4964 = vmatprep.subr.mxu0 0.0
    %4965 = vmatpush1.msra.mxu0 0.0
    %4966 = vmatprep.subr.mxu0 0.0
    %4967 = vmatpush1.msra.mxu0 0.0
    %4968 = vmatprep.subr.mxu0 0.0
    %4969 = vmatpush1.msra.mxu0 0.0
    %4970 = vmatprep.subr.mxu0 0.0
    %4971 = vmatpush1.msra.mxu0 0.0
    %4972 = vmatprep.subr.mxu0 0.0
    %4973 = vmatpush1.msra.mxu0 0.0
    %4974 = vmatprep.subr.mxu0 0.0
    %4975 = vmatpush1.msra.mxu0 0.0
    %4976 = vmatprep.subr.mxu0 0.0
    %4977 = vmatpush1.msra.mxu0 0.0
    %4978 = vmatprep.subr.mxu0 0.0
    %4979 = vmatpush1.msra.mxu0 0.0
    %4980 = vmatprep.subr.mxu0 0.0
    %4981 = vmatpush1.msra.mxu0 0.0
    %4982 = vmatprep.subr.mxu0 0.0
    %4983 = vmatpush1.msra.mxu0 0.0
    %4984 = vmatprep.subr.mxu0 0.0
    %4985 = vmatpush1.msra.mxu0 0.0
    %4986 = vmatprep.subr.mxu0 0.0
    %4987 = vmatpush1.msra.mxu0 0.0
    %4988 = vmatprep.subr.mxu0 0.0
    %4989 = vmatpush1.msra.mxu0 0.0
    %4990 = vmatprep.subr.mxu0 0.0
    %4991 = vmatpush1.msra.mxu0 0.0
    %4992 = vmatprep.subr.mxu0 0.0
    %4993 = vmatpush1.msra.mxu0 0.0
    %4994 = vmatprep.subr.mxu0 0.0
    %4995 = vmatpush1.msra.mxu0 0.0
    %4996 = vmatprep.subr.mxu0 0.0
    %4997 = vmatpush1.msra.mxu0 0.0
    %4998 = vmatprep.subr.mxu0 0.0
    %4999 = vmatpush1.msra.mxu0 0.0
    %5000 = vmatprep.subr.mxu0 0.0
    %5001 = vmatpush1.msra.mxu0 0.0
    %5002 = vmatprep.subr.mxu0 0.0
    %5003 = vmatpush1.msra.mxu0 0.0
    %5004 = vmatprep.subr.mxu0 0.0
    %5005 = vmatpush1.msra.mxu0 0.0
    %5006 = vmatprep.subr.mxu0 0.0
    %5007 = vmatpush1.msra.mxu0 0.0
    %5008 = vmatprep.subr.mxu0 0.0
    %5009 = vmatpush1.msra.mxu0 0.0
    %5010 = vmatprep.subr.mxu0 0.0
    %5011 = vmatpush1.msra.mxu0 0.0
    %5012 = vmatprep.subr.mxu0 0.0
    %5013 = vmatpush1.msra.mxu0 0.0
    %5014 = vmatprep.subr.mxu0 0.0
    %5015 = vmatpush1.msra.mxu0 0.0
    %5016 = vmatprep.subr.mxu0 0.0
    %5017 = vmatpush1.msra.mxu0 0.0
    %5018 = vmatprep.mubr.f32.mxu0 0.0
    %5019 = vmatmul.mubr.f32.gmra.mrb[0].mxu0 %v4949
    %v5020 = vpop.f32.mrb[0].mxu0
    %v5021 = vadd.f32 0.0, %v5020
    %v5022 = vpop.f32.mrb[0].mxu0
    %5023 = vmatprep.mubr.f32.mxu0 0.0
    %5024 = vmatmul.mubr.f32.gmra.mrb[0].mxu0 %v4952
    %v5025 = vpop.f32.mrb[0].mxu0
    %v5026 = vadd.f32 0.0, %v5025
    %v5027 = vpop.f32.mrb[0].mxu0
    %5028 = vdwg.mxu0
    %v5029 = vadd.f32 %v4943, %v5021
    %v5030 = vadd.f32 %v4944, %v5026
    %s5031 = scalar_lea.vmem [#allocation7], 112
    %v5032 = vld [vmem:[%s5031] sm:$0xff]
    %v5033 = vld [vmem:[%s5031 + $0x8] sm:$0xff]
    %v5035 = vsel %vm4438, %v5032, 0
    %v5038 = vsel %vm4438, %v5033, 0
    %5040 = vmatprep.subr.mxu0 0.0
    %5041 = vmatpush1.msra.mxu0 %v4386
    %5042 = vmatprep.subr.mxu0 0.0
    %5043 = vmatpush1.msra.mxu0 %v4390
    %5044 = vmatprep.subr.mxu0 0.0
    %5045 = vmatpush1.msra.mxu0 0.0
    %5046 = vmatprep.subr.mxu0 0.0
    %5047 = vmatpush1.msra.mxu0 0.0
    %5048 = vmatprep.subr.mxu0 0.0
    %5049 = vmatpush1.msra.mxu0 0.0
    %5050 = vmatprep.subr.mxu0 0.0
    %5051 = vmatpush1.msra.mxu0 0.0
    %5052 = vmatprep.subr.mxu0 0.0
    %5053 = vmatpush1.msra.mxu0 0.0
    %5054 = vmatprep.subr.mxu0 0.0
    %5055 = vmatpush1.msra.mxu0 0.0
    %5056 = vmatprep.subr.mxu0 0.0
    %5057 = vmatpush1.msra.mxu0 0.0
    %5058 = vmatprep.subr.mxu0 0.0
    %5059 = vmatpush1.msra.mxu0 0.0
    %5060 = vmatprep.subr.mxu0 0.0
    %5061 = vmatpush1.msra.mxu0 0.0
    %5062 = vmatprep.subr.mxu0 0.0
    %5063 = vmatpush1.msra.mxu0 0.0
    %5064 = vmatprep.subr.mxu0 0.0
    %5065 = vmatpush1.msra.mxu0 0.0
    %5066 = vmatprep.subr.mxu0 0.0
    %5067 = vmatpush1.msra.mxu0 0.0
    %5068 = vmatprep.subr.mxu0 0.0
    %5069 = vmatpush1.msra.mxu0 0.0
    %5070 = vmatprep.subr.mxu0 0.0
    %5071 = vmatpush1.msra.mxu0 0.0
    %5072 = vmatprep.subr.mxu0 0.0
    %5073 = vmatpush1.msra.mxu0 0.0
    %5074 = vmatprep.subr.mxu0 0.0
    %5075 = vmatpush1.msra.mxu0 0.0
    %5076 = vmatprep.subr.mxu0 0.0
    %5077 = vmatpush1.msra.mxu0 0.0
    %5078 = vmatprep.subr.mxu0 0.0
    %5079 = vmatpush1.msra.mxu0 0.0
    %5080 = vmatprep.subr.mxu0 0.0
    %5081 = vmatpush1.msra.mxu0 0.0
    %5082 = vmatprep.subr.mxu0 0.0
    %5083 = vmatpush1.msra.mxu0 0.0
    %5084 = vmatprep.subr.mxu0 0.0
    %5085 = vmatpush1.msra.mxu0 0.0
    %5086 = vmatprep.subr.mxu0 0.0
    %5087 = vmatpush1.msra.mxu0 0.0
    %5088 = vmatprep.subr.mxu0 0.0
    %5089 = vmatpush1.msra.mxu0 0.0
    %5090 = vmatprep.subr.mxu0 0.0
    %5091 = vmatpush1.msra.mxu0 0.0
    %5092 = vmatprep.subr.mxu0 0.0
    %5093 = vmatpush1.msra.mxu0 0.0
    %5094 = vmatprep.subr.mxu0 0.0
    %5095 = vmatpush1.msra.mxu0 0.0
    %5096 = vmatprep.subr.mxu0 0.0
    %5097 = vmatpush1.msra.mxu0 0.0
    %5098 = vmatprep.subr.mxu0 0.0
    %5099 = vmatpush1.msra.mxu0 0.0
    %5100 = vmatprep.subr.mxu0 0.0
    %5101 = vmatpush1.msra.mxu0 0.0
    %5102 = vmatprep.subr.mxu0 0.0
    %5103 = vmatpush1.msra.mxu0 0.0
    %5104 = vmatprep.mubr.f32.mxu0 0.0
    %5105 = vmatmul.mubr.f32.gmra.mrb[0].mxu0 %v5035
    %v5106 = vpop.f32.mrb[0].mxu0
    %v5107 = vadd.f32 0.0, %v5106
    %v5108 = vpop.f32.mrb[0].mxu0
    %5109 = vmatprep.mubr.f32.mxu0 0.0
    %5110 = vmatmul.mubr.f32.gmra.mrb[0].mxu0 %v5038
    %v5111 = vpop.f32.mrb[0].mxu0
    %v5112 = vadd.f32 0.0, %v5111
    %v5113 = vpop.f32.mrb[0].mxu0
    %5114 = vdwg.mxu0
    %v5115 = vadd.f32 %v5029, %v5107
    %v5116 = vadd.f32 %v5030, %v5112
    %s5117 = scalar_lea.vmem [#allocation7], 128
    %v5118 = vld [vmem:[%s5117] sm:$0xff]
    %v5119 = vld [vmem:[%s5117 + $0x8] sm:$0xff]
    %v5121 = vsel %vm4438, %v5118, 0
    %v5124 = vsel %vm4438, %v5119, 0
    %5126 = vmatprep.subr.mxu0 0.0
    %5127 = vmatpush1.msra.mxu0 %v4427
    %5128 = vmatprep.subr.mxu0 0.0
    %5129 = vmatpush1.msra.mxu0 %v4430
    %5130 = vmatprep.subr.mxu0 0.0
    %5131 = vmatpush1.msra.mxu0 0.0
    %5132 = vmatprep.subr.mxu0 0.0
    %5133 = vmatpush1.msra.mxu0 0.0
    %5134 = vmatprep.subr.mxu0 0.0
    %5135 = vmatpush1.msra.mxu0 0.0
    %5136 = vmatprep.subr.mxu0 0.0
    %5137 = vmatpush1.msra.mxu0 0.0
    %5138 = vmatprep.subr.mxu0 0.0
    %5139 = vmatpush1.msra.mxu0 0.0
    %5140 = vmatprep.subr.mxu0 0.0
    %5141 = vmatpush1.msra.mxu0 0.0
    %5142 = vmatprep.subr.mxu0 0.0
    %5143 = vmatpush1.msra.mxu0 0.0
    %5144 = vmatprep.subr.mxu0 0.0
    %5145 = vmatpush1.msra.mxu0 0.0
    %5146 = vmatprep.subr.mxu0 0.0
    %5147 = vmatpush1.msra.mxu0 0.0
    %5148 = vmatprep.subr.mxu0 0.0
    %5149 = vmatpush1.msra.mxu0 0.0
    %5150 = vmatprep.subr.mxu0 0.0
    %5151 = vmatpush1.msra.mxu0 0.0
    %5152 = vmatprep.subr.mxu0 0.0
    %5153 = vmatpush1.msra.mxu0 0.0
    %5154 = vmatprep.subr.mxu0 0.0
    %5155 = vmatpush1.msra.mxu0 0.0
    %5156 = vmatprep.subr.mxu0 0.0
    %5157 = vmatpush1.msra.mxu0 0.0
    %5158 = vmatprep.subr.mxu0 0.0
    %5159 = vmatpush1.msra.mxu0 0.0
    %5160 = vmatprep.subr.mxu0 0.0
    %5161 = vmatpush1.msra.mxu0 0.0
    %5162 = vmatprep.subr.mxu0 0.0
    %5163 = vmatpush1.msra.mxu0 0.0
    %5164 = vmatprep.subr.mxu0 0.0
    %5165 = vmatpush1.msra.mxu0 0.0
    %5166 = vmatprep.subr.mxu0 0.0
    %5167 = vmatpush1.msra.mxu0 0.0
    %5168 = vmatprep.subr.mxu0 0.0
    %5169 = vmatpush1.msra.mxu0 0.0
    %5170 = vmatprep.subr.mxu0 0.0
    %5171 = vmatpush1.msra.mxu0 0.0
    %5172 = vmatprep.subr.mxu0 0.0
    %5173 = vmatpush1.msra.mxu0 0.0
    %5174 = vmatprep.subr.mxu0 0.0
    %5175 = vmatpush1.msra.mxu0 0.0
    %5176 = vmatprep.subr.mxu0 0.0
    %5177 = vmatpush1.msra.mxu0 0.0
    %5178 = vmatprep.subr.mxu0 0.0
    %5179 = vmatpush1.msra.mxu0 0.0
    %5180 = vmatprep.subr.mxu0 0.0
    %5181 = vmatpush1.msra.mxu0 0.0
    %5182 = vmatprep.subr.mxu0 0.0
    %5183 = vmatpush1.msra.mxu0 0.0
    %5184 = vmatprep.subr.mxu0 0.0
    %5185 = vmatpush1.msra.mxu0 0.0
    %5186 = vmatprep.subr.mxu0 0.0
    %5187 = vmatpush1.msra.mxu0 0.0
    %5188 = vmatprep.subr.mxu0 0.0
    %5189 = vmatpush1.msra.mxu0 0.0
    %5190 = vmatprep.mubr.f32.mxu0 0.0
    %5191 = vmatmul.mubr.f32.gmra.mrb[0].mxu0 %v5121
    %v5192 = vpop.f32.mrb[0].mxu0
    %v5193 = vadd.f32 0.0, %v5192
    %v5194 = vpop.f32.mrb[0].mxu0
    %5195 = vmatprep.mubr.f32.mxu0 0.0
    %5196 = vmatmul.mubr.f32.gmra.mrb[0].mxu0 %v5124
    %v5197 = vpop.f32.mrb[0].mxu0
    %v5198 = vadd.f32 0.0, %v5197
    %v5199 = vpop.f32.mrb[0].mxu0
    %5200 = vdwg.mxu0
    %v5201 = vadd.f32 %v5115, %v5193
    %v5202 = vadd.f32 %v5116, %v5198
    %v5203 = vld [vmem:[%s8] sm:$0xff]
    %v5204 = vld [vmem:[%s8 + $0x8] sm:$0xff]
    %5206 = vset.pattern.permute.xlu0 0
    %5207 = vperm.xlu0 %5206, %v5203
    %v5208 = vpop.permute.xlu0 %5207
    %5211 = vset.pattern.permute.xlu0 0
    %5212 = vperm.xlu0 %5211, %v5204
    %v5213 = vpop.permute.xlu0 %5212
    %v5215 = vadd.f32 %v5201, %v5208
    %v5216 = vadd.f32 %v5202, %v5213
    %v5217 = vxor.u32 %v5215, 2147483648
    %v5218 = vxor.u32 %v5216, 2147483648
    %v5219 = vmul.f32 %v5217, 1.442695
    %v5220 = vpow.pop %v5219
    %v5221 = vmul.f32 %v5218, 1.442695
    %v5222 = vpow.pop %v5221
    %v5223 = vadd.f32 %v5220, 1.0
    %v5224 = vadd.f32 %v5222, 1.0
    %v5225 = vrcp.pop %v5223
    %v5226 = vmul.f32 1.0, %v5225
    %v5227 = vrcp.pop %v5224
    %v5228 = vmul.f32 1.0, %v5227
    %v5229 = vmul.f32 %v5215, %v5226
    %v5230 = vmul.f32 %v5216, %v5228
    %v5231 = vld [vmem:[#allocation10] sm:$0xff]
    %v5232 = vld [vmem:[%s11] sm:$0xff]
    %5234 = vset.pattern.permute.xlu0 0
    %5235 = vperm.xlu0 %5234, %v5232
    %v5236 = vpop.permute.xlu0 %5235
    %v5239 = vsel %vm4438, %v5231, 0
    %5241 = vmatprep.subr.mxu0 0.0
    %5242 = vmatpush1.msra.mxu0 %v5229
    %5243 = vmatprep.subr.mxu0 0.0
    %5244 = vmatpush1.msra.mxu0 %v5230
    %5245 = vmatprep.subr.mxu0 0.0
    %5246 = vmatpush1.msra.mxu0 0.0
    %5247 = vmatprep.subr.mxu0 0.0
    %5248 = vmatpush1.msra.mxu0 0.0
    %5249 = vmatprep.subr.mxu0 0.0
    %5250 = vmatpush1.msra.mxu0 0.0
    %5251 = vmatprep.subr.mxu0 0.0
    %5252 = vmatpush1.msra.mxu0 0.0
    %5253 = vmatprep.subr.mxu0 0.0
    %5254 = vmatpush1.msra.mxu0 0.0
    %5255 = vmatprep.subr.mxu0 0.0
    %5256 = vmatpush1.msra.mxu0 0.0
    %5257 = vmatprep.subr.mxu0 0.0
    %5258 = vmatpush1.msra.mxu0 0.0
    %5259 = vmatprep.subr.mxu0 0.0
    %5260 = vmatpush1.msra.mxu0 0.0
    %5261 = vmatprep.subr.mxu0 0.0
    %5262 = vmatpush1.msra.mxu0 0.0
    %5263 = vmatprep.subr.mxu0 0.0
    %5264 = vmatpush1.msra.mxu0 0.0
    %5265 = vmatprep.subr.mxu0 0.0
    %5266 = vmatpush1.msra.mxu0 0.0
    %5267 = vmatprep.subr.mxu0 0.0
    %5268 = vmatpush1.msra.mxu0 0.0
    %5269 = vmatprep.subr.mxu0 0.0
    %5270 = vmatpush1.msra.mxu0 0.0
    %5271 = vmatprep.subr.mxu0 0.0
    %5272 = vmatpush1.msra.mxu0 0.0
    %5273 = vmatprep.subr.mxu0 0.0
    %5274 = vmatpush1.msra.mxu0 0.0
    %5275 = vmatprep.subr.mxu0 0.0
    %5276 = vmatpush1.msra.mxu0 0.0
    %5277 = vmatprep.subr.mxu0 0.0
    %5278 = vmatpush1.msra.mxu0 0.0
    %5279 = vmatprep.subr.mxu0 0.0
    %5280 = vmatpush1.msra.mxu0 0.0
    %5281 = vmatprep.subr.mxu0 0.0
    %5282 = vmatpush1.msra.mxu0 0.0
    %5283 = vmatprep.subr.mxu0 0.0
    %5284 = vmatpush1.msra.mxu0 0.0
    %5285 = vmatprep.subr.mxu0 0.0
    %5286 = vmatpush1.msra.mxu0 0.0
    %5287 = vmatprep.subr.mxu0 0.0
    %5288 = vmatpush1.msra.mxu0 0.0
    %5289 = vmatprep.subr.mxu0 0.0
    %5290 = vmatpush1.msra.mxu0 0.0
    %5291 = vmatprep.subr.mxu0 0.0
    %5292 = vmatpush1.msra.mxu0 0.0
    %5293 = vmatprep.subr.mxu0 0.0
    %5294 = vmatpush1.msra.mxu0 0.0
    %5295 = vmatprep.subr.mxu0 0.0
    %5296 = vmatpush1.msra.mxu0 0.0
    %5297 = vmatprep.subr.mxu0 0.0
    %5298 = vmatpush1.msra.mxu0 0.0
    %5299 = vmatprep.subr.mxu0 0.0
    %5300 = vmatpush1.msra.mxu0 0.0
    %5301 = vmatprep.subr.mxu0 0.0
    %5302 = vmatpush1.msra.mxu0 0.0
    %5303 = vmatprep.subr.mxu0 0.0
    %5304 = vmatpush1.msra.mxu0 0.0
    %5305 = vmatprep.mubr.f32.mxu0 0.0
    %5306 = vmatmul.mubr.f32.gmra.mrb[0].mxu0 %v5239
    %v5307 = vpop.f32.mrb[0].mxu0
    %v5308 = vadd.f32 %v5236, %v5307
    %v5309 = vpop.f32.mrb[0].mxu0
    %5310 = vdwg.mxu0
    %5311 = vst [vmem:[#allocation11] sm:$0xff] %v5308
    // Predicated region
    $region70: #{tpu_custom_call.1} parent=1 // pred_check
      _
    $region71: #{tpu_custom_call.1} parent=1 // pred_check_branch
      %5313 = sbr.rel (0) target = $region73
    $region72: #{tpu_custom_call.1} parent=1 // pred_region
      %s5315 = ssub.s32 128, 128
      %5316 = vsyncadd [#allocation4], %s5315
      %s5318 = sshll.u32 [#allocation11], 4
      %s5319 = int_to_ptr.vmem [resolvable:$true] %s5318
      %5321 = dma.vmem_to_hbm [thread:$0]  %s5319, 128, %s12, [#allocation4]
    $region73: #{tpu_custom_call.1} parent=1 // pred_fallthru
      _
    // Predicated region
    $region74: #{tpu_custom_call.1} parent=1 // pred_check
      _
    $region75: #{tpu_custom_call.1} parent=1 // pred_check_branch
      %5323 = sbr.rel (0) target = $region77
    $region76: #{tpu_custom_call.1} parent=1 // pred_region
      %5324 = dma.done [#allocation4], 128
    $region77: #{tpu_custom_call.1} parent=1 // pred_fallthru
      _
    %5325 = vsyncpa [#allocation3], 1
    %5326 = vsyncpa [#allocation6], 1
    %5327 = vsyncpa [#allocation9], 1
    %5328 = vsyncpa [#allocation4], 1

</llo_original>
